<compile_context>
chip_gen: v7x
topology: tpu7x:2x2x1
jax: 0.10.0
libtpu: 0.0.40
codegen_flags: <defaults>
</compile_context>

<pallas_src>
import math
from functools import partial

import jax
import jax.numpy as jnp
from jax.experimental import pallas as pl
from jax.experimental.pallas import tpu as pltpu

NUM_HEADS = 8


def _attn_kernel(num_heads,
                 x_ref, wqkv_ref, bqkv_ref, wo_ref, bo_ref, o_ref):
    # x_ref: (Bt, S, C) block — Bt batch elements per grid step.
    Bt, S, C = x_ref.shape
    hd = C // num_heads
    T = Bt * S                 # rows fed to the projection matmuls (>=128)
    G = Bt * num_heads         # attention "groups" = (batch-in-block, head)

    # ---- fused QKV projection: single bf16 matmul, f32 accumulation -------
    x2d = x_ref[...].reshape(T, C).astype(jnp.bfloat16)
    qkv = jnp.dot(x2d, wqkv_ref[...],
                  preferred_element_type=jnp.float32) + bqkv_ref[...]   # (T, 3C) f32
    # column layout (prepared on host): j = h*(3*hd) + {q,k,v}*hd + d
    # (scale 1/sqrt(hd) already folded into the q columns / bias)

    # ---- gather per-(batch, head) chunks into a leading batch axis --------
    chunks = []
    for b in range(Bt):
        rows = qkv[b * S:(b + 1) * S, :]                       # aligned sublane slice
        for h in range(num_heads):
            chunks.append(rows[:, h * 3 * hd:(h + 1) * 3 * hd])   # (S, 3*hd)
    qkv_hm = jnp.stack(chunks, axis=0).astype(jnp.bfloat16)       # (G, S, 3*hd)
    qh = qkv_hm[:, :, 0 * hd:1 * hd]                               # (G, S, hd)
    kh = qkv_hm[:, :, 1 * hd:2 * hd]
    vh = qkv_hm[:, :, 2 * hd:3 * hd]

    # ---- head-batched attention (leading batch dim) ------------------------
    s = jnp.einsum("gqd,gkd->gqk", qh, kh,
                   preferred_element_type=jnp.float32)             # (G, S, S) f32
    m = jnp.max(s, axis=-1, keepdims=True)
    p = jnp.exp(s - m)                                             # f32 softmax math
    denom = jnp.sum(p, axis=-1, keepdims=True)
    p = (p * pl.reciprocal(denom, approx=True)).astype(jnp.bfloat16)
    o = jnp.einsum("gqk,gkd->gqd", p, vh,
                   preferred_element_type=jnp.float32)             # (G, S, hd) f32

    # ---- output projection fused per head, summed (no head concatenate) ----
    # wo_ref: (G, hd, C) = per-head slices of W_o^T (tiled over Bt on host).
    oh = jnp.einsum("gqd,gdc->gqc", o.astype(jnp.bfloat16), wo_ref[...],
                    preferred_element_type=jnp.float32)            # (G, S, C) f32
    oh = oh.reshape(Bt, num_heads, S, C)
    acc = oh[:, 0]
    for h in range(1, num_heads):
        acc = acc + oh[:, h]                                       # (Bt, S, C)
    out2d = acc.reshape(T, C) + bo_ref[...]                        # (T, C)

    # ---- lane-dense store: transposed (C, T) slab, last dim = T (>=128) ----
    o_ref[0] = out2d.T.astype(o_ref.dtype)


def global_attention(x, params, num_heads=NUM_HEADS):
    """x: (B, H, W, C).  Returns (B, H, W, C), matching GlobalAttention.forward."""
    B, H, W, C = x.shape
    S = H * W
    assert C % num_heads == 0
    hd = C // num_heads
    x_flat = x.reshape(B, S, C)

    Bt = 2 if B % 2 == 0 else 1        # batch elements per grid step (rows = Bt*S)
    G = Bt * num_heads
    n_steps = B // Bt

    # ---- host-side weight prep (one-time layout plumbing) -------------------
    scale = 1.0 / math.sqrt(hd)
    Wi = params["in_proj_weight"]      # (3C, C); PyTorch does y = x @ W.T + b
    bi = params["in_proj_bias"]        # (3C,)
    wq_t = Wi[0 * C:1 * C].T * scale   # fold 1/sqrt(hd) into Q weights
    wk_t = Wi[1 * C:2 * C].T
    wv_t = Wi[2 * C:3 * C].T
    bq = bi[0 * C:1 * C] * scale       # ... and into the Q bias
    bk = bi[1 * C:2 * C]
    bv = bi[2 * C:3 * C]

    # Fuse QKV and interleave output columns per head: j = h*(3*hd) + t*hd + d
    def split_cols(w):                 # (C, C) -> (C, nh, hd)
        return w.reshape(C, num_heads, hd)

    wqkv = jnp.stack([split_cols(wq_t), split_cols(wk_t), split_cols(wv_t)],
                     axis=2).reshape(C, 3 * C).astype(jnp.bfloat16)     # (C, 3C)
    bqkv = jnp.stack([bq.reshape(num_heads, hd),
                      bk.reshape(num_heads, hd),
                      bv.reshape(num_heads, hd)],
                     axis=1).reshape(1, 3 * C).astype(jnp.float32)      # (1, 3C)

    # Per-head slices of W_o^T, tiled over the Bt batch slots of a block.
    wo_t = params["out_proj_weight"].T.reshape(num_heads, hd, C)        # (nh, hd, C)
    wo_g = jnp.tile(wo_t, (Bt, 1, 1)).astype(jnp.bfloat16)              # (G, hd, C)
    bo = params["out_proj_bias"].reshape(1, C).astype(jnp.float32)

    out_t = pl.pallas_call(
        partial(_attn_kernel, num_heads),
        out_shape=jax.ShapeDtypeStruct((n_steps, C, Bt * S), x.dtype),
        grid_spec=pltpu.PrefetchScalarGridSpec(
            num_scalar_prefetch=0,
            grid=(n_steps,),
            in_specs=[
                pl.BlockSpec((Bt, S, C), lambda g: (g, 0, 0)),    # x block
                pl.BlockSpec((C, 3 * C), lambda g: (0, 0)),       # fused QKV weight
                pl.BlockSpec((1, 3 * C), lambda g: (0, 0)),       # fused QKV bias
                pl.BlockSpec((G, hd, C), lambda g: (0, 0, 0)),    # per-head W_o^T
                pl.BlockSpec((1, C), lambda g: (0, 0)),           # out-proj bias
            ],
            out_specs=pl.BlockSpec((1, C, Bt * S), lambda g: (g, 0, 0)),
        ),
        compiler_params=pltpu.CompilerParams(
            dimension_semantics=("parallel",)),
        # For larger S/C set vmem_limit_bytes here (and switch to a
        # flash-style tiled grid for very large S, esp. on v7x's 64 MiB VMEM).
    )(x_flat, wqkv, bqkv, wo_g, bo)

    # Undo the lane-dense transposed layout in XLA (wrapper-side plumbing).
    out = out_t.reshape(n_steps, C, Bt, S).transpose(0, 2, 3, 1).reshape(B, S, C)
    return out.reshape(B, H, W, C)


def _reference(x, params, num_heads=NUM_HEADS):
    """Pure-JAX f32 reference matching nn.MultiheadAttention (dropout=0)."""
    B, H, W, C = x.shape
    S = H * W
    hd = C // num_heads
    xf = x.reshape(B, S, C).astype(jnp.float32)
    Wi = params["in_proj_weight"].astype(jnp.float32)
    bi = params["in_proj_bias"].astype(jnp.float32)
    q = xf @ Wi[0 * C:1 * C].T + bi[0 * C:1 * C]
    k = xf @ Wi[1 * C:2 * C].T + bi[1 * C:2 * C]
    v = xf @ Wi[2 * C:3 * C].T + bi[2 * C:3 * C]

    def split(t):  # (B, S, C) -> (B, nh, S, hd)
        return t.reshape(B, S, num_heads, hd).transpose(0, 2, 1, 3)

    qh, kh, vh = split(q), split(k), split(v)
    s = jnp.einsum("bhqd,bhkd->bhqk", qh, kh) / math.sqrt(hd)
    p = jax.nn.softmax(s, axis=-1)
    o = jnp.einsum("bhqk,bhkd->bhqd", p, vh)
    o = o.transpose(0, 2, 1, 3).reshape(B, S, C)
    o = o @ params["out_proj_weight"].astype(jnp.float32).T + \
        params["out_proj_bias"].astype(jnp.float32)
    return o.reshape(B, H, W, C).astype(x.dtype)


def init_params(key, chans):
    k1, k2, k3, k4 = jax.random.split(key, 4)
    scale = 1.0 / math.sqrt(chans)
    return {
        "in_proj_weight": jax.random.uniform(
            k1, (3 * chans, chans), jnp.float32, -scale, scale),
        "in_proj_bias": jax.random.uniform(
            k2, (3 * chans,), jnp.float32, -scale, scale),
        "out_proj_weight": jax.random.uniform(
            k3, (chans, chans), jnp.float32, -scale, scale),
        "out_proj_bias": jax.random.uniform(
            k4, (chans,), jnp.float32, -scale, scale),
    }


if __name__ == "__main__":
    B, H, W, C = 2, 8, 8, 32          # C divisible by num_heads=8
    key = jax.random.PRNGKey(0)
    kx, kp = jax.random.split(key)
    x = jax.random.normal(kx, (B, H, W, C), jnp.float32)
    params = init_params(kp, C)

    out = jax.block_until_ready(global_attention(x, params))
    ref = _reference(x, params)

    assert out.shape == (B, H, W, C)
    # bf16 matmul operands (f32 accumulation) -> tolerance loosened vs pure f32.
    err = float(jnp.max(jnp.abs(out - ref)))
    assert err < 5e-2, f"mismatch vs reference: max abs err {err}"
    print("KERNEL_OK")
</pallas_src>

<mosaic_0001>
module attributes {stable_mosaic.version = 11 : i64} {
  func.func @_attn_kernel(%arg0: i32, %arg1: memref<2x64x32xf32, #tpu.memory_space<vmem>>, %arg2: memref<32x96xbf16, #tpu.memory_space<vmem>>, %arg3: memref<1x96xf32, #tpu.memory_space<vmem>>, %arg4: memref<16x4x32xbf16, #tpu.memory_space<vmem>>, %arg5: memref<1x32xf32, #tpu.memory_space<vmem>>, %arg6: memref<1x32x128xf32, #tpu.memory_space<vmem>>) attributes {dimension_semantics = [#tpu.dimension_semantics<parallel>], iteration_bounds = array<i64: 1>, scalar_prefetch = 0 : i64, scratch_operands = 0 : i64, tpu.core_type = #tpu.core_type<tc>, window_params = [{transform_indices = @transform_0, window_bounds = array<i64: 2, 64, 32>}, {pipeline_mode = #tpu.pipeline_mode<synchronous>, transform_indices = @transform_1, window_bounds = array<i64: 32, 96>}, {pipeline_mode = #tpu.pipeline_mode<synchronous>, transform_indices = @transform_2, window_bounds = array<i64: 1, 96>}, {pipeline_mode = #tpu.pipeline_mode<synchronous>, transform_indices = @transform_3, window_bounds = array<i64: 16, 4, 32>}, {pipeline_mode = #tpu.pipeline_mode<synchronous>, transform_indices = @transform_4, window_bounds = array<i64: 1, 32>}, {transform_indices = @transform_5, window_bounds = array<i64: 1, 32, 128>}]} {
    %c0 = arith.constant 0 : index
    %c0_0 = arith.constant 0 : index
    %c0_1 = arith.constant 0 : index
    %0 = vector.load %arg1[%c0, %c0_0, %c0_1] : memref<2x64x32xf32, #tpu.memory_space<vmem>>, vector<2x64x32xf32>
    %1 = vector.shape_cast %0 : vector<2x64x32xf32> to vector<128x32xf32>
    %2 = arith.truncf %1 : vector<128x32xf32> to vector<128x32xbf16>
    %c0_2 = arith.constant 0 : index
    %c0_3 = arith.constant 0 : index
    %3 = vector.load %arg2[%c0_2, %c0_3] : memref<32x96xbf16, #tpu.memory_space<vmem>>, vector<32x96xbf16>
    %cst = arith.constant dense<0.000000e+00> : vector<128x96xf32>
    %4 = tpu.matmul %2, %3, %cst {dimension_numbers = #tpu.dot_dimension_numbers<[1], [0], [0], [1], [0, 0, 1, 1], [], []>} : vector<128x32xbf16>, vector<32x96xbf16>, vector<128x96xf32> -> vector<128x96xf32>
    %c0_4 = arith.constant 0 : index
    %c0_5 = arith.constant 0 : index
    %5 = vector.load %arg3[%c0_4, %c0_5] : memref<1x96xf32, #tpu.memory_space<vmem>>, vector<1x96xf32>
    %6 = vector.broadcast %5 : vector<1x96xf32> to vector<128x96xf32>
    %7 = arith.addf %4, %6 : vector<128x96xf32>
    %8 = vector.extract_strided_slice %7 {offsets = [0, 0], sizes = [64, 96], strides = [1, 1]} : vector<128x96xf32> to vector<64x96xf32>
    %9 = vector.extract_strided_slice %8 {offsets = [0, 0], sizes = [64, 12], strides = [1, 1]} : vector<64x96xf32> to vector<64x12xf32>
    %10 = vector.extract_strided_slice %8 {offsets = [0, 12], sizes = [64, 12], strides = [1, 1]} : vector<64x96xf32> to vector<64x12xf32>
    %11 = vector.extract_strided_slice %8 {offsets = [0, 24], sizes = [64, 12], strides = [1, 1]} : vector<64x96xf32> to vector<64x12xf32>
    %12 = vector.extract_strided_slice %8 {offsets = [0, 36], sizes = [64, 12], strides = [1, 1]} : vector<64x96xf32> to vector<64x12xf32>
    %13 = vector.extract_strided_slice %8 {offsets = [0, 48], sizes = [64, 12], strides = [1, 1]} : vector<64x96xf32> to vector<64x12xf32>
    %14 = vector.extract_strided_slice %8 {offsets = [0, 60], sizes = [64, 12], strides = [1, 1]} : vector<64x96xf32> to vector<64x12xf32>
    %15 = vector.extract_strided_slice %8 {offsets = [0, 72], sizes = [64, 12], strides = [1, 1]} : vector<64x96xf32> to vector<64x12xf32>
    %16 = vector.extract_strided_slice %8 {offsets = [0, 84], sizes = [64, 12], strides = [1, 1]} : vector<64x96xf32> to vector<64x12xf32>
    %17 = vector.extract_strided_slice %7 {offsets = [64, 0], sizes = [64, 96], strides = [1, 1]} : vector<128x96xf32> to vector<64x96xf32>
    %18 = vector.extract_strided_slice %17 {offsets = [0, 0], sizes = [64, 12], strides = [1, 1]} : vector<64x96xf32> to vector<64x12xf32>
    %19 = vector.extract_strided_slice %17 {offsets = [0, 12], sizes = [64, 12], strides = [1, 1]} : vector<64x96xf32> to vector<64x12xf32>
    %20 = vector.extract_strided_slice %17 {offsets = [0, 24], sizes = [64, 12], strides = [1, 1]} : vector<64x96xf32> to vector<64x12xf32>
    %21 = vector.extract_strided_slice %17 {offsets = [0, 36], sizes = [64, 12], strides = [1, 1]} : vector<64x96xf32> to vector<64x12xf32>
    %22 = vector.extract_strided_slice %17 {offsets = [0, 48], sizes = [64, 12], strides = [1, 1]} : vector<64x96xf32> to vector<64x12xf32>
    %23 = vector.extract_strided_slice %17 {offsets = [0, 60], sizes = [64, 12], strides = [1, 1]} : vector<64x96xf32> to vector<64x12xf32>
    %24 = vector.extract_strided_slice %17 {offsets = [0, 72], sizes = [64, 12], strides = [1, 1]} : vector<64x96xf32> to vector<64x12xf32>
    %25 = vector.extract_strided_slice %17 {offsets = [0, 84], sizes = [64, 12], strides = [1, 1]} : vector<64x96xf32> to vector<64x12xf32>
    %26 = vector.shape_cast %9 : vector<64x12xf32> to vector<1x64x12xf32>
    %27 = vector.shape_cast %10 : vector<64x12xf32> to vector<1x64x12xf32>
    %28 = vector.shape_cast %11 : vector<64x12xf32> to vector<1x64x12xf32>
    %29 = vector.shape_cast %12 : vector<64x12xf32> to vector<1x64x12xf32>
    %30 = vector.shape_cast %13 : vector<64x12xf32> to vector<1x64x12xf32>
    %31 = vector.shape_cast %14 : vector<64x12xf32> to vector<1x64x12xf32>
    %32 = vector.shape_cast %15 : vector<64x12xf32> to vector<1x64x12xf32>
    %33 = vector.shape_cast %16 : vector<64x12xf32> to vector<1x64x12xf32>
    %34 = vector.shape_cast %18 : vector<64x12xf32> to vector<1x64x12xf32>
    %35 = vector.shape_cast %19 : vector<64x12xf32> to vector<1x64x12xf32>
    %36 = vector.shape_cast %20 : vector<64x12xf32> to vector<1x64x12xf32>
    %37 = vector.shape_cast %21 : vector<64x12xf32> to vector<1x64x12xf32>
    %38 = vector.shape_cast %22 : vector<64x12xf32> to vector<1x64x12xf32>
    %39 = vector.shape_cast %23 : vector<64x12xf32> to vector<1x64x12xf32>
    %40 = vector.shape_cast %24 : vector<64x12xf32> to vector<1x64x12xf32>
    %41 = vector.shape_cast %25 : vector<64x12xf32> to vector<1x64x12xf32>
    %42 = tpu.concatenate %26, %27, %28, %29, %30, %31, %32, %33, %34, %35, %36, %37, %38, %39, %40, %41 in 0 : vector<1x64x12xf32>, vector<1x64x12xf32>, vector<1x64x12xf32>, vector<1x64x12xf32>, vector<1x64x12xf32>, vector<1x64x12xf32>, vector<1x64x12xf32>, vector<1x64x12xf32>, vector<1x64x12xf32>, vector<1x64x12xf32>, vector<1x64x12xf32>, vector<1x64x12xf32>, vector<1x64x12xf32>, vector<1x64x12xf32>, vector<1x64x12xf32>, vector<1x64x12xf32> -> vector<16x64x12xf32>
    %43 = arith.truncf %42 : vector<16x64x12xf32> to vector<16x64x12xbf16>
    %44 = vector.extract_strided_slice %43 {offsets = [0, 0, 0], sizes = [16, 64, 4], strides = [1, 1, 1]} : vector<16x64x12xbf16> to vector<16x64x4xbf16>
    %45 = vector.extract_strided_slice %43 {offsets = [0, 0, 4], sizes = [16, 64, 4], strides = [1, 1, 1]} : vector<16x64x12xbf16> to vector<16x64x4xbf16>
    %46 = vector.extract_strided_slice %43 {offsets = [0, 0, 8], sizes = [16, 64, 4], strides = [1, 1, 1]} : vector<16x64x12xbf16> to vector<16x64x4xbf16>
    "tpu.trace_start"() <{level = 10 : i32, message = "gqd,gkd->gqk"}> : () -> ()
    %cst_6 = arith.constant dense<0.000000e+00> : vector<16x64x64xf32>
    %47 = tpu.matmul %44, %45, %cst_6 {dimension_numbers = #tpu.dot_dimension_numbers<[2], [2], [1], [1], [0, 0, 0, 1, 1, 1], [0], [0]>} : vector<16x64x4xbf16>, vector<16x64x4xbf16>, vector<16x64x64xf32> -> vector<16x64x64xf32>
    "tpu.trace_stop"() : () -> ()
    %cst_7 = arith.constant dense<0xFF800000> : vector<16x64xf32>
    %48 = vector.multi_reduction <maximumf>, %47, %cst_7 [2] : vector<16x64x64xf32> to vector<16x64xf32>
    %49 = vector.shape_cast %48 : vector<16x64xf32> to vector<16x64x1xf32>
    %50 = vector.broadcast %49 : vector<16x64x1xf32> to vector<16x64x64xf32>
    %51 = arith.subf %47, %50 : vector<16x64x64xf32>
    %52 = math.exp %51 : vector<16x64x64xf32>
    %cst_8 = arith.constant dense<0.000000e+00> : vector<16x64xf32>
    %53 = vector.multi_reduction <add>, %52, %cst_8 [2] : vector<16x64x64xf32> to vector<16x64xf32>
    %54 = vector.shape_cast %53 : vector<16x64xf32> to vector<16x64x1xf32>
    %55 = tpu.reciprocal %54 {approx = true} : vector<16x64x1xf32> -> vector<16x64x1xf32>
    %56 = vector.broadcast %55 : vector<16x64x1xf32> to vector<16x64x64xf32>
    %57 = arith.mulf %52, %56 : vector<16x64x64xf32>
    %58 = arith.truncf %57 : vector<16x64x64xf32> to vector<16x64x64xbf16>
    "tpu.trace_start"() <{level = 10 : i32, message = "gqk,gkd->gqd"}> : () -> ()
    %cst_9 = arith.constant dense<0.000000e+00> : vector<16x64x4xf32>
    %59 = tpu.matmul %58, %46, %cst_9 {dimension_numbers = #tpu.dot_dimension_numbers<[2], [1], [1], [2], [0, 0, 0, 1, 1, 2], [0], [0]>} : vector<16x64x64xbf16>, vector<16x64x4xbf16>, vector<16x64x4xf32> -> vector<16x64x4xf32>
    "tpu.trace_stop"() : () -> ()
    %60 = arith.truncf %59 : vector<16x64x4xf32> to vector<16x64x4xbf16>
    %c0_10 = arith.constant 0 : index
    %c0_11 = arith.constant 0 : index
    %c0_12 = arith.constant 0 : index
    %61 = vector.load %arg4[%c0_10, %c0_11, %c0_12] : memref<16x4x32xbf16, #tpu.memory_space<vmem>>, vector<16x4x32xbf16>
    "tpu.trace_start"() <{level = 10 : i32, message = "gqd,gdc->gqc"}> : () -> ()
    %cst_13 = arith.constant dense<0.000000e+00> : vector<16x64x32xf32>
    %62 = tpu.matmul %60, %61, %cst_13 {dimension_numbers = #tpu.dot_dimension_numbers<[2], [1], [1], [2], [0, 0, 0, 1, 1, 2], [0], [0]>} : vector<16x64x4xbf16>, vector<16x4x32xbf16>, vector<16x64x32xf32> -> vector<16x64x32xf32>
    "tpu.trace_stop"() : () -> ()
    %63 = vector.shape_cast %62 : vector<16x64x32xf32> to vector<2x8x64x32xf32>
    %64 = vector.extract_strided_slice %63 {offsets = [0, 0, 0, 0], sizes = [2, 1, 64, 32], strides = [1, 1, 1, 1]} : vector<2x8x64x32xf32> to vector<2x1x64x32xf32>
    %65 = vector.shape_cast %64 : vector<2x1x64x32xf32> to vector<2x64x32xf32>
    %66 = vector.extract_strided_slice %63 {offsets = [0, 1, 0, 0], sizes = [2, 1, 64, 32], strides = [1, 1, 1, 1]} : vector<2x8x64x32xf32> to vector<2x1x64x32xf32>
    %67 = vector.shape_cast %66 : vector<2x1x64x32xf32> to vector<2x64x32xf32>
    %68 = arith.addf %65, %67 : vector<2x64x32xf32>
    %69 = vector.extract_strided_slice %63 {offsets = [0, 2, 0, 0], sizes = [2, 1, 64, 32], strides = [1, 1, 1, 1]} : vector<2x8x64x32xf32> to vector<2x1x64x32xf32>
    %70 = vector.shape_cast %69 : vector<2x1x64x32xf32> to vector<2x64x32xf32>
    %71 = arith.addf %68, %70 : vector<2x64x32xf32>
    %72 = vector.extract_strided_slice %63 {offsets = [0, 3, 0, 0], sizes = [2, 1, 64, 32], strides = [1, 1, 1, 1]} : vector<2x8x64x32xf32> to vector<2x1x64x32xf32>
    %73 = vector.shape_cast %72 : vector<2x1x64x32xf32> to vector<2x64x32xf32>
    %74 = arith.addf %71, %73 : vector<2x64x32xf32>
    %75 = vector.extract_strided_slice %63 {offsets = [0, 4, 0, 0], sizes = [2, 1, 64, 32], strides = [1, 1, 1, 1]} : vector<2x8x64x32xf32> to vector<2x1x64x32xf32>
    %76 = vector.shape_cast %75 : vector<2x1x64x32xf32> to vector<2x64x32xf32>
    %77 = arith.addf %74, %76 : vector<2x64x32xf32>
    %78 = vector.extract_strided_slice %63 {offsets = [0, 5, 0, 0], sizes = [2, 1, 64, 32], strides = [1, 1, 1, 1]} : vector<2x8x64x32xf32> to vector<2x1x64x32xf32>
    %79 = vector.shape_cast %78 : vector<2x1x64x32xf32> to vector<2x64x32xf32>
    %80 = arith.addf %77, %79 : vector<2x64x32xf32>
    %81 = vector.extract_strided_slice %63 {offsets = [0, 6, 0, 0], sizes = [2, 1, 64, 32], strides = [1, 1, 1, 1]} : vector<2x8x64x32xf32> to vector<2x1x64x32xf32>
    %82 = vector.shape_cast %81 : vector<2x1x64x32xf32> to vector<2x64x32xf32>
    %83 = arith.addf %80, %82 : vector<2x64x32xf32>
    %84 = vector.extract_strided_slice %63 {offsets = [0, 7, 0, 0], sizes = [2, 1, 64, 32], strides = [1, 1, 1, 1]} : vector<2x8x64x32xf32> to vector<2x1x64x32xf32>
    %85 = vector.shape_cast %84 : vector<2x1x64x32xf32> to vector<2x64x32xf32>
    %86 = arith.addf %83, %85 : vector<2x64x32xf32>
    %87 = vector.shape_cast %86 : vector<2x64x32xf32> to vector<128x32xf32>
    %c0_14 = arith.constant 0 : index
    %c0_15 = arith.constant 0 : index
    %88 = vector.load %arg5[%c0_14, %c0_15] : memref<1x32xf32, #tpu.memory_space<vmem>>, vector<1x32xf32>
    %89 = vector.broadcast %88 : vector<1x32xf32> to vector<128x32xf32>
    %90 = arith.addf %87, %89 : vector<128x32xf32>
    %91 = tpu.transpose %90, [1, 0] : vector<128x32xf32> -> vector<32x128xf32>
    %c0_16 = arith.constant 0 : index
    %c0_17 = arith.constant 0 : index
    %c0_18 = arith.constant 0 : index
    %92 = vector.load %arg6[%c0_16, %c0_17, %c0_18] : memref<1x32x128xf32, #tpu.memory_space<vmem>>, vector<1x32x128xf32>
    %93 = vector.shape_cast %92 : vector<1x32x128xf32> to vector<32x128xf32>
    %94 = vector.shape_cast %91 : vector<32x128xf32> to vector<1x32x128xf32>
    tpu.vector_store %arg6[%c0_16, %c0_17, %c0_18], %94 {strides = array<i32>} : memref<1x32x128xf32, #tpu.memory_space<vmem>>, vector<1x32x128xf32>,
    return
  }
  func.func @transform_0(%arg0: i32) -> (i32, i32, i32) {
    %c0_i32 = arith.constant 0 : i32
    %c0_i32_0 = arith.constant 0 : i32
    %c0_i32_1 = arith.constant 0 : i32
    return %arg0, %c0_i32, %c0_i32_0 : i32, i32, i32
  }
  func.func @transform_1(%arg0: i32) -> (i32, i32) {
    %c0_i32 = arith.constant 0 : i32
    %c0_i32_0 = arith.constant 0 : i32
    %c0_i32_1 = arith.constant 0 : i32
    return %c0_i32, %c0_i32_0 : i32, i32
  }
  func.func @transform_2(%arg0: i32) -> (i32, i32) {
    %c0_i32 = arith.constant 0 : i32
    %c0_i32_0 = arith.constant 0 : i32
    %c0_i32_1 = arith.constant 0 : i32
    return %c0_i32, %c0_i32_0 : i32, i32
  }
  func.func @transform_3(%arg0: i32) -> (i32, i32, i32) {
    %c0_i32 = arith.constant 0 : i32
    %c0_i32_0 = arith.constant 0 : i32
    %c0_i32_1 = arith.constant 0 : i32
    %c0_i32_2 = arith.constant 0 : i32
    return %c0_i32, %c0_i32_0, %c0_i32_1 : i32, i32, i32
  }
  func.func @transform_4(%arg0: i32) -> (i32, i32) {
    %c0_i32 = arith.constant 0 : i32
    %c0_i32_0 = arith.constant 0 : i32
    %c0_i32_1 = arith.constant 0 : i32
    return %c0_i32, %c0_i32_0 : i32, i32
  }
  func.func @transform_5(%arg0: i32) -> (i32, i32, i32) {
    %c0_i32 = arith.constant 0 : i32
    %c0_i32_0 = arith.constant 0 : i32
    %c0_i32_1 = arith.constant 0 : i32
    return %arg0, %c0_i32, %c0_i32_0 : i32, i32, i32
  }
}

</mosaic_0001>

<llo_original>
// kernel: tpu_custom_call.1
$region0: #{tpu_custom_call.1}
  #allocation0 [shape = 'u32[]', space=smem, size = 0x4, offset = 0x4, fixed_abs, tag = 'smem constant byte address 0x4 - core index']
  #allocation1 [shape = 'u32[144,128]{1,0:T(1,128)}', space=vmem, size = 0x12000, scoped, tag = 'internal scratch']
  %s0 = inlined_call_operand.vmem [shape: f32[2,64,32], index: 0, kind: input, shape index: {}]
  %s1 = inlined_call_operand.vmem [shape: bf16[32,96], index: 1, kind: input, shape index: {}]
  %s2 = inlined_call_operand.vmem [shape: f32[1,96], index: 2, kind: input, shape index: {}]
  %s3 = inlined_call_operand.vmem [shape: bf16[16,4,32], index: 3, kind: input, shape index: {}]
  %s4 = inlined_call_operand.vmem [shape: f32[1,32], index: 4, kind: input, shape index: {}]
  %s5 = inlined_call_operand.hbm [shape: f32[1,32,128], index: 5, kind: output, shape index: {}]
  %s6 = sld [smem:[#allocation0]]
  $region30: #{tpu_custom_call.1} parent=0
    _
  %s8 = ssub.s32 1, %s6
  %s9 = scalar_select 0, %s8, %s6
  $region1: #{tpu_custom_call.1} parent=0
    #allocation2 [shape = 'u8[16384]{0}', space=vmem, size = 0x4000, scoped, tag = 'output window, operand 0, single buffered']
    #allocation3 [shape = 's32[1]{0}', space=sflag, size = 0x4, scoped, tag = 'scoped memory for tpu_custom_call.1']
    %10 = vsyncpa [#allocation3], 0
    // Predicated region
    $region2: #{tpu_custom_call.1} parent=1 // pred_check
      _
    $region3: #{tpu_custom_call.1} parent=1 // pred_check_branch
      %12 = sbr.rel (0) target = $region5
    $region4: #{tpu_custom_call.1} parent=1 // pred_region
      _
    $region5: #{tpu_custom_call.1} parent=1 // pred_fallthru
      _
    // Predicated region
    $region6: #{tpu_custom_call.1} parent=1 // pred_check
      _
    $region7: #{tpu_custom_call.1} parent=1 // pred_check_branch
      %14 = sbr.rel (0) target = $region9
    $region8: #{tpu_custom_call.1} parent=1 // pred_region
      _
    $region9: #{tpu_custom_call.1} parent=1 // pred_fallthru
      _
    // Predicated region
    $region10: #{tpu_custom_call.1} parent=1 // pred_check
      _
    $region11: #{tpu_custom_call.1} parent=1 // pred_check_branch
      %16 = sbr.rel (0) target = $region13
    $region12: #{tpu_custom_call.1} parent=1 // pred_region
      _
    $region13: #{tpu_custom_call.1} parent=1 // pred_fallthru
      _
    // Predicated region
    $region14: #{tpu_custom_call.1} parent=1 // pred_check
      _
    $region15: #{tpu_custom_call.1} parent=1 // pred_check_branch
      %18 = sbr.rel (0) target = $region17
    $region16: #{tpu_custom_call.1} parent=1 // pred_region
      _
    $region17: #{tpu_custom_call.1} parent=1 // pred_fallthru
      _
    // Predicated region
    $region18: #{tpu_custom_call.1} parent=1 // pred_check
      _
    $region19: #{tpu_custom_call.1} parent=1 // pred_check_branch
      %20 = sbr.rel (0) target = $region21
    $region20: #{tpu_custom_call.1} parent=1 // pred_region
      _
    $region21: #{tpu_custom_call.1} parent=1 // pred_fallthru
      _
    %v22 = vld [vmem:[%s0] sm:$0xff]
    %v23 = vld [vmem:[%s0 + $0x8] sm:$0xff]
    %v24 = vld [vmem:[%s0 + $0x10] sm:$0xff]
    %v25 = vld [vmem:[%s0 + $0x18] sm:$0xff]
    %v26 = vld [vmem:[%s0 + $0x20] sm:$0xff]
    %v27 = vld [vmem:[%s0 + $0x28] sm:$0xff]
    %v28 = vld [vmem:[%s0 + $0x30] sm:$0xff]
    %v29 = vld [vmem:[%s0 + $0x38] sm:$0xff]
    %v30 = vld [vmem:[%s0 + $0x40] sm:$0xff]
    %v31 = vld [vmem:[%s0 + $0x48] sm:$0xff]
    %v32 = vld [vmem:[%s0 + $0x50] sm:$0xff]
    %v33 = vld [vmem:[%s0 + $0x58] sm:$0xff]
    %v34 = vld [vmem:[%s0 + $0x60] sm:$0xff]
    %v35 = vld [vmem:[%s0 + $0x68] sm:$0xff]
    %v36 = vld [vmem:[%s0 + $0x70] sm:$0xff]
    %v37 = vld [vmem:[%s0 + $0x78] sm:$0xff]
    %v38 = vpack.c.bf16 %v23, %v22
    %v39 = vpack.c.bf16 %v25, %v24
    %v40 = vpack.c.bf16 %v27, %v26
    %v41 = vpack.c.bf16 %v29, %v28
    %v42 = vpack.c.bf16 %v31, %v30
    %v43 = vpack.c.bf16 %v33, %v32
    %v44 = vpack.c.bf16 %v35, %v34
    %v45 = vpack.c.bf16 %v37, %v36
    %v46 = vld [vmem:[%s1] sm:$0xf]
    %v47 = vld [vmem:[%s1 + $0x4] sm:$0xf]
    %v48 = vld [vmem:[%s1 + $0x8] sm:$0xf]
    %v49 = vld [vmem:[%s1 + $0xc] sm:$0xf]
    %v50 = vld [vmem:[%s2] sm:$0x1]
    %v52 = vlaneseq
    %v53 = vshrl.u32 %v52, 7
    %v54 = vsub.s32 0, %v53
    %v55 = vrot.slane %v50, %v54
    %v61 = vunpack.c.l.b16 %v46
    %v62 = vunpack.c.l.b16 %v47
    %v63 = vunpack.c.l.b16 %v48
    %v64 = vunpack.c.l.b16 %v49
    %v65 = vpack.c.b16 %v62, %v61
    %v66 = vpack.c.b16 %v64, %v63
    %vm69 = vcmask 261120
    %v71 = vsel %vm69, %v38, 0
    %v74 = vsel %vm69, %v39, 0
    %v77 = vsel %vm69, %v40, 0
    %v80 = vsel %vm69, %v41, 0
    %v83 = vsel %vm69, %v42, 0
    %v86 = vsel %vm69, %v43, 0
    %v89 = vsel %vm69, %v44, 0
    %v92 = vsel %vm69, %v45, 0
    %94 = vmatprep.subr.bf16.mxu0 0
    %95 = vmatpush1.bf16.msra.mxu0 %v65
    %96 = vmatprep.subr.bf16.mxu0 0
    %97 = vmatpush1.bf16.msra.mxu0 %v66
    %98 = vmatprep.subr.bf16.mxu0 0
    %99 = vmatpush1.bf16.msra.mxu0 0
    %100 = vmatprep.subr.bf16.mxu0 0
    %101 = vmatpush1.bf16.msra.mxu0 0
    %102 = vmatprep.subr.bf16.mxu0 0
    %103 = vmatpush1.bf16.msra.mxu0 0
    %104 = vmatprep.subr.bf16.mxu0 0
    %105 = vmatpush1.bf16.msra.mxu0 0
    %106 = vmatprep.subr.bf16.mxu0 0
    %107 = vmatpush1.bf16.msra.mxu0 0
    %108 = vmatprep.subr.bf16.mxu0 0
    %109 = vmatpush1.bf16.msra.mxu0 0
    %110 = vmatprep.subr.bf16.mxu0 0
    %111 = vmatpush1.bf16.msra.mxu0 0
    %112 = vmatprep.subr.bf16.mxu0 0
    %113 = vmatpush1.bf16.msra.mxu0 0
    %114 = vmatprep.subr.bf16.mxu0 0
    %115 = vmatpush1.bf16.msra.mxu0 0
    %116 = vmatprep.subr.bf16.mxu0 0
    %117 = vmatpush1.bf16.msra.mxu0 0
    %118 = vmatprep.subr.bf16.mxu0 0
    %119 = vmatpush1.bf16.msra.mxu0 0
    %120 = vmatprep.subr.bf16.mxu0 0
    %121 = vmatpush1.bf16.msra.mxu0 0
    %122 = vmatprep.subr.bf16.mxu0 0
    %123 = vmatpush1.bf16.msra.mxu0 0
    %124 = vmatprep.subr.bf16.mxu0 0
    %125 = vmatpush1.bf16.msra.mxu0 0
    %126 = vmatprep.mubr.bf16.mxu0 0
    %127 = vmatmul.mubr.bf16.gmra.mrb[0].mxu0 %v71
    %v128 = vpop.f32.mrb[0].mxu0
    %v129 = vadd.f32 %v55, %v128
    %v130 = vpop.f32.mrb[0].mxu0
    %v131 = vpop.f32.mrb[0].mxu0
    %v132 = vadd.f32 %v55, %v131
    %v133 = vpop.f32.mrb[0].mxu0
    %134 = vmatprep.mubr.bf16.mxu0 0
    %135 = vmatmul.mubr.bf16.gmra.mrb[0].mxu0 %v74
    %v136 = vpop.f32.mrb[0].mxu0
    %v137 = vadd.f32 %v55, %v136
    %v138 = vpop.f32.mrb[0].mxu0
    %v139 = vpop.f32.mrb[0].mxu0
    %v140 = vadd.f32 %v55, %v139
    %v141 = vpop.f32.mrb[0].mxu0
    %142 = vmatprep.mubr.bf16.mxu0 0
    %143 = vmatmul.mubr.bf16.gmra.mrb[0].mxu0 %v77
    %v144 = vpop.f32.mrb[0].mxu0
    %v145 = vadd.f32 %v55, %v144
    %v146 = vpop.f32.mrb[0].mxu0
    %v147 = vpop.f32.mrb[0].mxu0
    %v148 = vadd.f32 %v55, %v147
    %v149 = vpop.f32.mrb[0].mxu0
    %150 = vmatprep.mubr.bf16.mxu0 0
    %151 = vmatmul.mubr.bf16.gmra.mrb[0].mxu0 %v80
    %v152 = vpop.f32.mrb[0].mxu0
    %v153 = vadd.f32 %v55, %v152
    %v154 = vpop.f32.mrb[0].mxu0
    %v155 = vpop.f32.mrb[0].mxu0
    %v156 = vadd.f32 %v55, %v155
    %v157 = vpop.f32.mrb[0].mxu0
    %158 = vmatprep.mubr.bf16.mxu0 0
    %159 = vmatmul.mubr.bf16.gmra.mrb[0].mxu0 %v83
    %v160 = vpop.f32.mrb[0].mxu0
    %v161 = vadd.f32 %v55, %v160
    %v162 = vpop.f32.mrb[0].mxu0
    %v163 = vpop.f32.mrb[0].mxu0
    %v164 = vadd.f32 %v55, %v163
    %v165 = vpop.f32.mrb[0].mxu0
    %166 = vmatprep.mubr.bf16.mxu0 0
    %167 = vmatmul.mubr.bf16.gmra.mrb[0].mxu0 %v86
    %v168 = vpop.f32.mrb[0].mxu0
    %v169 = vadd.f32 %v55, %v168
    %v170 = vpop.f32.mrb[0].mxu0
    %v171 = vpop.f32.mrb[0].mxu0
    %v172 = vadd.f32 %v55, %v171
    %v173 = vpop.f32.mrb[0].mxu0
    %174 = vmatprep.mubr.bf16.mxu0 0
    %175 = vmatmul.mubr.bf16.gmra.mrb[0].mxu0 %v89
    %v176 = vpop.f32.mrb[0].mxu0
    %v177 = vadd.f32 %v55, %v176
    %v178 = vpop.f32.mrb[0].mxu0
    %v179 = vpop.f32.mrb[0].mxu0
    %v180 = vadd.f32 %v55, %v179
    %v181 = vpop.f32.mrb[0].mxu0
    %182 = vmatprep.mubr.bf16.mxu0 0
    %183 = vmatmul.mubr.bf16.gmra.mrb[0].mxu0 %v92
    %v184 = vpop.f32.mrb[0].mxu0
    %v185 = vadd.f32 %v55, %v184
    %v186 = vpop.f32.mrb[0].mxu0
    %v187 = vpop.f32.mrb[0].mxu0
    %v188 = vadd.f32 %v55, %v187
    %v189 = vpop.f32.mrb[0].mxu0
    %190 = vdwg.mxu0
    %199 = vrot.lane.b32.xlu0 %v129, 116
    %v200 = vpop.permute.xlu0 %199
    %201 = vrot.lane.b32.xlu0 %v132, 116
    %v202 = vpop.permute.xlu0 %201
    %203 = vrot.lane.b32.xlu0 %v137, 116
    %v204 = vpop.permute.xlu0 %203
    %205 = vrot.lane.b32.xlu0 %v140, 116
    %v206 = vpop.permute.xlu0 %205
    %207 = vrot.lane.b32.xlu0 %v145, 116
    %v208 = vpop.permute.xlu0 %207
    %209 = vrot.lane.b32.xlu0 %v148, 116
    %v210 = vpop.permute.xlu0 %209
    %211 = vrot.lane.b32.xlu0 %v153, 116
    %v212 = vpop.permute.xlu0 %211
    %213 = vrot.lane.b32.xlu0 %v156, 116
    %v214 = vpop.permute.xlu0 %213
    %223 = vrot.lane.b32.xlu0 %v129, 104
    %v224 = vpop.permute.xlu0 %223
    %225 = vrot.lane.b32.xlu0 %v132, 104
    %v226 = vpop.permute.xlu0 %225
    %227 = vrot.lane.b32.xlu0 %v137, 104
    %v228 = vpop.permute.xlu0 %227
    %229 = vrot.lane.b32.xlu0 %v140, 104
    %v230 = vpop.permute.xlu0 %229
    %231 = vrot.lane.b32.xlu0 %v145, 104
    %v232 = vpop.permute.xlu0 %231
    %233 = vrot.lane.b32.xlu0 %v148, 104
    %v234 = vpop.permute.xlu0 %233
    %235 = vrot.lane.b32.xlu0 %v153, 104
    %v236 = vpop.permute.xlu0 %235
    %237 = vrot.lane.b32.xlu0 %v156, 104
    %v238 = vpop.permute.xlu0 %237
    %247 = vrot.lane.b32.xlu0 %v129, 92
    %v248 = vpop.permute.xlu0 %247
    %249 = vrot.lane.b32.xlu0 %v132, 92
    %v250 = vpop.permute.xlu0 %249
    %251 = vrot.lane.b32.xlu0 %v137, 92
    %v252 = vpop.permute.xlu0 %251
    %253 = vrot.lane.b32.xlu0 %v140, 92
    %v254 = vpop.permute.xlu0 %253
    %255 = vrot.lane.b32.xlu0 %v145, 92
    %v256 = vpop.permute.xlu0 %255
    %257 = vrot.lane.b32.xlu0 %v148, 92
    %v258 = vpop.permute.xlu0 %257
    %259 = vrot.lane.b32.xlu0 %v153, 92
    %v260 = vpop.permute.xlu0 %259
    %261 = vrot.lane.b32.xlu0 %v156, 92
    %v262 = vpop.permute.xlu0 %261
    %271 = vrot.lane.b32.xlu0 %v129, 80
    %v272 = vpop.permute.xlu0 %271
    %273 = vrot.lane.b32.xlu0 %v132, 80
    %v274 = vpop.permute.xlu0 %273
    %275 = vrot.lane.b32.xlu0 %v137, 80
    %v276 = vpop.permute.xlu0 %275
    %277 = vrot.lane.b32.xlu0 %v140, 80
    %v278 = vpop.permute.xlu0 %277
    %279 = vrot.lane.b32.xlu0 %v145, 80
    %v280 = vpop.permute.xlu0 %279
    %281 = vrot.lane.b32.xlu0 %v148, 80
    %v282 = vpop.permute.xlu0 %281
    %283 = vrot.lane.b32.xlu0 %v153, 80
    %v284 = vpop.permute.xlu0 %283
    %285 = vrot.lane.b32.xlu0 %v156, 80
    %v286 = vpop.permute.xlu0 %285
    %295 = vrot.lane.b32.xlu0 %v129, 68
    %v296 = vpop.permute.xlu0 %295
    %297 = vrot.lane.b32.xlu0 %v132, 68
    %v298 = vpop.permute.xlu0 %297
    %299 = vrot.lane.b32.xlu0 %v137, 68
    %v300 = vpop.permute.xlu0 %299
    %301 = vrot.lane.b32.xlu0 %v140, 68
    %v302 = vpop.permute.xlu0 %301
    %303 = vrot.lane.b32.xlu0 %v145, 68
    %v304 = vpop.permute.xlu0 %303
    %305 = vrot.lane.b32.xlu0 %v148, 68
    %v306 = vpop.permute.xlu0 %305
    %307 = vrot.lane.b32.xlu0 %v153, 68
    %v308 = vpop.permute.xlu0 %307
    %309 = vrot.lane.b32.xlu0 %v156, 68
    %v310 = vpop.permute.xlu0 %309
    %319 = vrot.lane.b32.xlu0 %v129, 56
    %v320 = vpop.permute.xlu0 %319
    %321 = vrot.lane.b32.xlu0 %v132, 56
    %v322 = vpop.permute.xlu0 %321
    %323 = vrot.lane.b32.xlu0 %v137, 56
    %v324 = vpop.permute.xlu0 %323
    %325 = vrot.lane.b32.xlu0 %v140, 56
    %v326 = vpop.permute.xlu0 %325
    %327 = vrot.lane.b32.xlu0 %v145, 56
    %v328 = vpop.permute.xlu0 %327
    %329 = vrot.lane.b32.xlu0 %v148, 56
    %v330 = vpop.permute.xlu0 %329
    %331 = vrot.lane.b32.xlu0 %v153, 56
    %v332 = vpop.permute.xlu0 %331
    %333 = vrot.lane.b32.xlu0 %v156, 56
    %v334 = vpop.permute.xlu0 %333
    %343 = vrot.lane.b32.xlu0 %v129, 44
    %v344 = vpop.permute.xlu0 %343
    %345 = vrot.lane.b32.xlu0 %v132, 44
    %v346 = vpop.permute.xlu0 %345
    %347 = vrot.lane.b32.xlu0 %v137, 44
    %v348 = vpop.permute.xlu0 %347
    %349 = vrot.lane.b32.xlu0 %v140, 44
    %v350 = vpop.permute.xlu0 %349
    %351 = vrot.lane.b32.xlu0 %v145, 44
    %v352 = vpop.permute.xlu0 %351
    %353 = vrot.lane.b32.xlu0 %v148, 44
    %v354 = vpop.permute.xlu0 %353
    %355 = vrot.lane.b32.xlu0 %v153, 44
    %v356 = vpop.permute.xlu0 %355
    %357 = vrot.lane.b32.xlu0 %v156, 44
    %v358 = vpop.permute.xlu0 %357
    %375 = vrot.lane.b32.xlu0 %v161, 116
    %v376 = vpop.permute.xlu0 %375
    %377 = vrot.lane.b32.xlu0 %v164, 116
    %v378 = vpop.permute.xlu0 %377
    %379 = vrot.lane.b32.xlu0 %v169, 116
    %v380 = vpop.permute.xlu0 %379
    %381 = vrot.lane.b32.xlu0 %v172, 116
    %v382 = vpop.permute.xlu0 %381
    %383 = vrot.lane.b32.xlu0 %v177, 116
    %v384 = vpop.permute.xlu0 %383
    %385 = vrot.lane.b32.xlu0 %v180, 116
    %v386 = vpop.permute.xlu0 %385
    %387 = vrot.lane.b32.xlu0 %v185, 116
    %v388 = vpop.permute.xlu0 %387
    %389 = vrot.lane.b32.xlu0 %v188, 116
    %v390 = vpop.permute.xlu0 %389
    %399 = vrot.lane.b32.xlu0 %v161, 104
    %v400 = vpop.permute.xlu0 %399
    %401 = vrot.lane.b32.xlu0 %v164, 104
    %v402 = vpop.permute.xlu0 %401
    %403 = vrot.lane.b32.xlu0 %v169, 104
    %v404 = vpop.permute.xlu0 %403
    %405 = vrot.lane.b32.xlu0 %v172, 104
    %v406 = vpop.permute.xlu0 %405
    %407 = vrot.lane.b32.xlu0 %v177, 104
    %v408 = vpop.permute.xlu0 %407
    %409 = vrot.lane.b32.xlu0 %v180, 104
    %v410 = vpop.permute.xlu0 %409
    %411 = vrot.lane.b32.xlu0 %v185, 104
    %v412 = vpop.permute.xlu0 %411
    %413 = vrot.lane.b32.xlu0 %v188, 104
    %v414 = vpop.permute.xlu0 %413
    %423 = vrot.lane.b32.xlu0 %v161, 92
    %v424 = vpop.permute.xlu0 %423
    %425 = vrot.lane.b32.xlu0 %v164, 92
    %v426 = vpop.permute.xlu0 %425
    %427 = vrot.lane.b32.xlu0 %v169, 92
    %v428 = vpop.permute.xlu0 %427
    %429 = vrot.lane.b32.xlu0 %v172, 92
    %v430 = vpop.permute.xlu0 %429
    %431 = vrot.lane.b32.xlu0 %v177, 92
    %v432 = vpop.permute.xlu0 %431
    %433 = vrot.lane.b32.xlu0 %v180, 92
    %v434 = vpop.permute.xlu0 %433
    %435 = vrot.lane.b32.xlu0 %v185, 92
    %v436 = vpop.permute.xlu0 %435
    %437 = vrot.lane.b32.xlu0 %v188, 92
    %v438 = vpop.permute.xlu0 %437
    %447 = vrot.lane.b32.xlu0 %v161, 80
    %v448 = vpop.permute.xlu0 %447
    %449 = vrot.lane.b32.xlu0 %v164, 80
    %v450 = vpop.permute.xlu0 %449
    %451 = vrot.lane.b32.xlu0 %v169, 80
    %v452 = vpop.permute.xlu0 %451
    %453 = vrot.lane.b32.xlu0 %v172, 80
    %v454 = vpop.permute.xlu0 %453
    %455 = vrot.lane.b32.xlu0 %v177, 80
    %v456 = vpop.permute.xlu0 %455
    %457 = vrot.lane.b32.xlu0 %v180, 80
    %v458 = vpop.permute.xlu0 %457
    %459 = vrot.lane.b32.xlu0 %v185, 80
    %v460 = vpop.permute.xlu0 %459
    %461 = vrot.lane.b32.xlu0 %v188, 80
    %v462 = vpop.permute.xlu0 %461
    %471 = vrot.lane.b32.xlu0 %v161, 68
    %v472 = vpop.permute.xlu0 %471
    %473 = vrot.lane.b32.xlu0 %v164, 68
    %v474 = vpop.permute.xlu0 %473
    %475 = vrot.lane.b32.xlu0 %v169, 68
    %v476 = vpop.permute.xlu0 %475
    %477 = vrot.lane.b32.xlu0 %v172, 68
    %v478 = vpop.permute.xlu0 %477
    %479 = vrot.lane.b32.xlu0 %v177, 68
    %v480 = vpop.permute.xlu0 %479
    %481 = vrot.lane.b32.xlu0 %v180, 68
    %v482 = vpop.permute.xlu0 %481
    %483 = vrot.lane.b32.xlu0 %v185, 68
    %v484 = vpop.permute.xlu0 %483
    %485 = vrot.lane.b32.xlu0 %v188, 68
    %v486 = vpop.permute.xlu0 %485
    %495 = vrot.lane.b32.xlu0 %v161, 56
    %v496 = vpop.permute.xlu0 %495
    %497 = vrot.lane.b32.xlu0 %v164, 56
    %v498 = vpop.permute.xlu0 %497
    %499 = vrot.lane.b32.xlu0 %v169, 56
    %v500 = vpop.permute.xlu0 %499
    %501 = vrot.lane.b32.xlu0 %v172, 56
    %v502 = vpop.permute.xlu0 %501
    %503 = vrot.lane.b32.xlu0 %v177, 56
    %v504 = vpop.permute.xlu0 %503
    %505 = vrot.lane.b32.xlu0 %v180, 56
    %v506 = vpop.permute.xlu0 %505
    %507 = vrot.lane.b32.xlu0 %v185, 56
    %v508 = vpop.permute.xlu0 %507
    %509 = vrot.lane.b32.xlu0 %v188, 56
    %v510 = vpop.permute.xlu0 %509
    %519 = vrot.lane.b32.xlu0 %v161, 44
    %v520 = vpop.permute.xlu0 %519
    %521 = vrot.lane.b32.xlu0 %v164, 44
    %v522 = vpop.permute.xlu0 %521
    %523 = vrot.lane.b32.xlu0 %v169, 44
    %v524 = vpop.permute.xlu0 %523
    %525 = vrot.lane.b32.xlu0 %v172, 44
    %v526 = vpop.permute.xlu0 %525
    %527 = vrot.lane.b32.xlu0 %v177, 44
    %v528 = vpop.permute.xlu0 %527
    %529 = vrot.lane.b32.xlu0 %v180, 44
    %v530 = vpop.permute.xlu0 %529
    %531 = vrot.lane.b32.xlu0 %v185, 44
    %v532 = vpop.permute.xlu0 %531
    %533 = vrot.lane.b32.xlu0 %v188, 44
    %v534 = vpop.permute.xlu0 %533
    %v543 = vpack.c.bf16 %v132, %v129
    %v544 = vpack.c.bf16 %v140, %v137
    %v545 = vpack.c.bf16 %v148, %v145
    %v546 = vpack.c.bf16 %v156, %v153
    %v547 = vpack.c.bf16 %v202, %v200
    %v548 = vpack.c.bf16 %v206, %v204
    %v549 = vpack.c.bf16 %v210, %v208
    %v550 = vpack.c.bf16 %v214, %v212
    %v551 = vpack.c.bf16 %v226, %v224
    %v552 = vpack.c.bf16 %v230, %v228
    %v553 = vpack.c.bf16 %v234, %v232
    %v554 = vpack.c.bf16 %v238, %v236
    %v555 = vpack.c.bf16 %v250, %v248
    %v556 = vpack.c.bf16 %v254, %v252
    %v557 = vpack.c.bf16 %v258, %v256
    %v558 = vpack.c.bf16 %v262, %v260
    %v559 = vpack.c.bf16 %v274, %v272
    %v560 = vpack.c.bf16 %v278, %v276
    %v561 = vpack.c.bf16 %v282, %v280
    %v562 = vpack.c.bf16 %v286, %v284
    %v563 = vpack.c.bf16 %v298, %v296
    %v564 = vpack.c.bf16 %v302, %v300
    %v565 = vpack.c.bf16 %v306, %v304
    %v566 = vpack.c.bf16 %v310, %v308
    %v567 = vpack.c.bf16 %v322, %v320
    %v568 = vpack.c.bf16 %v326, %v324
    %v569 = vpack.c.bf16 %v330, %v328
    %v570 = vpack.c.bf16 %v334, %v332
    %v571 = vpack.c.bf16 %v346, %v344
    %v572 = vpack.c.bf16 %v350, %v348
    %v573 = vpack.c.bf16 %v354, %v352
    %v574 = vpack.c.bf16 %v358, %v356
    %v575 = vpack.c.bf16 %v164, %v161
    %v576 = vpack.c.bf16 %v172, %v169
    %v577 = vpack.c.bf16 %v180, %v177
    %v578 = vpack.c.bf16 %v188, %v185
    %v579 = vpack.c.bf16 %v378, %v376
    %v580 = vpack.c.bf16 %v382, %v380
    %v581 = vpack.c.bf16 %v386, %v384
    %v582 = vpack.c.bf16 %v390, %v388
    %v583 = vpack.c.bf16 %v402, %v400
    %v584 = vpack.c.bf16 %v406, %v404
    %v585 = vpack.c.bf16 %v410, %v408
    %v586 = vpack.c.bf16 %v414, %v412
    %v587 = vpack.c.bf16 %v426, %v424
    %v588 = vpack.c.bf16 %v430, %v428
    %v589 = vpack.c.bf16 %v434, %v432
    %v590 = vpack.c.bf16 %v438, %v436
    %v591 = vpack.c.bf16 %v450, %v448
    %v592 = vpack.c.bf16 %v454, %v452
    %v593 = vpack.c.bf16 %v458, %v456
    %v594 = vpack.c.bf16 %v462, %v460
    %v595 = vpack.c.bf16 %v474, %v472
    %v596 = vpack.c.bf16 %v478, %v476
    %v597 = vpack.c.bf16 %v482, %v480
    %v598 = vpack.c.bf16 %v486, %v484
    %v599 = vpack.c.bf16 %v498, %v496
    %v600 = vpack.c.bf16 %v502, %v500
    %v601 = vpack.c.bf16 %v506, %v504
    %v602 = vpack.c.bf16 %v510, %v508
    %v603 = vpack.c.bf16 %v522, %v520
    %v604 = vpack.c.bf16 %v526, %v524
    %v605 = vpack.c.bf16 %v530, %v528
    %v606 = vpack.c.bf16 %v534, %v532
    %611 = vrot.lane.b32.xlu0 %v543, 124
    %v612 = vpop.permute.xlu0 %611
    %613 = vrot.lane.b32.xlu0 %v544, 124
    %v614 = vpop.permute.xlu0 %613
    %615 = vrot.lane.b32.xlu0 %v545, 124
    %v616 = vpop.permute.xlu0 %615
    %617 = vrot.lane.b32.xlu0 %v546, 124
    %v618 = vpop.permute.xlu0 %617
    %vm619 = vcmask 31744
    %v621 = vsel %vm619, %v543, 0
    %v624 = vsel %vm619, %v544, 0
    %v627 = vsel %vm619, %v545, 0
    %v630 = vsel %vm619, %v546, 0
    %v633 = vsel %vm619, %v612, 0
    %v636 = vsel %vm619, %v614, 0
    %v639 = vsel %vm619, %v616, 0
    %v642 = vsel %vm619, %v618, 0
    %644 = vmatprep.subr.bf16.mxu0 0
    %645 = vmatpush1.bf16.xpose.msra.mxu0 %v633
    %646 = vmatprep.subr.bf16.mxu0 0
    %647 = vmatpush1.bf16.xpose.msra.mxu0 %v636
    %648 = vmatprep.subr.bf16.mxu0 0
    %649 = vmatpush1.bf16.xpose.msra.mxu0 %v639
    %650 = vmatprep.subr.bf16.mxu0 0
    %651 = vmatpush1.bf16.xpose.msra.mxu0 %v642
    %652 = vmatprep.subr.bf16.mxu0 0
    %653 = vmatpush1.bf16.xpose.msra.mxu0 0
    %654 = vmatprep.subr.bf16.mxu0 0
    %655 = vmatpush1.bf16.xpose.msra.mxu0 0
    %656 = vmatprep.subr.bf16.mxu0 0
    %657 = vmatpush1.bf16.xpose.msra.mxu0 0
    %658 = vmatprep.subr.bf16.mxu0 0
    %659 = vmatpush1.bf16.xpose.msra.mxu0 0
    %660 = vmatprep.subr.bf16.mxu0 0
    %661 = vmatpush1.bf16.xpose.msra.mxu0 0
    %662 = vmatprep.subr.bf16.mxu0 0
    %663 = vmatpush1.bf16.xpose.msra.mxu0 0
    %664 = vmatprep.subr.bf16.mxu0 0
    %665 = vmatpush1.bf16.xpose.msra.mxu0 0
    %666 = vmatprep.subr.bf16.mxu0 0
    %667 = vmatpush1.bf16.xpose.msra.mxu0 0
    %668 = vmatprep.subr.bf16.mxu0 0
    %669 = vmatpush1.bf16.xpose.msra.mxu0 0
    %670 = vmatprep.subr.bf16.mxu0 0
    %671 = vmatpush1.bf16.xpose.msra.mxu0 0
    %672 = vmatprep.subr.bf16.mxu0 0
    %673 = vmatpush1.bf16.xpose.msra.mxu0 0
    %674 = vmatprep.subr.bf16.mxu0 0
    %675 = vmatpush1.bf16.xpose.msra.mxu0 0
    %676 = vmatprep.mubr.bf16.mxu0 0
    %677 = vmatmul.mubr.bf16.gmra.mrb[0].mxu0 %v621
    %v678 = vpop.f32.mrb[0].mxu0
    %v679 = vadd.f32 0.0, %v678
    %v680 = vpop.f32.mrb[0].mxu0
    %v681 = vpop.f32.mrb[0].mxu0
    %v682 = vadd.f32 0.0, %v681
    %v683 = vpop.f32.mrb[0].mxu0
    %684 = vmatprep.mubr.bf16.mxu0 0
    %685 = vmatmul.mubr.bf16.gmra.mrb[0].mxu0 %v624
    %v686 = vpop.f32.mrb[0].mxu0
    %v687 = vadd.f32 0.0, %v686
    %v688 = vpop.f32.mrb[0].mxu0
    %v689 = vpop.f32.mrb[0].mxu0
    %v690 = vadd.f32 0.0, %v689
    %v691 = vpop.f32.mrb[0].mxu0
    %692 = vmatprep.mubr.bf16.mxu0 0
    %693 = vmatmul.mubr.bf16.gmra.mrb[0].mxu0 %v627
    %v694 = vpop.f32.mrb[0].mxu0
    %v695 = vadd.f32 0.0, %v694
    %v696 = vpop.f32.mrb[0].mxu0
    %v697 = vpop.f32.mrb[0].mxu0
    %v698 = vadd.f32 0.0, %v697
    %v699 = vpop.f32.mrb[0].mxu0
    %700 = vmatprep.mubr.bf16.mxu0 0
    %701 = vmatmul.mubr.bf16.gmra.mrb[0].mxu0 %v630
    %v702 = vpop.f32.mrb[0].mxu0
    %v703 = vadd.f32 0.0, %v702
    %v704 = vpop.f32.mrb[0].mxu0
    %v705 = vpop.f32.mrb[0].mxu0
    %v706 = vadd.f32 0.0, %v705
    %v707 = vpop.f32.mrb[0].mxu0
    %708 = vdwg.mxu0
    %713 = vrot.lane.b32.xlu0 %v547, 124
    %v714 = vpop.permute.xlu0 %713
    %715 = vrot.lane.b32.xlu0 %v548, 124
    %v716 = vpop.permute.xlu0 %715
    %717 = vrot.lane.b32.xlu0 %v549, 124
    %v718 = vpop.permute.xlu0 %717
    %719 = vrot.lane.b32.xlu0 %v550, 124
    %v720 = vpop.permute.xlu0 %719
    %v722 = vsel %vm619, %v547, 0
    %v725 = vsel %vm619, %v548, 0
    %v728 = vsel %vm619, %v549, 0
    %v731 = vsel %vm619, %v550, 0
    %v734 = vsel %vm619, %v714, 0
    %v737 = vsel %vm619, %v716, 0
    %v740 = vsel %vm619, %v718, 0
    %v743 = vsel %vm619, %v720, 0
    %745 = vmatprep.subr.bf16.mxu0 0
    %746 = vmatpush1.bf16.xpose.msra.mxu0 %v734
    %747 = vmatprep.subr.bf16.mxu0 0
    %748 = vmatpush1.bf16.xpose.msra.mxu0 %v737
    %749 = vmatprep.subr.bf16.mxu0 0
    %750 = vmatpush1.bf16.xpose.msra.mxu0 %v740
    %751 = vmatprep.subr.bf16.mxu0 0
    %752 = vmatpush1.bf16.xpose.msra.mxu0 %v743
    %753 = vmatprep.subr.bf16.mxu0 0
    %754 = vmatpush1.bf16.xpose.msra.mxu0 0
    %755 = vmatprep.subr.bf16.mxu0 0
    %756 = vmatpush1.bf16.xpose.msra.mxu0 0
    %757 = vmatprep.subr.bf16.mxu0 0
    %758 = vmatpush1.bf16.xpose.msra.mxu0 0
    %759 = vmatprep.subr.bf16.mxu0 0
    %760 = vmatpush1.bf16.xpose.msra.mxu0 0
    %761 = vmatprep.subr.bf16.mxu0 0
    %762 = vmatpush1.bf16.xpose.msra.mxu0 0
    %763 = vmatprep.subr.bf16.mxu0 0
    %764 = vmatpush1.bf16.xpose.msra.mxu0 0
    %765 = vmatprep.subr.bf16.mxu0 0
    %766 = vmatpush1.bf16.xpose.msra.mxu0 0
    %767 = vmatprep.subr.bf16.mxu0 0
    %768 = vmatpush1.bf16.xpose.msra.mxu0 0
    %769 = vmatprep.subr.bf16.mxu0 0
    %770 = vmatpush1.bf16.xpose.msra.mxu0 0
    %771 = vmatprep.subr.bf16.mxu0 0
    %772 = vmatpush1.bf16.xpose.msra.mxu0 0
    %773 = vmatprep.subr.bf16.mxu0 0
    %774 = vmatpush1.bf16.xpose.msra.mxu0 0
    %775 = vmatprep.subr.bf16.mxu0 0
    %776 = vmatpush1.bf16.xpose.msra.mxu0 0
    %777 = vmatprep.mubr.bf16.mxu0 0
    %778 = vmatmul.mubr.bf16.gmra.mrb[0].mxu0 %v722
    %v779 = vpop.f32.mrb[0].mxu0
    %v780 = vadd.f32 0.0, %v779
    %v781 = vpop.f32.mrb[0].mxu0
    %v782 = vpop.f32.mrb[0].mxu0
    %v783 = vadd.f32 0.0, %v782
    %v784 = vpop.f32.mrb[0].mxu0
    %785 = vmatprep.mubr.bf16.mxu0 0
    %786 = vmatmul.mubr.bf16.gmra.mrb[0].mxu0 %v725
    %v787 = vpop.f32.mrb[0].mxu0
    %v788 = vadd.f32 0.0, %v787
    %v789 = vpop.f32.mrb[0].mxu0
    %v790 = vpop.f32.mrb[0].mxu0
    %v791 = vadd.f32 0.0, %v790
    %v792 = vpop.f32.mrb[0].mxu0
    %793 = vmatprep.mubr.bf16.mxu0 0
    %794 = vmatmul.mubr.bf16.gmra.mrb[0].mxu0 %v728
    %v795 = vpop.f32.mrb[0].mxu0
    %v796 = vadd.f32 0.0, %v795
    %v797 = vpop.f32.mrb[0].mxu0
    %v798 = vpop.f32.mrb[0].mxu0
    %v799 = vadd.f32 0.0, %v798
    %v800 = vpop.f32.mrb[0].mxu0
    %801 = vmatprep.mubr.bf16.mxu0 0
    %802 = vmatmul.mubr.bf16.gmra.mrb[0].mxu0 %v731
    %v803 = vpop.f32.mrb[0].mxu0
    %v804 = vadd.f32 0.0, %v803
    %v805 = vpop.f32.mrb[0].mxu0
    %v806 = vpop.f32.mrb[0].mxu0
    %v807 = vadd.f32 0.0, %v806
    %v808 = vpop.f32.mrb[0].mxu0
    %809 = vdwg.mxu0
    %814 = vrot.lane.b32.xlu0 %v551, 124
    %v815 = vpop.permute.xlu0 %814
    %816 = vrot.lane.b32.xlu0 %v552, 124
    %v817 = vpop.permute.xlu0 %816
    %818 = vrot.lane.b32.xlu0 %v553, 124
    %v819 = vpop.permute.xlu0 %818
    %820 = vrot.lane.b32.xlu0 %v554, 124
    %v821 = vpop.permute.xlu0 %820
    %v823 = vsel %vm619, %v551, 0
    %v826 = vsel %vm619, %v552, 0
    %v829 = vsel %vm619, %v553, 0
    %v832 = vsel %vm619, %v554, 0
    %v835 = vsel %vm619, %v815, 0
    %v838 = vsel %vm619, %v817, 0
    %v841 = vsel %vm619, %v819, 0
    %v844 = vsel %vm619, %v821, 0
    %846 = vmatprep.subr.bf16.mxu0 0
    %847 = vmatpush1.bf16.xpose.msra.mxu0 %v835
    %848 = vmatprep.subr.bf16.mxu0 0
    %849 = vmatpush1.bf16.xpose.msra.mxu0 %v838
    %850 = vmatprep.subr.bf16.mxu0 0
    %851 = vmatpush1.bf16.xpose.msra.mxu0 %v841
    %852 = vmatprep.subr.bf16.mxu0 0
    %853 = vmatpush1.bf16.xpose.msra.mxu0 %v844
    %854 = vmatprep.subr.bf16.mxu0 0
    %855 = vmatpush1.bf16.xpose.msra.mxu0 0
    %856 = vmatprep.subr.bf16.mxu0 0
    %857 = vmatpush1.bf16.xpose.msra.mxu0 0
    %858 = vmatprep.subr.bf16.mxu0 0
    %859 = vmatpush1.bf16.xpose.msra.mxu0 0
    %860 = vmatprep.subr.bf16.mxu0 0
    %861 = vmatpush1.bf16.xpose.msra.mxu0 0
    %862 = vmatprep.subr.bf16.mxu0 0
    %863 = vmatpush1.bf16.xpose.msra.mxu0 0
    %864 = vmatprep.subr.bf16.mxu0 0
    %865 = vmatpush1.bf16.xpose.msra.mxu0 0
    %866 = vmatprep.subr.bf16.mxu0 0
    %867 = vmatpush1.bf16.xpose.msra.mxu0 0
    %868 = vmatprep.subr.bf16.mxu0 0
    %869 = vmatpush1.bf16.xpose.msra.mxu0 0
    %870 = vmatprep.subr.bf16.mxu0 0
    %871 = vmatpush1.bf16.xpose.msra.mxu0 0
    %872 = vmatprep.subr.bf16.mxu0 0
    %873 = vmatpush1.bf16.xpose.msra.mxu0 0
    %874 = vmatprep.subr.bf16.mxu0 0
    %875 = vmatpush1.bf16.xpose.msra.mxu0 0
    %876 = vmatprep.subr.bf16.mxu0 0
    %877 = vmatpush1.bf16.xpose.msra.mxu0 0
    %878 = vmatprep.mubr.bf16.mxu0 0
    %879 = vmatmul.mubr.bf16.gmra.mrb[0].mxu0 %v823
    %v880 = vpop.f32.mrb[0].mxu0
    %v881 = vadd.f32 0.0, %v880
    %v882 = vpop.f32.mrb[0].mxu0
    %v883 = vpop.f32.mrb[0].mxu0
    %v884 = vadd.f32 0.0, %v883
    %v885 = vpop.f32.mrb[0].mxu0
    %886 = vmatprep.mubr.bf16.mxu0 0
    %887 = vmatmul.mubr.bf16.gmra.mrb[0].mxu0 %v826
    %v888 = vpop.f32.mrb[0].mxu0
    %v889 = vadd.f32 0.0, %v888
    %v890 = vpop.f32.mrb[0].mxu0
    %v891 = vpop.f32.mrb[0].mxu0
    %v892 = vadd.f32 0.0, %v891
    %v893 = vpop.f32.mrb[0].mxu0
    %894 = vmatprep.mubr.bf16.mxu0 0
    %895 = vmatmul.mubr.bf16.gmra.mrb[0].mxu0 %v829
    %v896 = vpop.f32.mrb[0].mxu0
    %v897 = vadd.f32 0.0, %v896
    %v898 = vpop.f32.mrb[0].mxu0
    %v899 = vpop.f32.mrb[0].mxu0
    %v900 = vadd.f32 0.0, %v899
    %v901 = vpop.f32.mrb[0].mxu0
    %902 = vmatprep.mubr.bf16.mxu0 0
    %903 = vmatmul.mubr.bf16.gmra.mrb[0].mxu0 %v832
    %v904 = vpop.f32.mrb[0].mxu0
    %v905 = vadd.f32 0.0, %v904
    %v906 = vpop.f32.mrb[0].mxu0
    %v907 = vpop.f32.mrb[0].mxu0
    %v908 = vadd.f32 0.0, %v907
    %v909 = vpop.f32.mrb[0].mxu0
    %910 = vdwg.mxu0
    %915 = vrot.lane.b32.xlu0 %v555, 124
    %v916 = vpop.permute.xlu0 %915
    %917 = vrot.lane.b32.xlu0 %v556, 124
    %v918 = vpop.permute.xlu0 %917
    %919 = vrot.lane.b32.xlu0 %v557, 124
    %v920 = vpop.permute.xlu0 %919
    %921 = vrot.lane.b32.xlu0 %v558, 124
    %v922 = vpop.permute.xlu0 %921
    %v924 = vsel %vm619, %v555, 0
    %v927 = vsel %vm619, %v556, 0
    %v930 = vsel %vm619, %v557, 0
    %v933 = vsel %vm619, %v558, 0
    %v936 = vsel %vm619, %v916, 0
    %v939 = vsel %vm619, %v918, 0
    %v942 = vsel %vm619, %v920, 0
    %v945 = vsel %vm619, %v922, 0
    %947 = vmatprep.subr.bf16.mxu0 0
    %948 = vmatpush1.bf16.xpose.msra.mxu0 %v936
    %949 = vmatprep.subr.bf16.mxu0 0
    %950 = vmatpush1.bf16.xpose.msra.mxu0 %v939
    %951 = vmatprep.subr.bf16.mxu0 0
    %952 = vmatpush1.bf16.xpose.msra.mxu0 %v942
    %953 = vmatprep.subr.bf16.mxu0 0
    %954 = vmatpush1.bf16.xpose.msra.mxu0 %v945
    %955 = vmatprep.subr.bf16.mxu0 0
    %956 = vmatpush1.bf16.xpose.msra.mxu0 0
    %957 = vmatprep.subr.bf16.mxu0 0
    %958 = vmatpush1.bf16.xpose.msra.mxu0 0
    %959 = vmatprep.subr.bf16.mxu0 0
    %960 = vmatpush1.bf16.xpose.msra.mxu0 0
    %961 = vmatprep.subr.bf16.mxu0 0
    %962 = vmatpush1.bf16.xpose.msra.mxu0 0
    %963 = vmatprep.subr.bf16.mxu0 0
    %964 = vmatpush1.bf16.xpose.msra.mxu0 0
    %965 = vmatprep.subr.bf16.mxu0 0
    %966 = vmatpush1.bf16.xpose.msra.mxu0 0
    %967 = vmatprep.subr.bf16.mxu0 0
    %968 = vmatpush1.bf16.xpose.msra.mxu0 0
    %969 = vmatprep.subr.bf16.mxu0 0
    %970 = vmatpush1.bf16.xpose.msra.mxu0 0
    %971 = vmatprep.subr.bf16.mxu0 0
    %972 = vmatpush1.bf16.xpose.msra.mxu0 0
    %973 = vmatprep.subr.bf16.mxu0 0
    %974 = vmatpush1.bf16.xpose.msra.mxu0 0
    %975 = vmatprep.subr.bf16.mxu0 0
    %976 = vmatpush1.bf16.xpose.msra.mxu0 0
    %977 = vmatprep.subr.bf16.mxu0 0
    %978 = vmatpush1.bf16.xpose.msra.mxu0 0
    %979 = vmatprep.mubr.bf16.mxu0 0
    %980 = vmatmul.mubr.bf16.gmra.mrb[0].mxu0 %v924
    %v981 = vpop.f32.mrb[0].mxu0
    %v982 = vadd.f32 0.0, %v981
    %v983 = vpop.f32.mrb[0].mxu0
    %v984 = vpop.f32.mrb[0].mxu0
    %v985 = vadd.f32 0.0, %v984
    %v986 = vpop.f32.mrb[0].mxu0
    %987 = vmatprep.mubr.bf16.mxu0 0
    %988 = vmatmul.mubr.bf16.gmra.mrb[0].mxu0 %v927
    %v989 = vpop.f32.mrb[0].mxu0
    %v990 = vadd.f32 0.0, %v989
    %v991 = vpop.f32.mrb[0].mxu0
    %v992 = vpop.f32.mrb[0].mxu0
    %v993 = vadd.f32 0.0, %v992
    %v994 = vpop.f32.mrb[0].mxu0
    %995 = vmatprep.mubr.bf16.mxu0 0
    %996 = vmatmul.mubr.bf16.gmra.mrb[0].mxu0 %v930
    %v997 = vpop.f32.mrb[0].mxu0
    %v998 = vadd.f32 0.0, %v997
    %v999 = vpop.f32.mrb[0].mxu0
    %v1000 = vpop.f32.mrb[0].mxu0
    %v1001 = vadd.f32 0.0, %v1000
    %v1002 = vpop.f32.mrb[0].mxu0
    %1003 = vmatprep.mubr.bf16.mxu0 0
    %1004 = vmatmul.mubr.bf16.gmra.mrb[0].mxu0 %v933
    %v1005 = vpop.f32.mrb[0].mxu0
    %v1006 = vadd.f32 0.0, %v1005
    %v1007 = vpop.f32.mrb[0].mxu0
    %v1008 = vpop.f32.mrb[0].mxu0
    %v1009 = vadd.f32 0.0, %v1008
    %v1010 = vpop.f32.mrb[0].mxu0
    %1011 = vdwg.mxu0
    %1016 = vrot.lane.b32.xlu0 %v559, 124
    %v1017 = vpop.permute.xlu0 %1016
    %1018 = vrot.lane.b32.xlu0 %v560, 124
    %v1019 = vpop.permute.xlu0 %1018
    %1020 = vrot.lane.b32.xlu0 %v561, 124
    %v1021 = vpop.permute.xlu0 %1020
    %1022 = vrot.lane.b32.xlu0 %v562, 124
    %v1023 = vpop.permute.xlu0 %1022
    %v1025 = vsel %vm619, %v559, 0
    %v1028 = vsel %vm619, %v560, 0
    %v1031 = vsel %vm619, %v561, 0
    %v1034 = vsel %vm619, %v562, 0
    %v1037 = vsel %vm619, %v1017, 0
    %v1040 = vsel %vm619, %v1019, 0
    %v1043 = vsel %vm619, %v1021, 0
    %v1046 = vsel %vm619, %v1023, 0
    %1048 = vmatprep.subr.bf16.mxu0 0
    %1049 = vmatpush1.bf16.xpose.msra.mxu0 %v1037
    %1050 = vmatprep.subr.bf16.mxu0 0
    %1051 = vmatpush1.bf16.xpose.msra.mxu0 %v1040
    %1052 = vmatprep.subr.bf16.mxu0 0
    %1053 = vmatpush1.bf16.xpose.msra.mxu0 %v1043
    %1054 = vmatprep.subr.bf16.mxu0 0
    %1055 = vmatpush1.bf16.xpose.msra.mxu0 %v1046
    %1056 = vmatprep.subr.bf16.mxu0 0
    %1057 = vmatpush1.bf16.xpose.msra.mxu0 0
    %1058 = vmatprep.subr.bf16.mxu0 0
    %1059 = vmatpush1.bf16.xpose.msra.mxu0 0
    %1060 = vmatprep.subr.bf16.mxu0 0
    %1061 = vmatpush1.bf16.xpose.msra.mxu0 0
    %1062 = vmatprep.subr.bf16.mxu0 0
    %1063 = vmatpush1.bf16.xpose.msra.mxu0 0
    %1064 = vmatprep.subr.bf16.mxu0 0
    %1065 = vmatpush1.bf16.xpose.msra.mxu0 0
    %1066 = vmatprep.subr.bf16.mxu0 0
    %1067 = vmatpush1.bf16.xpose.msra.mxu0 0
    %1068 = vmatprep.subr.bf16.mxu0 0
    %1069 = vmatpush1.bf16.xpose.msra.mxu0 0
    %1070 = vmatprep.subr.bf16.mxu0 0
    %1071 = vmatpush1.bf16.xpose.msra.mxu0 0
    %1072 = vmatprep.subr.bf16.mxu0 0
    %1073 = vmatpush1.bf16.xpose.msra.mxu0 0
    %1074 = vmatprep.subr.bf16.mxu0 0
    %1075 = vmatpush1.bf16.xpose.msra.mxu0 0
    %1076 = vmatprep.subr.bf16.mxu0 0
    %1077 = vmatpush1.bf16.xpose.msra.mxu0 0
    %1078 = vmatprep.subr.bf16.mxu0 0
    %1079 = vmatpush1.bf16.xpose.msra.mxu0 0
    %1080 = vmatprep.mubr.bf16.mxu0 0
    %1081 = vmatmul.mubr.bf16.gmra.mrb[0].mxu0 %v1025
    %v1082 = vpop.f32.mrb[0].mxu0
    %v1083 = vadd.f32 0.0, %v1082
    %v1084 = vpop.f32.mrb[0].mxu0
    %v1085 = vpop.f32.mrb[0].mxu0
    %v1086 = vadd.f32 0.0, %v1085
    %v1087 = vpop.f32.mrb[0].mxu0
    %1088 = vmatprep.mubr.bf16.mxu0 0
    %1089 = vmatmul.mubr.bf16.gmra.mrb[0].mxu0 %v1028
    %v1090 = vpop.f32.mrb[0].mxu0
    %v1091 = vadd.f32 0.0, %v1090
    %v1092 = vpop.f32.mrb[0].mxu0
    %v1093 = vpop.f32.mrb[0].mxu0
    %v1094 = vadd.f32 0.0, %v1093
    %v1095 = vpop.f32.mrb[0].mxu0
    %1096 = vmatprep.mubr.bf16.mxu0 0
    %1097 = vmatmul.mubr.bf16.gmra.mrb[0].mxu0 %v1031
    %v1098 = vpop.f32.mrb[0].mxu0
    %v1099 = vadd.f32 0.0, %v1098
    %v1100 = vpop.f32.mrb[0].mxu0
    %v1101 = vpop.f32.mrb[0].mxu0
    %v1102 = vadd.f32 0.0, %v1101
    %v1103 = vpop.f32.mrb[0].mxu0
    %1104 = vmatprep.mubr.bf16.mxu0 0
    %1105 = vmatmul.mubr.bf16.gmra.mrb[0].mxu0 %v1034
    %v1106 = vpop.f32.mrb[0].mxu0
    %v1107 = vadd.f32 0.0, %v1106
    %v1108 = vpop.f32.mrb[0].mxu0
    %v1109 = vpop.f32.mrb[0].mxu0
    %v1110 = vadd.f32 0.0, %v1109
    %v1111 = vpop.f32.mrb[0].mxu0
    %1112 = vdwg.mxu0
    %1117 = vrot.lane.b32.xlu0 %v563, 124
    %v1118 = vpop.permute.xlu0 %1117
    %1119 = vrot.lane.b32.xlu0 %v564, 124
    %v1120 = vpop.permute.xlu0 %1119
    %1121 = vrot.lane.b32.xlu0 %v565, 124
    %v1122 = vpop.permute.xlu0 %1121
    %1123 = vrot.lane.b32.xlu0 %v566, 124
    %v1124 = vpop.permute.xlu0 %1123
    %v1126 = vsel %vm619, %v563, 0
    %v1129 = vsel %vm619, %v564, 0
    %v1132 = vsel %vm619, %v565, 0
    %v1135 = vsel %vm619, %v566, 0
    %v1138 = vsel %vm619, %v1118, 0
    %v1141 = vsel %vm619, %v1120, 0
    %v1144 = vsel %vm619, %v1122, 0
    %v1147 = vsel %vm619, %v1124, 0
    %1149 = vmatprep.subr.bf16.mxu0 0
    %1150 = vmatpush1.bf16.xpose.msra.mxu0 %v1138
    %1151 = vmatprep.subr.bf16.mxu0 0
    %1152 = vmatpush1.bf16.xpose.msra.mxu0 %v1141
    %1153 = vmatprep.subr.bf16.mxu0 0
    %1154 = vmatpush1.bf16.xpose.msra.mxu0 %v1144
    %1155 = vmatprep.subr.bf16.mxu0 0
    %1156 = vmatpush1.bf16.xpose.msra.mxu0 %v1147
    %1157 = vmatprep.subr.bf16.mxu0 0
    %1158 = vmatpush1.bf16.xpose.msra.mxu0 0
    %1159 = vmatprep.subr.bf16.mxu0 0
    %1160 = vmatpush1.bf16.xpose.msra.mxu0 0
    %1161 = vmatprep.subr.bf16.mxu0 0
    %1162 = vmatpush1.bf16.xpose.msra.mxu0 0
    %1163 = vmatprep.subr.bf16.mxu0 0
    %1164 = vmatpush1.bf16.xpose.msra.mxu0 0
    %1165 = vmatprep.subr.bf16.mxu0 0
    %1166 = vmatpush1.bf16.xpose.msra.mxu0 0
    %1167 = vmatprep.subr.bf16.mxu0 0
    %1168 = vmatpush1.bf16.xpose.msra.mxu0 0
    %1169 = vmatprep.subr.bf16.mxu0 0
    %1170 = vmatpush1.bf16.xpose.msra.mxu0 0
    %1171 = vmatprep.subr.bf16.mxu0 0
    %1172 = vmatpush1.bf16.xpose.msra.mxu0 0
    %1173 = vmatprep.subr.bf16.mxu0 0
    %1174 = vmatpush1.bf16.xpose.msra.mxu0 0
    %1175 = vmatprep.subr.bf16.mxu0 0
    %1176 = vmatpush1.bf16.xpose.msra.mxu0 0
    %1177 = vmatprep.subr.bf16.mxu0 0
    %1178 = vmatpush1.bf16.xpose.msra.mxu0 0
    %1179 = vmatprep.subr.bf16.mxu0 0
    %1180 = vmatpush1.bf16.xpose.msra.mxu0 0
    %1181 = vmatprep.mubr.bf16.mxu0 0
    %1182 = vmatmul.mubr.bf16.gmra.mrb[0].mxu0 %v1126
    %v1183 = vpop.f32.mrb[0].mxu0
    %v1184 = vadd.f32 0.0, %v1183
    %v1185 = vpop.f32.mrb[0].mxu0
    %v1186 = vpop.f32.mrb[0].mxu0
    %v1187 = vadd.f32 0.0, %v1186
    %v1188 = vpop.f32.mrb[0].mxu0
    %1189 = vmatprep.mubr.bf16.mxu0 0
    %1190 = vmatmul.mubr.bf16.gmra.mrb[0].mxu0 %v1129
    %v1191 = vpop.f32.mrb[0].mxu0
    %v1192 = vadd.f32 0.0, %v1191
    %v1193 = vpop.f32.mrb[0].mxu0
    %v1194 = vpop.f32.mrb[0].mxu0
    %v1195 = vadd.f32 0.0, %v1194
    %v1196 = vpop.f32.mrb[0].mxu0
    %1197 = vmatprep.mubr.bf16.mxu0 0
    %1198 = vmatmul.mubr.bf16.gmra.mrb[0].mxu0 %v1132
    %v1199 = vpop.f32.mrb[0].mxu0
    %v1200 = vadd.f32 0.0, %v1199
    %v1201 = vpop.f32.mrb[0].mxu0
    %v1202 = vpop.f32.mrb[0].mxu0
    %v1203 = vadd.f32 0.0, %v1202
    %v1204 = vpop.f32.mrb[0].mxu0
    %1205 = vmatprep.mubr.bf16.mxu0 0
    %1206 = vmatmul.mubr.bf16.gmra.mrb[0].mxu0 %v1135
    %v1207 = vpop.f32.mrb[0].mxu0
    %v1208 = vadd.f32 0.0, %v1207
    %v1209 = vpop.f32.mrb[0].mxu0
    %v1210 = vpop.f32.mrb[0].mxu0
    %v1211 = vadd.f32 0.0, %v1210
    %v1212 = vpop.f32.mrb[0].mxu0
    %1213 = vdwg.mxu0
    %1218 = vrot.lane.b32.xlu0 %v567, 124
    %v1219 = vpop.permute.xlu0 %1218
    %1220 = vrot.lane.b32.xlu0 %v568, 124
    %v1221 = vpop.permute.xlu0 %1220
    %1222 = vrot.lane.b32.xlu0 %v569, 124
    %v1223 = vpop.permute.xlu0 %1222
    %1224 = vrot.lane.b32.xlu0 %v570, 124
    %v1225 = vpop.permute.xlu0 %1224
    %v1227 = vsel %vm619, %v567, 0
    %v1230 = vsel %vm619, %v568, 0
    %v1233 = vsel %vm619, %v569, 0
    %v1236 = vsel %vm619, %v570, 0
    %v1239 = vsel %vm619, %v1219, 0
    %v1242 = vsel %vm619, %v1221, 0
    %v1245 = vsel %vm619, %v1223, 0
    %v1248 = vsel %vm619, %v1225, 0
    %1250 = vmatprep.subr.bf16.mxu0 0
    %1251 = vmatpush1.bf16.xpose.msra.mxu0 %v1239
    %1252 = vmatprep.subr.bf16.mxu0 0
    %1253 = vmatpush1.bf16.xpose.msra.mxu0 %v1242
    %1254 = vmatprep.subr.bf16.mxu0 0
    %1255 = vmatpush1.bf16.xpose.msra.mxu0 %v1245
    %1256 = vmatprep.subr.bf16.mxu0 0
    %1257 = vmatpush1.bf16.xpose.msra.mxu0 %v1248
    %1258 = vmatprep.subr.bf16.mxu0 0
    %1259 = vmatpush1.bf16.xpose.msra.mxu0 0
    %1260 = vmatprep.subr.bf16.mxu0 0
    %1261 = vmatpush1.bf16.xpose.msra.mxu0 0
    %1262 = vmatprep.subr.bf16.mxu0 0
    %1263 = vmatpush1.bf16.xpose.msra.mxu0 0
    %1264 = vmatprep.subr.bf16.mxu0 0
    %1265 = vmatpush1.bf16.xpose.msra.mxu0 0
    %1266 = vmatprep.subr.bf16.mxu0 0
    %1267 = vmatpush1.bf16.xpose.msra.mxu0 0
    %1268 = vmatprep.subr.bf16.mxu0 0
    %1269 = vmatpush1.bf16.xpose.msra.mxu0 0
    %1270 = vmatprep.subr.bf16.mxu0 0
    %1271 = vmatpush1.bf16.xpose.msra.mxu0 0
    %1272 = vmatprep.subr.bf16.mxu0 0
    %1273 = vmatpush1.bf16.xpose.msra.mxu0 0
    %1274 = vmatprep.subr.bf16.mxu0 0
    %1275 = vmatpush1.bf16.xpose.msra.mxu0 0
    %1276 = vmatprep.subr.bf16.mxu0 0
    %1277 = vmatpush1.bf16.xpose.msra.mxu0 0
    %1278 = vmatprep.subr.bf16.mxu0 0
    %1279 = vmatpush1.bf16.xpose.msra.mxu0 0
    %1280 = vmatprep.subr.bf16.mxu0 0
    %1281 = vmatpush1.bf16.xpose.msra.mxu0 0
    %1282 = vmatprep.mubr.bf16.mxu0 0
    %1283 = vmatmul.mubr.bf16.gmra.mrb[0].mxu0 %v1227
    %v1284 = vpop.f32.mrb[0].mxu0
    %v1285 = vadd.f32 0.0, %v1284
    %v1286 = vpop.f32.mrb[0].mxu0
    %v1287 = vpop.f32.mrb[0].mxu0
    %v1288 = vadd.f32 0.0, %v1287
    %v1289 = vpop.f32.mrb[0].mxu0
    %1290 = vmatprep.mubr.bf16.mxu0 0
    %1291 = vmatmul.mubr.bf16.gmra.mrb[0].mxu0 %v1230
    %v1292 = vpop.f32.mrb[0].mxu0
    %v1293 = vadd.f32 0.0, %v1292
    %v1294 = vpop.f32.mrb[0].mxu0
    %v1295 = vpop.f32.mrb[0].mxu0
    %v1296 = vadd.f32 0.0, %v1295
    %v1297 = vpop.f32.mrb[0].mxu0
    %1298 = vmatprep.mubr.bf16.mxu0 0
    %1299 = vmatmul.mubr.bf16.gmra.mrb[0].mxu0 %v1233
    %v1300 = vpop.f32.mrb[0].mxu0
    %v1301 = vadd.f32 0.0, %v1300
    %v1302 = vpop.f32.mrb[0].mxu0
    %v1303 = vpop.f32.mrb[0].mxu0
    %v1304 = vadd.f32 0.0, %v1303
    %v1305 = vpop.f32.mrb[0].mxu0
    %1306 = vmatprep.mubr.bf16.mxu0 0
    %1307 = vmatmul.mubr.bf16.gmra.mrb[0].mxu0 %v1236
    %v1308 = vpop.f32.mrb[0].mxu0
    %v1309 = vadd.f32 0.0, %v1308
    %v1310 = vpop.f32.mrb[0].mxu0
    %v1311 = vpop.f32.mrb[0].mxu0
    %v1312 = vadd.f32 0.0, %v1311
    %v1313 = vpop.f32.mrb[0].mxu0
    %1314 = vdwg.mxu0
    %1319 = vrot.lane.b32.xlu0 %v571, 124
    %v1320 = vpop.permute.xlu0 %1319
    %1321 = vrot.lane.b32.xlu0 %v572, 124
    %v1322 = vpop.permute.xlu0 %1321
    %1323 = vrot.lane.b32.xlu0 %v573, 124
    %v1324 = vpop.permute.xlu0 %1323
    %1325 = vrot.lane.b32.xlu0 %v574, 124
    %v1326 = vpop.permute.xlu0 %1325
    %v1328 = vsel %vm619, %v571, 0
    %v1331 = vsel %vm619, %v572, 0
    %v1334 = vsel %vm619, %v573, 0
    %v1337 = vsel %vm619, %v574, 0
    %v1340 = vsel %vm619, %v1320, 0
    %v1343 = vsel %vm619, %v1322, 0
    %v1346 = vsel %vm619, %v1324, 0
    %v1349 = vsel %vm619, %v1326, 0
    %1351 = vmatprep.subr.bf16.mxu0 0
    %1352 = vmatpush1.bf16.xpose.msra.mxu0 %v1340
    %1353 = vmatprep.subr.bf16.mxu0 0
    %1354 = vmatpush1.bf16.xpose.msra.mxu0 %v1343
    %1355 = vmatprep.subr.bf16.mxu0 0
    %1356 = vmatpush1.bf16.xpose.msra.mxu0 %v1346
    %1357 = vmatprep.subr.bf16.mxu0 0
    %1358 = vmatpush1.bf16.xpose.msra.mxu0 %v1349
    %1359 = vmatprep.subr.bf16.mxu0 0
    %1360 = vmatpush1.bf16.xpose.msra.mxu0 0
    %1361 = vmatprep.subr.bf16.mxu0 0
    %1362 = vmatpush1.bf16.xpose.msra.mxu0 0
    %1363 = vmatprep.subr.bf16.mxu0 0
    %1364 = vmatpush1.bf16.xpose.msra.mxu0 0
    %1365 = vmatprep.subr.bf16.mxu0 0
    %1366 = vmatpush1.bf16.xpose.msra.mxu0 0
    %1367 = vmatprep.subr.bf16.mxu0 0
    %1368 = vmatpush1.bf16.xpose.msra.mxu0 0
    %1369 = vmatprep.subr.bf16.mxu0 0
    %1370 = vmatpush1.bf16.xpose.msra.mxu0 0
    %1371 = vmatprep.subr.bf16.mxu0 0
    %1372 = vmatpush1.bf16.xpose.msra.mxu0 0
    %1373 = vmatprep.subr.bf16.mxu0 0
    %1374 = vmatpush1.bf16.xpose.msra.mxu0 0
    %1375 = vmatprep.subr.bf16.mxu0 0
    %1376 = vmatpush1.bf16.xpose.msra.mxu0 0
    %1377 = vmatprep.subr.bf16.mxu0 0
    %1378 = vmatpush1.bf16.xpose.msra.mxu0 0
    %1379 = vmatprep.subr.bf16.mxu0 0
    %1380 = vmatpush1.bf16.xpose.msra.mxu0 0
    %1381 = vmatprep.subr.bf16.mxu0 0
    %1382 = vmatpush1.bf16.xpose.msra.mxu0 0
    %1383 = vmatprep.mubr.bf16.mxu0 0
    %1384 = vmatmul.mubr.bf16.gmra.mrb[0].mxu0 %v1328
    %v1385 = vpop.f32.mrb[0].mxu0
    %v1386 = vadd.f32 0.0, %v1385
    %v1387 = vpop.f32.mrb[0].mxu0
    %v1388 = vpop.f32.mrb[0].mxu0
    %v1389 = vadd.f32 0.0, %v1388
    %v1390 = vpop.f32.mrb[0].mxu0
    %1391 = vmatprep.mubr.bf16.mxu0 0
    %1392 = vmatmul.mubr.bf16.gmra.mrb[0].mxu0 %v1331
    %v1393 = vpop.f32.mrb[0].mxu0
    %v1394 = vadd.f32 0.0, %v1393
    %v1395 = vpop.f32.mrb[0].mxu0
    %v1396 = vpop.f32.mrb[0].mxu0
    %v1397 = vadd.f32 0.0, %v1396
    %v1398 = vpop.f32.mrb[0].mxu0
    %1399 = vmatprep.mubr.bf16.mxu0 0
    %1400 = vmatmul.mubr.bf16.gmra.mrb[0].mxu0 %v1334
    %v1401 = vpop.f32.mrb[0].mxu0
    %v1402 = vadd.f32 0.0, %v1401
    %v1403 = vpop.f32.mrb[0].mxu0
    %v1404 = vpop.f32.mrb[0].mxu0
    %v1405 = vadd.f32 0.0, %v1404
    %v1406 = vpop.f32.mrb[0].mxu0
    %1407 = vmatprep.mubr.bf16.mxu0 0
    %1408 = vmatmul.mubr.bf16.gmra.mrb[0].mxu0 %v1337
    %v1409 = vpop.f32.mrb[0].mxu0
    %v1410 = vadd.f32 0.0, %v1409
    %v1411 = vpop.f32.mrb[0].mxu0
    %v1412 = vpop.f32.mrb[0].mxu0
    %v1413 = vadd.f32 0.0, %v1412
    %v1414 = vpop.f32.mrb[0].mxu0
    %1415 = vdwg.mxu0
    %1420 = vrot.lane.b32.xlu0 %v575, 124
    %v1421 = vpop.permute.xlu0 %1420
    %1422 = vrot.lane.b32.xlu0 %v576, 124
    %v1423 = vpop.permute.xlu0 %1422
    %1424 = vrot.lane.b32.xlu0 %v577, 124
    %v1425 = vpop.permute.xlu0 %1424
    %1426 = vrot.lane.b32.xlu0 %v578, 124
    %v1427 = vpop.permute.xlu0 %1426
    %v1429 = vsel %vm619, %v575, 0
    %v1432 = vsel %vm619, %v576, 0
    %v1435 = vsel %vm619, %v577, 0
    %v1438 = vsel %vm619, %v578, 0
    %v1441 = vsel %vm619, %v1421, 0
    %v1444 = vsel %vm619, %v1423, 0
    %v1447 = vsel %vm619, %v1425, 0
    %v1450 = vsel %vm619, %v1427, 0
    %1452 = vmatprep.subr.bf16.mxu0 0
    %1453 = vmatpush1.bf16.xpose.msra.mxu0 %v1441
    %1454 = vmatprep.subr.bf16.mxu0 0
    %1455 = vmatpush1.bf16.xpose.msra.mxu0 %v1444
    %1456 = vmatprep.subr.bf16.mxu0 0
    %1457 = vmatpush1.bf16.xpose.msra.mxu0 %v1447
    %1458 = vmatprep.subr.bf16.mxu0 0
    %1459 = vmatpush1.bf16.xpose.msra.mxu0 %v1450
    %1460 = vmatprep.subr.bf16.mxu0 0
    %1461 = vmatpush1.bf16.xpose.msra.mxu0 0
    %1462 = vmatprep.subr.bf16.mxu0 0
    %1463 = vmatpush1.bf16.xpose.msra.mxu0 0
    %1464 = vmatprep.subr.bf16.mxu0 0
    %1465 = vmatpush1.bf16.xpose.msra.mxu0 0
    %1466 = vmatprep.subr.bf16.mxu0 0
    %1467 = vmatpush1.bf16.xpose.msra.mxu0 0
    %1468 = vmatprep.subr.bf16.mxu0 0
    %1469 = vmatpush1.bf16.xpose.msra.mxu0 0
    %1470 = vmatprep.subr.bf16.mxu0 0
    %1471 = vmatpush1.bf16.xpose.msra.mxu0 0
    %1472 = vmatprep.subr.bf16.mxu0 0
    %1473 = vmatpush1.bf16.xpose.msra.mxu0 0
    %1474 = vmatprep.subr.bf16.mxu0 0
    %1475 = vmatpush1.bf16.xpose.msra.mxu0 0
    %1476 = vmatprep.subr.bf16.mxu0 0
    %1477 = vmatpush1.bf16.xpose.msra.mxu0 0
    %1478 = vmatprep.subr.bf16.mxu0 0
    %1479 = vmatpush1.bf16.xpose.msra.mxu0 0
    %1480 = vmatprep.subr.bf16.mxu0 0
    %1481 = vmatpush1.bf16.xpose.msra.mxu0 0
    %1482 = vmatprep.subr.bf16.mxu0 0
    %1483 = vmatpush1.bf16.xpose.msra.mxu0 0
    %1484 = vmatprep.mubr.bf16.mxu0 0
    %1485 = vmatmul.mubr.bf16.gmra.mrb[0].mxu0 %v1429
    %v1486 = vpop.f32.mrb[0].mxu0
    %v1487 = vadd.f32 0.0, %v1486
    %v1488 = vpop.f32.mrb[0].mxu0
    %v1489 = vpop.f32.mrb[0].mxu0
    %v1490 = vadd.f32 0.0, %v1489
    %v1491 = vpop.f32.mrb[0].mxu0
    %1492 = vmatprep.mubr.bf16.mxu0 0
    %1493 = vmatmul.mubr.bf16.gmra.mrb[0].mxu0 %v1432
    %v1494 = vpop.f32.mrb[0].mxu0
    %v1495 = vadd.f32 0.0, %v1494
    %v1496 = vpop.f32.mrb[0].mxu0
    %v1497 = vpop.f32.mrb[0].mxu0
    %v1498 = vadd.f32 0.0, %v1497
    %v1499 = vpop.f32.mrb[0].mxu0
    %1500 = vmatprep.mubr.bf16.mxu0 0
    %1501 = vmatmul.mubr.bf16.gmra.mrb[0].mxu0 %v1435
    %v1502 = vpop.f32.mrb[0].mxu0
    %v1503 = vadd.f32 0.0, %v1502
    %v1504 = vpop.f32.mrb[0].mxu0
    %v1505 = vpop.f32.mrb[0].mxu0
    %v1506 = vadd.f32 0.0, %v1505
    %v1507 = vpop.f32.mrb[0].mxu0
    %1508 = vmatprep.mubr.bf16.mxu0 0
    %1509 = vmatmul.mubr.bf16.gmra.mrb[0].mxu0 %v1438
    %v1510 = vpop.f32.mrb[0].mxu0
    %v1511 = vadd.f32 0.0, %v1510
    %v1512 = vpop.f32.mrb[0].mxu0
    %v1513 = vpop.f32.mrb[0].mxu0
    %v1514 = vadd.f32 0.0, %v1513
    %v1515 = vpop.f32.mrb[0].mxu0
    %1516 = vdwg.mxu0
    %1521 = vrot.lane.b32.xlu0 %v579, 124
    %v1522 = vpop.permute.xlu0 %1521
    %1523 = vrot.lane.b32.xlu0 %v580, 124
    %v1524 = vpop.permute.xlu0 %1523
    %1525 = vrot.lane.b32.xlu0 %v581, 124
    %v1526 = vpop.permute.xlu0 %1525
    %1527 = vrot.lane.b32.xlu0 %v582, 124
    %v1528 = vpop.permute.xlu0 %1527
    %v1530 = vsel %vm619, %v579, 0
    %v1533 = vsel %vm619, %v580, 0
    %v1536 = vsel %vm619, %v581, 0
    %v1539 = vsel %vm619, %v582, 0
    %v1542 = vsel %vm619, %v1522, 0
    %v1545 = vsel %vm619, %v1524, 0
    %v1548 = vsel %vm619, %v1526, 0
    %v1551 = vsel %vm619, %v1528, 0
    %1553 = vmatprep.subr.bf16.mxu0 0
    %1554 = vmatpush1.bf16.xpose.msra.mxu0 %v1542
    %1555 = vmatprep.subr.bf16.mxu0 0
    %1556 = vmatpush1.bf16.xpose.msra.mxu0 %v1545
    %1557 = vmatprep.subr.bf16.mxu0 0
    %1558 = vmatpush1.bf16.xpose.msra.mxu0 %v1548
    %1559 = vmatprep.subr.bf16.mxu0 0
    %1560 = vmatpush1.bf16.xpose.msra.mxu0 %v1551
    %1561 = vmatprep.subr.bf16.mxu0 0
    %1562 = vmatpush1.bf16.xpose.msra.mxu0 0
    %1563 = vmatprep.subr.bf16.mxu0 0
    %1564 = vmatpush1.bf16.xpose.msra.mxu0 0
    %1565 = vmatprep.subr.bf16.mxu0 0
    %1566 = vmatpush1.bf16.xpose.msra.mxu0 0
    %1567 = vmatprep.subr.bf16.mxu0 0
    %1568 = vmatpush1.bf16.xpose.msra.mxu0 0
    %1569 = vmatprep.subr.bf16.mxu0 0
    %1570 = vmatpush1.bf16.xpose.msra.mxu0 0
    %1571 = vmatprep.subr.bf16.mxu0 0
    %1572 = vmatpush1.bf16.xpose.msra.mxu0 0
    %1573 = vmatprep.subr.bf16.mxu0 0
    %1574 = vmatpush1.bf16.xpose.msra.mxu0 0
    %1575 = vmatprep.subr.bf16.mxu0 0
    %1576 = vmatpush1.bf16.xpose.msra.mxu0 0
    %1577 = vmatprep.subr.bf16.mxu0 0
    %1578 = vmatpush1.bf16.xpose.msra.mxu0 0
    %1579 = vmatprep.subr.bf16.mxu0 0
    %1580 = vmatpush1.bf16.xpose.msra.mxu0 0
    %1581 = vmatprep.subr.bf16.mxu0 0
    %1582 = vmatpush1.bf16.xpose.msra.mxu0 0
    %1583 = vmatprep.subr.bf16.mxu0 0
    %1584 = vmatpush1.bf16.xpose.msra.mxu0 0
    %1585 = vmatprep.mubr.bf16.mxu0 0
    %1586 = vmatmul.mubr.bf16.gmra.mrb[0].mxu0 %v1530
    %v1587 = vpop.f32.mrb[0].mxu0
    %v1588 = vadd.f32 0.0, %v1587
    %v1589 = vpop.f32.mrb[0].mxu0
    %v1590 = vpop.f32.mrb[0].mxu0
    %v1591 = vadd.f32 0.0, %v1590
    %v1592 = vpop.f32.mrb[0].mxu0
    %1593 = vmatprep.mubr.bf16.mxu0 0
    %1594 = vmatmul.mubr.bf16.gmra.mrb[0].mxu0 %v1533
    %v1595 = vpop.f32.mrb[0].mxu0
    %v1596 = vadd.f32 0.0, %v1595
    %v1597 = vpop.f32.mrb[0].mxu0
    %v1598 = vpop.f32.mrb[0].mxu0
    %v1599 = vadd.f32 0.0, %v1598
    %v1600 = vpop.f32.mrb[0].mxu0
    %1601 = vmatprep.mubr.bf16.mxu0 0
    %1602 = vmatmul.mubr.bf16.gmra.mrb[0].mxu0 %v1536
    %v1603 = vpop.f32.mrb[0].mxu0
    %v1604 = vadd.f32 0.0, %v1603
    %v1605 = vpop.f32.mrb[0].mxu0
    %v1606 = vpop.f32.mrb[0].mxu0
    %v1607 = vadd.f32 0.0, %v1606
    %v1608 = vpop.f32.mrb[0].mxu0
    %1609 = vmatprep.mubr.bf16.mxu0 0
    %1610 = vmatmul.mubr.bf16.gmra.mrb[0].mxu0 %v1539
    %v1611 = vpop.f32.mrb[0].mxu0
    %v1612 = vadd.f32 0.0, %v1611
    %v1613 = vpop.f32.mrb[0].mxu0
    %v1614 = vpop.f32.mrb[0].mxu0
    %v1615 = vadd.f32 0.0, %v1614
    %v1616 = vpop.f32.mrb[0].mxu0
    %1617 = vdwg.mxu0
    %1622 = vrot.lane.b32.xlu0 %v583, 124
    %v1623 = vpop.permute.xlu0 %1622
    %1624 = vrot.lane.b32.xlu0 %v584, 124
    %v1625 = vpop.permute.xlu0 %1624
    %1626 = vrot.lane.b32.xlu0 %v585, 124
    %v1627 = vpop.permute.xlu0 %1626
    %1628 = vrot.lane.b32.xlu0 %v586, 124
    %v1629 = vpop.permute.xlu0 %1628
    %v1631 = vsel %vm619, %v583, 0
    %v1634 = vsel %vm619, %v584, 0
    %v1637 = vsel %vm619, %v585, 0
    %v1640 = vsel %vm619, %v586, 0
    %v1643 = vsel %vm619, %v1623, 0
    %v1646 = vsel %vm619, %v1625, 0
    %v1649 = vsel %vm619, %v1627, 0
    %v1652 = vsel %vm619, %v1629, 0
    %1654 = vmatprep.subr.bf16.mxu0 0
    %1655 = vmatpush1.bf16.xpose.msra.mxu0 %v1643
    %1656 = vmatprep.subr.bf16.mxu0 0
    %1657 = vmatpush1.bf16.xpose.msra.mxu0 %v1646
    %1658 = vmatprep.subr.bf16.mxu0 0
    %1659 = vmatpush1.bf16.xpose.msra.mxu0 %v1649
    %1660 = vmatprep.subr.bf16.mxu0 0
    %1661 = vmatpush1.bf16.xpose.msra.mxu0 %v1652
    %1662 = vmatprep.subr.bf16.mxu0 0
    %1663 = vmatpush1.bf16.xpose.msra.mxu0 0
    %1664 = vmatprep.subr.bf16.mxu0 0
    %1665 = vmatpush1.bf16.xpose.msra.mxu0 0
    %1666 = vmatprep.subr.bf16.mxu0 0
    %1667 = vmatpush1.bf16.xpose.msra.mxu0 0
    %1668 = vmatprep.subr.bf16.mxu0 0
    %1669 = vmatpush1.bf16.xpose.msra.mxu0 0
    %1670 = vmatprep.subr.bf16.mxu0 0
    %1671 = vmatpush1.bf16.xpose.msra.mxu0 0
    %1672 = vmatprep.subr.bf16.mxu0 0
    %1673 = vmatpush1.bf16.xpose.msra.mxu0 0
    %1674 = vmatprep.subr.bf16.mxu0 0
    %1675 = vmatpush1.bf16.xpose.msra.mxu0 0
    %1676 = vmatprep.subr.bf16.mxu0 0
    %1677 = vmatpush1.bf16.xpose.msra.mxu0 0
    %1678 = vmatprep.subr.bf16.mxu0 0
    %1679 = vmatpush1.bf16.xpose.msra.mxu0 0
    %1680 = vmatprep.subr.bf16.mxu0 0
    %1681 = vmatpush1.bf16.xpose.msra.mxu0 0
    %1682 = vmatprep.subr.bf16.mxu0 0
    %1683 = vmatpush1.bf16.xpose.msra.mxu0 0
    %1684 = vmatprep.subr.bf16.mxu0 0
    %1685 = vmatpush1.bf16.xpose.msra.mxu0 0
    %1686 = vmatprep.mubr.bf16.mxu0 0
    %1687 = vmatmul.mubr.bf16.gmra.mrb[0].mxu0 %v1631
    %v1688 = vpop.f32.mrb[0].mxu0
    %v1689 = vadd.f32 0.0, %v1688
    %v1690 = vpop.f32.mrb[0].mxu0
    %v1691 = vpop.f32.mrb[0].mxu0
    %v1692 = vadd.f32 0.0, %v1691
    %v1693 = vpop.f32.mrb[0].mxu0
    %1694 = vmatprep.mubr.bf16.mxu0 0
    %1695 = vmatmul.mubr.bf16.gmra.mrb[0].mxu0 %v1634
    %v1696 = vpop.f32.mrb[0].mxu0
    %v1697 = vadd.f32 0.0, %v1696
    %v1698 = vpop.f32.mrb[0].mxu0
    %v1699 = vpop.f32.mrb[0].mxu0
    %v1700 = vadd.f32 0.0, %v1699
    %v1701 = vpop.f32.mrb[0].mxu0
    %1702 = vmatprep.mubr.bf16.mxu0 0
    %1703 = vmatmul.mubr.bf16.gmra.mrb[0].mxu0 %v1637
    %v1704 = vpop.f32.mrb[0].mxu0
    %v1705 = vadd.f32 0.0, %v1704
    %v1706 = vpop.f32.mrb[0].mxu0
    %v1707 = vpop.f32.mrb[0].mxu0
    %v1708 = vadd.f32 0.0, %v1707
    %v1709 = vpop.f32.mrb[0].mxu0
    %1710 = vmatprep.mubr.bf16.mxu0 0
    %1711 = vmatmul.mubr.bf16.gmra.mrb[0].mxu0 %v1640
    %v1712 = vpop.f32.mrb[0].mxu0
    %v1713 = vadd.f32 0.0, %v1712
    %v1714 = vpop.f32.mrb[0].mxu0
    %v1715 = vpop.f32.mrb[0].mxu0
    %v1716 = vadd.f32 0.0, %v1715
    %v1717 = vpop.f32.mrb[0].mxu0
    %1718 = vdwg.mxu0
    %1723 = vrot.lane.b32.xlu0 %v587, 124
    %v1724 = vpop.permute.xlu0 %1723
    %1725 = vrot.lane.b32.xlu0 %v588, 124
    %v1726 = vpop.permute.xlu0 %1725
    %1727 = vrot.lane.b32.xlu0 %v589, 124
    %v1728 = vpop.permute.xlu0 %1727
    %1729 = vrot.lane.b32.xlu0 %v590, 124
    %v1730 = vpop.permute.xlu0 %1729
    %v1732 = vsel %vm619, %v587, 0
    %v1735 = vsel %vm619, %v588, 0
    %v1738 = vsel %vm619, %v589, 0
    %v1741 = vsel %vm619, %v590, 0
    %v1744 = vsel %vm619, %v1724, 0
    %v1747 = vsel %vm619, %v1726, 0
    %v1750 = vsel %vm619, %v1728, 0
    %v1753 = vsel %vm619, %v1730, 0
    %1755 = vmatprep.subr.bf16.mxu0 0
    %1756 = vmatpush1.bf16.xpose.msra.mxu0 %v1744
    %1757 = vmatprep.subr.bf16.mxu0 0
    %1758 = vmatpush1.bf16.xpose.msra.mxu0 %v1747
    %1759 = vmatprep.subr.bf16.mxu0 0
    %1760 = vmatpush1.bf16.xpose.msra.mxu0 %v1750
    %1761 = vmatprep.subr.bf16.mxu0 0
    %1762 = vmatpush1.bf16.xpose.msra.mxu0 %v1753
    %1763 = vmatprep.subr.bf16.mxu0 0
    %1764 = vmatpush1.bf16.xpose.msra.mxu0 0
    %1765 = vmatprep.subr.bf16.mxu0 0
    %1766 = vmatpush1.bf16.xpose.msra.mxu0 0
    %1767 = vmatprep.subr.bf16.mxu0 0
    %1768 = vmatpush1.bf16.xpose.msra.mxu0 0
    %1769 = vmatprep.subr.bf16.mxu0 0
    %1770 = vmatpush1.bf16.xpose.msra.mxu0 0
    %1771 = vmatprep.subr.bf16.mxu0 0
    %1772 = vmatpush1.bf16.xpose.msra.mxu0 0
    %1773 = vmatprep.subr.bf16.mxu0 0
    %1774 = vmatpush1.bf16.xpose.msra.mxu0 0
    %1775 = vmatprep.subr.bf16.mxu0 0
    %1776 = vmatpush1.bf16.xpose.msra.mxu0 0
    %1777 = vmatprep.subr.bf16.mxu0 0
    %1778 = vmatpush1.bf16.xpose.msra.mxu0 0
    %1779 = vmatprep.subr.bf16.mxu0 0
    %1780 = vmatpush1.bf16.xpose.msra.mxu0 0
    %1781 = vmatprep.subr.bf16.mxu0 0
    %1782 = vmatpush1.bf16.xpose.msra.mxu0 0
    %1783 = vmatprep.subr.bf16.mxu0 0
    %1784 = vmatpush1.bf16.xpose.msra.mxu0 0
    %1785 = vmatprep.subr.bf16.mxu0 0
    %1786 = vmatpush1.bf16.xpose.msra.mxu0 0
    %1787 = vmatprep.mubr.bf16.mxu0 0
    %1788 = vmatmul.mubr.bf16.gmra.mrb[0].mxu0 %v1732
    %v1789 = vpop.f32.mrb[0].mxu0
    %v1790 = vadd.f32 0.0, %v1789
    %v1791 = vpop.f32.mrb[0].mxu0
    %v1792 = vpop.f32.mrb[0].mxu0
    %v1793 = vadd.f32 0.0, %v1792
    %v1794 = vpop.f32.mrb[0].mxu0
    %1795 = vmatprep.mubr.bf16.mxu0 0
    %1796 = vmatmul.mubr.bf16.gmra.mrb[0].mxu0 %v1735
    %v1797 = vpop.f32.mrb[0].mxu0
    %v1798 = vadd.f32 0.0, %v1797
    %v1799 = vpop.f32.mrb[0].mxu0
    %v1800 = vpop.f32.mrb[0].mxu0
    %v1801 = vadd.f32 0.0, %v1800
    %v1802 = vpop.f32.mrb[0].mxu0
    %1803 = vmatprep.mubr.bf16.mxu0 0
    %1804 = vmatmul.mubr.bf16.gmra.mrb[0].mxu0 %v1738
    %v1805 = vpop.f32.mrb[0].mxu0
    %v1806 = vadd.f32 0.0, %v1805
    %v1807 = vpop.f32.mrb[0].mxu0
    %v1808 = vpop.f32.mrb[0].mxu0
    %v1809 = vadd.f32 0.0, %v1808
    %v1810 = vpop.f32.mrb[0].mxu0
    %1811 = vmatprep.mubr.bf16.mxu0 0
    %1812 = vmatmul.mubr.bf16.gmra.mrb[0].mxu0 %v1741
    %v1813 = vpop.f32.mrb[0].mxu0
    %v1814 = vadd.f32 0.0, %v1813
    %v1815 = vpop.f32.mrb[0].mxu0
    %v1816 = vpop.f32.mrb[0].mxu0
    %v1817 = vadd.f32 0.0, %v1816
    %v1818 = vpop.f32.mrb[0].mxu0
    %1819 = vdwg.mxu0
    %1824 = vrot.lane.b32.xlu0 %v591, 124
    %v1825 = vpop.permute.xlu0 %1824
    %1826 = vrot.lane.b32.xlu0 %v592, 124
    %v1827 = vpop.permute.xlu0 %1826
    %1828 = vrot.lane.b32.xlu0 %v593, 124
    %v1829 = vpop.permute.xlu0 %1828
    %1830 = vrot.lane.b32.xlu0 %v594, 124
    %v1831 = vpop.permute.xlu0 %1830
    %v1833 = vsel %vm619, %v591, 0
    %v1836 = vsel %vm619, %v592, 0
    %v1839 = vsel %vm619, %v593, 0
    %v1842 = vsel %vm619, %v594, 0
    %v1845 = vsel %vm619, %v1825, 0
    %v1848 = vsel %vm619, %v1827, 0
    %v1851 = vsel %vm619, %v1829, 0
    %v1854 = vsel %vm619, %v1831, 0
    %1856 = vmatprep.subr.bf16.mxu0 0
    %1857 = vmatpush1.bf16.xpose.msra.mxu0 %v1845
    %1858 = vmatprep.subr.bf16.mxu0 0
    %1859 = vmatpush1.bf16.xpose.msra.mxu0 %v1848
    %1860 = vmatprep.subr.bf16.mxu0 0
    %1861 = vmatpush1.bf16.xpose.msra.mxu0 %v1851
    %1862 = vmatprep.subr.bf16.mxu0 0
    %1863 = vmatpush1.bf16.xpose.msra.mxu0 %v1854
    %1864 = vmatprep.subr.bf16.mxu0 0
    %1865 = vmatpush1.bf16.xpose.msra.mxu0 0
    %1866 = vmatprep.subr.bf16.mxu0 0
    %1867 = vmatpush1.bf16.xpose.msra.mxu0 0
    %1868 = vmatprep.subr.bf16.mxu0 0
    %1869 = vmatpush1.bf16.xpose.msra.mxu0 0
    %1870 = vmatprep.subr.bf16.mxu0 0
    %1871 = vmatpush1.bf16.xpose.msra.mxu0 0
    %1872 = vmatprep.subr.bf16.mxu0 0
    %1873 = vmatpush1.bf16.xpose.msra.mxu0 0
    %1874 = vmatprep.subr.bf16.mxu0 0
    %1875 = vmatpush1.bf16.xpose.msra.mxu0 0
    %1876 = vmatprep.subr.bf16.mxu0 0
    %1877 = vmatpush1.bf16.xpose.msra.mxu0 0
    %1878 = vmatprep.subr.bf16.mxu0 0
    %1879 = vmatpush1.bf16.xpose.msra.mxu0 0
    %1880 = vmatprep.subr.bf16.mxu0 0
    %1881 = vmatpush1.bf16.xpose.msra.mxu0 0
    %1882 = vmatprep.subr.bf16.mxu0 0
    %1883 = vmatpush1.bf16.xpose.msra.mxu0 0
    %1884 = vmatprep.subr.bf16.mxu0 0
    %1885 = vmatpush1.bf16.xpose.msra.mxu0 0
    %1886 = vmatprep.subr.bf16.mxu0 0
    %1887 = vmatpush1.bf16.xpose.msra.mxu0 0
    %1888 = vmatprep.mubr.bf16.mxu0 0
    %1889 = vmatmul.mubr.bf16.gmra.mrb[0].mxu0 %v1833
    %v1890 = vpop.f32.mrb[0].mxu0
    %v1891 = vadd.f32 0.0, %v1890
    %v1892 = vpop.f32.mrb[0].mxu0
    %v1893 = vpop.f32.mrb[0].mxu0
    %v1894 = vadd.f32 0.0, %v1893
    %v1895 = vpop.f32.mrb[0].mxu0
    %1896 = vmatprep.mubr.bf16.mxu0 0
    %1897 = vmatmul.mubr.bf16.gmra.mrb[0].mxu0 %v1836
    %v1898 = vpop.f32.mrb[0].mxu0
    %v1899 = vadd.f32 0.0, %v1898
    %v1900 = vpop.f32.mrb[0].mxu0
    %v1901 = vpop.f32.mrb[0].mxu0
    %v1902 = vadd.f32 0.0, %v1901
    %v1903 = vpop.f32.mrb[0].mxu0
    %1904 = vmatprep.mubr.bf16.mxu0 0
    %1905 = vmatmul.mubr.bf16.gmra.mrb[0].mxu0 %v1839
    %v1906 = vpop.f32.mrb[0].mxu0
    %v1907 = vadd.f32 0.0, %v1906
    %v1908 = vpop.f32.mrb[0].mxu0
    %v1909 = vpop.f32.mrb[0].mxu0
    %v1910 = vadd.f32 0.0, %v1909
    %v1911 = vpop.f32.mrb[0].mxu0
    %1912 = vmatprep.mubr.bf16.mxu0 0
    %1913 = vmatmul.mubr.bf16.gmra.mrb[0].mxu0 %v1842
    %v1914 = vpop.f32.mrb[0].mxu0
    %v1915 = vadd.f32 0.0, %v1914
    %v1916 = vpop.f32.mrb[0].mxu0
    %v1917 = vpop.f32.mrb[0].mxu0
    %v1918 = vadd.f32 0.0, %v1917
    %v1919 = vpop.f32.mrb[0].mxu0
    %1920 = vdwg.mxu0
    %1925 = vrot.lane.b32.xlu0 %v595, 124
    %v1926 = vpop.permute.xlu0 %1925
    %1927 = vrot.lane.b32.xlu0 %v596, 124
    %v1928 = vpop.permute.xlu0 %1927
    %1929 = vrot.lane.b32.xlu0 %v597, 124
    %v1930 = vpop.permute.xlu0 %1929
    %1931 = vrot.lane.b32.xlu0 %v598, 124
    %v1932 = vpop.permute.xlu0 %1931
    %v1934 = vsel %vm619, %v595, 0
    %v1937 = vsel %vm619, %v596, 0
    %v1940 = vsel %vm619, %v597, 0
    %v1943 = vsel %vm619, %v598, 0
    %v1946 = vsel %vm619, %v1926, 0
    %v1949 = vsel %vm619, %v1928, 0
    %v1952 = vsel %vm619, %v1930, 0
    %v1955 = vsel %vm619, %v1932, 0
    %1957 = vmatprep.subr.bf16.mxu0 0
    %1958 = vmatpush1.bf16.xpose.msra.mxu0 %v1946
    %1959 = vmatprep.subr.bf16.mxu0 0
    %1960 = vmatpush1.bf16.xpose.msra.mxu0 %v1949
    %1961 = vmatprep.subr.bf16.mxu0 0
    %1962 = vmatpush1.bf16.xpose.msra.mxu0 %v1952
    %1963 = vmatprep.subr.bf16.mxu0 0
    %1964 = vmatpush1.bf16.xpose.msra.mxu0 %v1955
    %1965 = vmatprep.subr.bf16.mxu0 0
    %1966 = vmatpush1.bf16.xpose.msra.mxu0 0
    %1967 = vmatprep.subr.bf16.mxu0 0
    %1968 = vmatpush1.bf16.xpose.msra.mxu0 0
    %1969 = vmatprep.subr.bf16.mxu0 0
    %1970 = vmatpush1.bf16.xpose.msra.mxu0 0
    %1971 = vmatprep.subr.bf16.mxu0 0
    %1972 = vmatpush1.bf16.xpose.msra.mxu0 0
    %1973 = vmatprep.subr.bf16.mxu0 0
    %1974 = vmatpush1.bf16.xpose.msra.mxu0 0
    %1975 = vmatprep.subr.bf16.mxu0 0
    %1976 = vmatpush1.bf16.xpose.msra.mxu0 0
    %1977 = vmatprep.subr.bf16.mxu0 0
    %1978 = vmatpush1.bf16.xpose.msra.mxu0 0
    %1979 = vmatprep.subr.bf16.mxu0 0
    %1980 = vmatpush1.bf16.xpose.msra.mxu0 0
    %1981 = vmatprep.subr.bf16.mxu0 0
    %1982 = vmatpush1.bf16.xpose.msra.mxu0 0
    %1983 = vmatprep.subr.bf16.mxu0 0
    %1984 = vmatpush1.bf16.xpose.msra.mxu0 0
    %1985 = vmatprep.subr.bf16.mxu0 0
    %1986 = vmatpush1.bf16.xpose.msra.mxu0 0
    %1987 = vmatprep.subr.bf16.mxu0 0
    %1988 = vmatpush1.bf16.xpose.msra.mxu0 0
    %1989 = vmatprep.mubr.bf16.mxu0 0
    %1990 = vmatmul.mubr.bf16.gmra.mrb[0].mxu0 %v1934
    %v1991 = vpop.f32.mrb[0].mxu0
    %v1992 = vadd.f32 0.0, %v1991
    %v1993 = vpop.f32.mrb[0].mxu0
    %v1994 = vpop.f32.mrb[0].mxu0
    %v1995 = vadd.f32 0.0, %v1994
    %v1996 = vpop.f32.mrb[0].mxu0
    %1997 = vmatprep.mubr.bf16.mxu0 0
    %1998 = vmatmul.mubr.bf16.gmra.mrb[0].mxu0 %v1937
    %v1999 = vpop.f32.mrb[0].mxu0
    %v2000 = vadd.f32 0.0, %v1999
    %v2001 = vpop.f32.mrb[0].mxu0
    %v2002 = vpop.f32.mrb[0].mxu0
    %v2003 = vadd.f32 0.0, %v2002
    %v2004 = vpop.f32.mrb[0].mxu0
    %2005 = vmatprep.mubr.bf16.mxu0 0
    %2006 = vmatmul.mubr.bf16.gmra.mrb[0].mxu0 %v1940
    %v2007 = vpop.f32.mrb[0].mxu0
    %v2008 = vadd.f32 0.0, %v2007
    %v2009 = vpop.f32.mrb[0].mxu0
    %v2010 = vpop.f32.mrb[0].mxu0
    %v2011 = vadd.f32 0.0, %v2010
    %v2012 = vpop.f32.mrb[0].mxu0
    %2013 = vmatprep.mubr.bf16.mxu0 0
    %2014 = vmatmul.mubr.bf16.gmra.mrb[0].mxu0 %v1943
    %v2015 = vpop.f32.mrb[0].mxu0
    %v2016 = vadd.f32 0.0, %v2015
    %v2017 = vpop.f32.mrb[0].mxu0
    %v2018 = vpop.f32.mrb[0].mxu0
    %v2019 = vadd.f32 0.0, %v2018
    %v2020 = vpop.f32.mrb[0].mxu0
    %2021 = vdwg.mxu0
    %2026 = vrot.lane.b32.xlu0 %v599, 124
    %v2027 = vpop.permute.xlu0 %2026
    %2028 = vrot.lane.b32.xlu0 %v600, 124
    %v2029 = vpop.permute.xlu0 %2028
    %2030 = vrot.lane.b32.xlu0 %v601, 124
    %v2031 = vpop.permute.xlu0 %2030
    %2032 = vrot.lane.b32.xlu0 %v602, 124
    %v2033 = vpop.permute.xlu0 %2032
    %v2035 = vsel %vm619, %v599, 0
    %v2038 = vsel %vm619, %v600, 0
    %v2041 = vsel %vm619, %v601, 0
    %v2044 = vsel %vm619, %v602, 0
    %v2047 = vsel %vm619, %v2027, 0
    %v2050 = vsel %vm619, %v2029, 0
    %v2053 = vsel %vm619, %v2031, 0
    %v2056 = vsel %vm619, %v2033, 0
    %2058 = vmatprep.subr.bf16.mxu0 0
    %2059 = vmatpush1.bf16.xpose.msra.mxu0 %v2047
    %2060 = vmatprep.subr.bf16.mxu0 0
    %2061 = vmatpush1.bf16.xpose.msra.mxu0 %v2050
    %2062 = vmatprep.subr.bf16.mxu0 0
    %2063 = vmatpush1.bf16.xpose.msra.mxu0 %v2053
    %2064 = vmatprep.subr.bf16.mxu0 0
    %2065 = vmatpush1.bf16.xpose.msra.mxu0 %v2056
    %2066 = vmatprep.subr.bf16.mxu0 0
    %2067 = vmatpush1.bf16.xpose.msra.mxu0 0
    %2068 = vmatprep.subr.bf16.mxu0 0
    %2069 = vmatpush1.bf16.xpose.msra.mxu0 0
    %2070 = vmatprep.subr.bf16.mxu0 0
    %2071 = vmatpush1.bf16.xpose.msra.mxu0 0
    %2072 = vmatprep.subr.bf16.mxu0 0
    %2073 = vmatpush1.bf16.xpose.msra.mxu0 0
    %2074 = vmatprep.subr.bf16.mxu0 0
    %2075 = vmatpush1.bf16.xpose.msra.mxu0 0
    %2076 = vmatprep.subr.bf16.mxu0 0
    %2077 = vmatpush1.bf16.xpose.msra.mxu0 0
    %2078 = vmatprep.subr.bf16.mxu0 0
    %2079 = vmatpush1.bf16.xpose.msra.mxu0 0
    %2080 = vmatprep.subr.bf16.mxu0 0
    %2081 = vmatpush1.bf16.xpose.msra.mxu0 0
    %2082 = vmatprep.subr.bf16.mxu0 0
    %2083 = vmatpush1.bf16.xpose.msra.mxu0 0
    %2084 = vmatprep.subr.bf16.mxu0 0
    %2085 = vmatpush1.bf16.xpose.msra.mxu0 0
    %2086 = vmatprep.subr.bf16.mxu0 0
    %2087 = vmatpush1.bf16.xpose.msra.mxu0 0
    %2088 = vmatprep.subr.bf16.mxu0 0
    %2089 = vmatpush1.bf16.xpose.msra.mxu0 0
    %2090 = vmatprep.mubr.bf16.mxu0 0
    %2091 = vmatmul.mubr.bf16.gmra.mrb[0].mxu0 %v2035
    %v2092 = vpop.f32.mrb[0].mxu0
    %v2093 = vadd.f32 0.0, %v2092
    %v2094 = vpop.f32.mrb[0].mxu0
    %v2095 = vpop.f32.mrb[0].mxu0
    %v2096 = vadd.f32 0.0, %v2095
    %v2097 = vpop.f32.mrb[0].mxu0
    %2098 = vmatprep.mubr.bf16.mxu0 0
    %2099 = vmatmul.mubr.bf16.gmra.mrb[0].mxu0 %v2038
    %v2100 = vpop.f32.mrb[0].mxu0
    %v2101 = vadd.f32 0.0, %v2100
    %v2102 = vpop.f32.mrb[0].mxu0
    %v2103 = vpop.f32.mrb[0].mxu0
    %v2104 = vadd.f32 0.0, %v2103
    %v2105 = vpop.f32.mrb[0].mxu0
    %2106 = vmatprep.mubr.bf16.mxu0 0
    %2107 = vmatmul.mubr.bf16.gmra.mrb[0].mxu0 %v2041
    %v2108 = vpop.f32.mrb[0].mxu0
    %v2109 = vadd.f32 0.0, %v2108
    %v2110 = vpop.f32.mrb[0].mxu0
    %v2111 = vpop.f32.mrb[0].mxu0
    %v2112 = vadd.f32 0.0, %v2111
    %v2113 = vpop.f32.mrb[0].mxu0
    %2114 = vmatprep.mubr.bf16.mxu0 0
    %2115 = vmatmul.mubr.bf16.gmra.mrb[0].mxu0 %v2044
    %v2116 = vpop.f32.mrb[0].mxu0
    %v2117 = vadd.f32 0.0, %v2116
    %v2118 = vpop.f32.mrb[0].mxu0
    %v2119 = vpop.f32.mrb[0].mxu0
    %v2120 = vadd.f32 0.0, %v2119
    %v2121 = vpop.f32.mrb[0].mxu0
    %2122 = vdwg.mxu0
    %2127 = vrot.lane.b32.xlu0 %v603, 124
    %v2128 = vpop.permute.xlu0 %2127
    %2129 = vrot.lane.b32.xlu0 %v604, 124
    %v2130 = vpop.permute.xlu0 %2129
    %2131 = vrot.lane.b32.xlu0 %v605, 124
    %v2132 = vpop.permute.xlu0 %2131
    %2133 = vrot.lane.b32.xlu0 %v606, 124
    %v2134 = vpop.permute.xlu0 %2133
    %v2136 = vsel %vm619, %v603, 0
    %v2139 = vsel %vm619, %v604, 0
    %v2142 = vsel %vm619, %v605, 0
    %v2145 = vsel %vm619, %v606, 0
    %v2148 = vsel %vm619, %v2128, 0
    %v2151 = vsel %vm619, %v2130, 0
    %v2154 = vsel %vm619, %v2132, 0
    %v2157 = vsel %vm619, %v2134, 0
    %2159 = vmatprep.subr.bf16.mxu0 0
    %2160 = vmatpush1.bf16.xpose.msra.mxu0 %v2148
    %2161 = vmatprep.subr.bf16.mxu0 0
    %2162 = vmatpush1.bf16.xpose.msra.mxu0 %v2151
    %2163 = vmatprep.subr.bf16.mxu0 0
    %2164 = vmatpush1.bf16.xpose.msra.mxu0 %v2154
    %2165 = vmatprep.subr.bf16.mxu0 0
    %2166 = vmatpush1.bf16.xpose.msra.mxu0 %v2157
    %2167 = vmatprep.subr.bf16.mxu0 0
    %2168 = vmatpush1.bf16.xpose.msra.mxu0 0
    %2169 = vmatprep.subr.bf16.mxu0 0
    %2170 = vmatpush1.bf16.xpose.msra.mxu0 0
    %2171 = vmatprep.subr.bf16.mxu0 0
    %2172 = vmatpush1.bf16.xpose.msra.mxu0 0
    %2173 = vmatprep.subr.bf16.mxu0 0
    %2174 = vmatpush1.bf16.xpose.msra.mxu0 0
    %2175 = vmatprep.subr.bf16.mxu0 0
    %2176 = vmatpush1.bf16.xpose.msra.mxu0 0
    %2177 = vmatprep.subr.bf16.mxu0 0
    %2178 = vmatpush1.bf16.xpose.msra.mxu0 0
    %2179 = vmatprep.subr.bf16.mxu0 0
    %2180 = vmatpush1.bf16.xpose.msra.mxu0 0
    %2181 = vmatprep.subr.bf16.mxu0 0
    %2182 = vmatpush1.bf16.xpose.msra.mxu0 0
    %2183 = vmatprep.subr.bf16.mxu0 0
    %2184 = vmatpush1.bf16.xpose.msra.mxu0 0
    %2185 = vmatprep.subr.bf16.mxu0 0
    %2186 = vmatpush1.bf16.xpose.msra.mxu0 0
    %2187 = vmatprep.subr.bf16.mxu0 0
    %2188 = vmatpush1.bf16.xpose.msra.mxu0 0
    %2189 = vmatprep.subr.bf16.mxu0 0
    %2190 = vmatpush1.bf16.xpose.msra.mxu0 0
    %2191 = vmatprep.mubr.bf16.mxu0 0
    %2192 = vmatmul.mubr.bf16.gmra.mrb[0].mxu0 %v2136
    %v2193 = vpop.f32.mrb[0].mxu0
    %v2194 = vadd.f32 0.0, %v2193
    %v2195 = vpop.f32.mrb[0].mxu0
    %v2196 = vpop.f32.mrb[0].mxu0
    %v2197 = vadd.f32 0.0, %v2196
    %v2198 = vpop.f32.mrb[0].mxu0
    %2199 = vmatprep.mubr.bf16.mxu0 0
    %2200 = vmatmul.mubr.bf16.gmra.mrb[0].mxu0 %v2139
    %v2201 = vpop.f32.mrb[0].mxu0
    %v2202 = vadd.f32 0.0, %v2201
    %v2203 = vpop.f32.mrb[0].mxu0
    %v2204 = vpop.f32.mrb[0].mxu0
    %v2205 = vadd.f32 0.0, %v2204
    %v2206 = vpop.f32.mrb[0].mxu0
    %2207 = vmatprep.mubr.bf16.mxu0 0
    %2208 = vmatmul.mubr.bf16.gmra.mrb[0].mxu0 %v2142
    %v2209 = vpop.f32.mrb[0].mxu0
    %v2210 = vadd.f32 0.0, %v2209
    %v2211 = vpop.f32.mrb[0].mxu0
    %v2212 = vpop.f32.mrb[0].mxu0
    %v2213 = vadd.f32 0.0, %v2212
    %v2214 = vpop.f32.mrb[0].mxu0
    %2215 = vmatprep.mubr.bf16.mxu0 0
    %2216 = vmatmul.mubr.bf16.gmra.mrb[0].mxu0 %v2145
    %v2217 = vpop.f32.mrb[0].mxu0
    %v2218 = vadd.f32 0.0, %v2217
    %v2219 = vpop.f32.mrb[0].mxu0
    %v2220 = vpop.f32.mrb[0].mxu0
    %v2221 = vadd.f32 0.0, %v2220
    %v2222 = vpop.f32.mrb[0].mxu0
    %2223 = vdwg.mxu0
    %vm2224 = vcmask 523264
    %v2225 = vsel %vm2224, %v679, -inf
    %2226 = vmax.xlane.f32.xlu0 %v2225
    %v2227 = vpop.xlane.xlu0 %2226
    %v2228 = vsel %vm2224, %v682, -inf
    %2229 = vmax.xlane.f32.xlu0 %v2228
    %v2230 = vpop.xlane.xlu0 %2229
    %v2231 = vsel %vm2224, %v687, -inf
    %2232 = vmax.xlane.f32.xlu0 %v2231
    %v2233 = vpop.xlane.xlu0 %2232
    %v2234 = vsel %vm2224, %v690, -inf
    %2235 = vmax.xlane.f32.xlu0 %v2234
    %v2236 = vpop.xlane.xlu0 %2235
    %v2237 = vsel %vm2224, %v695, -inf
    %2238 = vmax.xlane.f32.xlu0 %v2237
    %v2239 = vpop.xlane.xlu0 %2238
    %v2240 = vsel %vm2224, %v698, -inf
    %2241 = vmax.xlane.f32.xlu0 %v2240
    %v2242 = vpop.xlane.xlu0 %2241
    %v2243 = vsel %vm2224, %v703, -inf
    %2244 = vmax.xlane.f32.xlu0 %v2243
    %v2245 = vpop.xlane.xlu0 %2244
    %v2246 = vsel %vm2224, %v706, -inf
    %2247 = vmax.xlane.f32.xlu0 %v2246
    %v2248 = vpop.xlane.xlu0 %2247
    %v2249 = vsel %vm2224, %v780, -inf
    %2250 = vmax.xlane.f32.xlu0 %v2249
    %v2251 = vpop.xlane.xlu0 %2250
    %v2252 = vsel %vm2224, %v783, -inf
    %2253 = vmax.xlane.f32.xlu0 %v2252
    %v2254 = vpop.xlane.xlu0 %2253
    %v2255 = vsel %vm2224, %v788, -inf
    %2256 = vmax.xlane.f32.xlu0 %v2255
    %v2257 = vpop.xlane.xlu0 %2256
    %v2258 = vsel %vm2224, %v791, -inf
    %2259 = vmax.xlane.f32.xlu0 %v2258
    %v2260 = vpop.xlane.xlu0 %2259
    %v2261 = vsel %vm2224, %v796, -inf
    %2262 = vmax.xlane.f32.xlu0 %v2261
    %v2263 = vpop.xlane.xlu0 %2262
    %v2264 = vsel %vm2224, %v799, -inf
    %2265 = vmax.xlane.f32.xlu0 %v2264
    %v2266 = vpop.xlane.xlu0 %2265
    %v2267 = vsel %vm2224, %v804, -inf
    %2268 = vmax.xlane.f32.xlu0 %v2267
    %v2269 = vpop.xlane.xlu0 %2268
    %v2270 = vsel %vm2224, %v807, -inf
    %2271 = vmax.xlane.f32.xlu0 %v2270
    %v2272 = vpop.xlane.xlu0 %2271
    %v2273 = vsel %vm2224, %v881, -inf
    %2274 = vmax.xlane.f32.xlu0 %v2273
    %v2275 = vpop.xlane.xlu0 %2274
    %v2276 = vsel %vm2224, %v884, -inf
    %2277 = vmax.xlane.f32.xlu0 %v2276
    %v2278 = vpop.xlane.xlu0 %2277
    %v2279 = vsel %vm2224, %v889, -inf
    %2280 = vmax.xlane.f32.xlu0 %v2279
    %v2281 = vpop.xlane.xlu0 %2280
    %v2282 = vsel %vm2224, %v892, -inf
    %2283 = vmax.xlane.f32.xlu0 %v2282
    %v2284 = vpop.xlane.xlu0 %2283
    %v2285 = vsel %vm2224, %v897, -inf
    %2286 = vmax.xlane.f32.xlu0 %v2285
    %v2287 = vpop.xlane.xlu0 %2286
    %v2288 = vsel %vm2224, %v900, -inf
    %2289 = vmax.xlane.f32.xlu0 %v2288
    %v2290 = vpop.xlane.xlu0 %2289
    %v2291 = vsel %vm2224, %v905, -inf
    %2292 = vmax.xlane.f32.xlu0 %v2291
    %v2293 = vpop.xlane.xlu0 %2292
    %v2294 = vsel %vm2224, %v908, -inf
    %2295 = vmax.xlane.f32.xlu0 %v2294
    %v2296 = vpop.xlane.xlu0 %2295
    %v2297 = vsel %vm2224, %v982, -inf
    %2298 = vmax.xlane.f32.xlu0 %v2297
    %v2299 = vpop.xlane.xlu0 %2298
    %v2300 = vsel %vm2224, %v985, -inf
    %2301 = vmax.xlane.f32.xlu0 %v2300
    %v2302 = vpop.xlane.xlu0 %2301
    %v2303 = vsel %vm2224, %v990, -inf
    %2304 = vmax.xlane.f32.xlu0 %v2303
    %v2305 = vpop.xlane.xlu0 %2304
    %v2306 = vsel %vm2224, %v993, -inf
    %2307 = vmax.xlane.f32.xlu0 %v2306
    %v2308 = vpop.xlane.xlu0 %2307
    %v2309 = vsel %vm2224, %v998, -inf
    %2310 = vmax.xlane.f32.xlu0 %v2309
    %v2311 = vpop.xlane.xlu0 %2310
    %v2312 = vsel %vm2224, %v1001, -inf
    %2313 = vmax.xlane.f32.xlu0 %v2312
    %v2314 = vpop.xlane.xlu0 %2313
    %v2315 = vsel %vm2224, %v1006, -inf
    %2316 = vmax.xlane.f32.xlu0 %v2315
    %v2317 = vpop.xlane.xlu0 %2316
    %v2318 = vsel %vm2224, %v1009, -inf
    %2319 = vmax.xlane.f32.xlu0 %v2318
    %v2320 = vpop.xlane.xlu0 %2319
    %v2321 = vsel %vm2224, %v1083, -inf
    %2322 = vmax.xlane.f32.xlu0 %v2321
    %v2323 = vpop.xlane.xlu0 %2322
    %v2324 = vsel %vm2224, %v1086, -inf
    %2325 = vmax.xlane.f32.xlu0 %v2324
    %v2326 = vpop.xlane.xlu0 %2325
    %v2327 = vsel %vm2224, %v1091, -inf
    %2328 = vmax.xlane.f32.xlu0 %v2327
    %v2329 = vpop.xlane.xlu0 %2328
    %v2330 = vsel %vm2224, %v1094, -inf
    %2331 = vmax.xlane.f32.xlu0 %v2330
    %v2332 = vpop.xlane.xlu0 %2331
    %v2333 = vsel %vm2224, %v1099, -inf
    %2334 = vmax.xlane.f32.xlu0 %v2333
    %v2335 = vpop.xlane.xlu0 %2334
    %v2336 = vsel %vm2224, %v1102, -inf
    %2337 = vmax.xlane.f32.xlu0 %v2336
    %v2338 = vpop.xlane.xlu0 %2337
    %v2339 = vsel %vm2224, %v1107, -inf
    %2340 = vmax.xlane.f32.xlu0 %v2339
    %v2341 = vpop.xlane.xlu0 %2340
    %v2342 = vsel %vm2224, %v1110, -inf
    %2343 = vmax.xlane.f32.xlu0 %v2342
    %v2344 = vpop.xlane.xlu0 %2343
    %v2345 = vsel %vm2224, %v1184, -inf
    %2346 = vmax.xlane.f32.xlu0 %v2345
    %v2347 = vpop.xlane.xlu0 %2346
    %v2348 = vsel %vm2224, %v1187, -inf
    %2349 = vmax.xlane.f32.xlu0 %v2348
    %v2350 = vpop.xlane.xlu0 %2349
    %v2351 = vsel %vm2224, %v1192, -inf
    %2352 = vmax.xlane.f32.xlu0 %v2351
    %v2353 = vpop.xlane.xlu0 %2352
    %v2354 = vsel %vm2224, %v1195, -inf
    %2355 = vmax.xlane.f32.xlu0 %v2354
    %v2356 = vpop.xlane.xlu0 %2355
    %v2357 = vsel %vm2224, %v1200, -inf
    %2358 = vmax.xlane.f32.xlu0 %v2357
    %v2359 = vpop.xlane.xlu0 %2358
    %v2360 = vsel %vm2224, %v1203, -inf
    %2361 = vmax.xlane.f32.xlu0 %v2360
    %v2362 = vpop.xlane.xlu0 %2361
    %v2363 = vsel %vm2224, %v1208, -inf
    %2364 = vmax.xlane.f32.xlu0 %v2363
    %v2365 = vpop.xlane.xlu0 %2364
    %v2366 = vsel %vm2224, %v1211, -inf
    %2367 = vmax.xlane.f32.xlu0 %v2366
    %v2368 = vpop.xlane.xlu0 %2367
    %v2369 = vsel %vm2224, %v1285, -inf
    %2370 = vmax.xlane.f32.xlu0 %v2369
    %v2371 = vpop.xlane.xlu0 %2370
    %v2372 = vsel %vm2224, %v1288, -inf
    %2373 = vmax.xlane.f32.xlu0 %v2372
    %v2374 = vpop.xlane.xlu0 %2373
    %v2375 = vsel %vm2224, %v1293, -inf
    %2376 = vmax.xlane.f32.xlu0 %v2375
    %v2377 = vpop.xlane.xlu0 %2376
    %v2378 = vsel %vm2224, %v1296, -inf
    %2379 = vmax.xlane.f32.xlu0 %v2378
    %v2380 = vpop.xlane.xlu0 %2379
    %v2381 = vsel %vm2224, %v1301, -inf
    %2382 = vmax.xlane.f32.xlu0 %v2381
    %v2383 = vpop.xlane.xlu0 %2382
    %v2384 = vsel %vm2224, %v1304, -inf
    %2385 = vmax.xlane.f32.xlu0 %v2384
    %v2386 = vpop.xlane.xlu0 %2385
    %v2387 = vsel %vm2224, %v1309, -inf
    %2388 = vmax.xlane.f32.xlu0 %v2387
    %v2389 = vpop.xlane.xlu0 %2388
    %v2390 = vsel %vm2224, %v1312, -inf
    %2391 = vmax.xlane.f32.xlu0 %v2390
    %v2392 = vpop.xlane.xlu0 %2391
    %v2393 = vsel %vm2224, %v1386, -inf
    %2394 = vmax.xlane.f32.xlu0 %v2393
    %v2395 = vpop.xlane.xlu0 %2394
    %v2396 = vsel %vm2224, %v1389, -inf
    %2397 = vmax.xlane.f32.xlu0 %v2396
    %v2398 = vpop.xlane.xlu0 %2397
    %v2399 = vsel %vm2224, %v1394, -inf
    %2400 = vmax.xlane.f32.xlu0 %v2399
    %v2401 = vpop.xlane.xlu0 %2400
    %v2402 = vsel %vm2224, %v1397, -inf
    %2403 = vmax.xlane.f32.xlu0 %v2402
    %v2404 = vpop.xlane.xlu0 %2403
    %v2405 = vsel %vm2224, %v1402, -inf
    %2406 = vmax.xlane.f32.xlu0 %v2405
    %v2407 = vpop.xlane.xlu0 %2406
    %v2408 = vsel %vm2224, %v1405, -inf
    %2409 = vmax.xlane.f32.xlu0 %v2408
    %v2410 = vpop.xlane.xlu0 %2409
    %v2411 = vsel %vm2224, %v1410, -inf
    %2412 = vmax.xlane.f32.xlu0 %v2411
    %v2413 = vpop.xlane.xlu0 %2412
    %v2414 = vsel %vm2224, %v1413, -inf
    %2415 = vmax.xlane.f32.xlu0 %v2414
    %v2416 = vpop.xlane.xlu0 %2415
    %v2417 = vsel %vm2224, %v1487, -inf
    %2418 = vmax.xlane.f32.xlu0 %v2417
    %v2419 = vpop.xlane.xlu0 %2418
    %v2420 = vsel %vm2224, %v1490, -inf
    %2421 = vmax.xlane.f32.xlu0 %v2420
    %v2422 = vpop.xlane.xlu0 %2421
    %v2423 = vsel %vm2224, %v1495, -inf
    %2424 = vmax.xlane.f32.xlu0 %v2423
    %v2425 = vpop.xlane.xlu0 %2424
    %v2426 = vsel %vm2224, %v1498, -inf
    %2427 = vmax.xlane.f32.xlu0 %v2426
    %v2428 = vpop.xlane.xlu0 %2427
    %v2429 = vsel %vm2224, %v1503, -inf
    %2430 = vmax.xlane.f32.xlu0 %v2429
    %v2431 = vpop.xlane.xlu0 %2430
    %v2432 = vsel %vm2224, %v1506, -inf
    %2433 = vmax.xlane.f32.xlu0 %v2432
    %v2434 = vpop.xlane.xlu0 %2433
    %v2435 = vsel %vm2224, %v1511, -inf
    %2436 = vmax.xlane.f32.xlu0 %v2435
    %v2437 = vpop.xlane.xlu0 %2436
    %v2438 = vsel %vm2224, %v1514, -inf
    %2439 = vmax.xlane.f32.xlu0 %v2438
    %v2440 = vpop.xlane.xlu0 %2439
    %v2441 = vsel %vm2224, %v1588, -inf
    %2442 = vmax.xlane.f32.xlu0 %v2441
    %v2443 = vpop.xlane.xlu0 %2442
    %v2444 = vsel %vm2224, %v1591, -inf
    %2445 = vmax.xlane.f32.xlu0 %v2444
    %v2446 = vpop.xlane.xlu0 %2445
    %v2447 = vsel %vm2224, %v1596, -inf
    %2448 = vmax.xlane.f32.xlu0 %v2447
    %v2449 = vpop.xlane.xlu0 %2448
    %v2450 = vsel %vm2224, %v1599, -inf
    %2451 = vmax.xlane.f32.xlu0 %v2450
    %v2452 = vpop.xlane.xlu0 %2451
    %v2453 = vsel %vm2224, %v1604, -inf
    %2454 = vmax.xlane.f32.xlu0 %v2453
    %v2455 = vpop.xlane.xlu0 %2454
    %v2456 = vsel %vm2224, %v1607, -inf
    %2457 = vmax.xlane.f32.xlu0 %v2456
    %v2458 = vpop.xlane.xlu0 %2457
    %v2459 = vsel %vm2224, %v1612, -inf
    %2460 = vmax.xlane.f32.xlu0 %v2459
    %v2461 = vpop.xlane.xlu0 %2460
    %v2462 = vsel %vm2224, %v1615, -inf
    %2463 = vmax.xlane.f32.xlu0 %v2462
    %v2464 = vpop.xlane.xlu0 %2463
    %v2465 = vsel %vm2224, %v1689, -inf
    %2466 = vmax.xlane.f32.xlu0 %v2465
    %v2467 = vpop.xlane.xlu0 %2466
    %v2468 = vsel %vm2224, %v1692, -inf
    %2469 = vmax.xlane.f32.xlu0 %v2468
    %v2470 = vpop.xlane.xlu0 %2469
    %v2471 = vsel %vm2224, %v1697, -inf
    %2472 = vmax.xlane.f32.xlu0 %v2471
    %v2473 = vpop.xlane.xlu0 %2472
    %v2474 = vsel %vm2224, %v1700, -inf
    %2475 = vmax.xlane.f32.xlu0 %v2474
    %v2476 = vpop.xlane.xlu0 %2475
    %v2477 = vsel %vm2224, %v1705, -inf
    %2478 = vmax.xlane.f32.xlu0 %v2477
    %v2479 = vpop.xlane.xlu0 %2478
    %v2480 = vsel %vm2224, %v1708, -inf
    %2481 = vmax.xlane.f32.xlu0 %v2480
    %v2482 = vpop.xlane.xlu0 %2481
    %v2483 = vsel %vm2224, %v1713, -inf
    %2484 = vmax.xlane.f32.xlu0 %v2483
    %v2485 = vpop.xlane.xlu0 %2484
    %v2486 = vsel %vm2224, %v1716, -inf
    %2487 = vmax.xlane.f32.xlu0 %v2486
    %v2488 = vpop.xlane.xlu0 %2487
    %v2489 = vsel %vm2224, %v1790, -inf
    %2490 = vmax.xlane.f32.xlu0 %v2489
    %v2491 = vpop.xlane.xlu0 %2490
    %v2492 = vsel %vm2224, %v1793, -inf
    %2493 = vmax.xlane.f32.xlu0 %v2492
    %v2494 = vpop.xlane.xlu0 %2493
    %v2495 = vsel %vm2224, %v1798, -inf
    %2496 = vmax.xlane.f32.xlu0 %v2495
    %v2497 = vpop.xlane.xlu0 %2496
    %v2498 = vsel %vm2224, %v1801, -inf
    %2499 = vmax.xlane.f32.xlu0 %v2498
    %v2500 = vpop.xlane.xlu0 %2499
    %v2501 = vsel %vm2224, %v1806, -inf
    %2502 = vmax.xlane.f32.xlu0 %v2501
    %v2503 = vpop.xlane.xlu0 %2502
    %v2504 = vsel %vm2224, %v1809, -inf
    %2505 = vmax.xlane.f32.xlu0 %v2504
    %v2506 = vpop.xlane.xlu0 %2505
    %v2507 = vsel %vm2224, %v1814, -inf
    %2508 = vmax.xlane.f32.xlu0 %v2507
    %v2509 = vpop.xlane.xlu0 %2508
    %v2510 = vsel %vm2224, %v1817, -inf
    %2511 = vmax.xlane.f32.xlu0 %v2510
    %v2512 = vpop.xlane.xlu0 %2511
    %v2513 = vsel %vm2224, %v1891, -inf
    %2514 = vmax.xlane.f32.xlu0 %v2513
    %v2515 = vpop.xlane.xlu0 %2514
    %v2516 = vsel %vm2224, %v1894, -inf
    %2517 = vmax.xlane.f32.xlu0 %v2516
    %v2518 = vpop.xlane.xlu0 %2517
    %v2519 = vsel %vm2224, %v1899, -inf
    %2520 = vmax.xlane.f32.xlu0 %v2519
    %v2521 = vpop.xlane.xlu0 %2520
    %v2522 = vsel %vm2224, %v1902, -inf
    %2523 = vmax.xlane.f32.xlu0 %v2522
    %v2524 = vpop.xlane.xlu0 %2523
    %v2525 = vsel %vm2224, %v1907, -inf
    %2526 = vmax.xlane.f32.xlu0 %v2525
    %v2527 = vpop.xlane.xlu0 %2526
    %v2528 = vsel %vm2224, %v1910, -inf
    %2529 = vmax.xlane.f32.xlu0 %v2528
    %v2530 = vpop.xlane.xlu0 %2529
    %v2531 = vsel %vm2224, %v1915, -inf
    %2532 = vmax.xlane.f32.xlu0 %v2531
    %v2533 = vpop.xlane.xlu0 %2532
    %v2534 = vsel %vm2224, %v1918, -inf
    %2535 = vmax.xlane.f32.xlu0 %v2534
    %v2536 = vpop.xlane.xlu0 %2535
    %v2537 = vsel %vm2224, %v1992, -inf
    %2538 = vmax.xlane.f32.xlu0 %v2537
    %v2539 = vpop.xlane.xlu0 %2538
    %v2540 = vsel %vm2224, %v1995, -inf
    %2541 = vmax.xlane.f32.xlu0 %v2540
    %v2542 = vpop.xlane.xlu0 %2541
    %v2543 = vsel %vm2224, %v2000, -inf
    %2544 = vmax.xlane.f32.xlu0 %v2543
    %v2545 = vpop.xlane.xlu0 %2544
    %v2546 = vsel %vm2224, %v2003, -inf
    %2547 = vmax.xlane.f32.xlu0 %v2546
    %v2548 = vpop.xlane.xlu0 %2547
    %v2549 = vsel %vm2224, %v2008, -inf
    %2550 = vmax.xlane.f32.xlu0 %v2549
    %v2551 = vpop.xlane.xlu0 %2550
    %v2552 = vsel %vm2224, %v2011, -inf
    %2553 = vmax.xlane.f32.xlu0 %v2552
    %v2554 = vpop.xlane.xlu0 %2553
    %v2555 = vsel %vm2224, %v2016, -inf
    %2556 = vmax.xlane.f32.xlu0 %v2555
    %v2557 = vpop.xlane.xlu0 %2556
    %v2558 = vsel %vm2224, %v2019, -inf
    %2559 = vmax.xlane.f32.xlu0 %v2558
    %v2560 = vpop.xlane.xlu0 %2559
    %v2561 = vsel %vm2224, %v2093, -inf
    %2562 = vmax.xlane.f32.xlu0 %v2561
    %v2563 = vpop.xlane.xlu0 %2562
    %v2564 = vsel %vm2224, %v2096, -inf
    %2565 = vmax.xlane.f32.xlu0 %v2564
    %v2566 = vpop.xlane.xlu0 %2565
    %v2567 = vsel %vm2224, %v2101, -inf
    %2568 = vmax.xlane.f32.xlu0 %v2567
    %v2569 = vpop.xlane.xlu0 %2568
    %v2570 = vsel %vm2224, %v2104, -inf
    %2571 = vmax.xlane.f32.xlu0 %v2570
    %v2572 = vpop.xlane.xlu0 %2571
    %v2573 = vsel %vm2224, %v2109, -inf
    %2574 = vmax.xlane.f32.xlu0 %v2573
    %v2575 = vpop.xlane.xlu0 %2574
    %v2576 = vsel %vm2224, %v2112, -inf
    %2577 = vmax.xlane.f32.xlu0 %v2576
    %v2578 = vpop.xlane.xlu0 %2577
    %v2579 = vsel %vm2224, %v2117, -inf
    %2580 = vmax.xlane.f32.xlu0 %v2579
    %v2581 = vpop.xlane.xlu0 %2580
    %v2582 = vsel %vm2224, %v2120, -inf
    %2583 = vmax.xlane.f32.xlu0 %v2582
    %v2584 = vpop.xlane.xlu0 %2583
    %v2585 = vsel %vm2224, %v2194, -inf
    %2586 = vmax.xlane.f32.xlu0 %v2585
    %v2587 = vpop.xlane.xlu0 %2586
    %v2588 = vsel %vm2224, %v2197, -inf
    %2589 = vmax.xlane.f32.xlu0 %v2588
    %v2590 = vpop.xlane.xlu0 %2589
    %v2591 = vsel %vm2224, %v2202, -inf
    %2592 = vmax.xlane.f32.xlu0 %v2591
    %v2593 = vpop.xlane.xlu0 %2592
    %v2594 = vsel %vm2224, %v2205, -inf
    %2595 = vmax.xlane.f32.xlu0 %v2594
    %v2596 = vpop.xlane.xlu0 %2595
    %v2597 = vsel %vm2224, %v2210, -inf
    %2598 = vmax.xlane.f32.xlu0 %v2597
    %v2599 = vpop.xlane.xlu0 %2598
    %v2600 = vsel %vm2224, %v2213, -inf
    %2601 = vmax.xlane.f32.xlu0 %v2600
    %v2602 = vpop.xlane.xlu0 %2601
    %v2603 = vsel %vm2224, %v2218, -inf
    %2604 = vmax.xlane.f32.xlu0 %v2603
    %v2605 = vpop.xlane.xlu0 %2604
    %v2606 = vsel %vm2224, %v2221, -inf
    %2607 = vmax.xlane.f32.xlu0 %v2606
    %v2608 = vpop.xlane.xlu0 %2607
    %v2609 = vsub.f32 %v679, %v2227
    %v2610 = vsub.f32 %v682, %v2230
    %v2611 = vsub.f32 %v687, %v2233
    %v2612 = vsub.f32 %v690, %v2236
    %v2613 = vsub.f32 %v695, %v2239
    %v2614 = vsub.f32 %v698, %v2242
    %v2615 = vsub.f32 %v703, %v2245
    %v2616 = vsub.f32 %v706, %v2248
    %v2617 = vsub.f32 %v780, %v2251
    %v2618 = vsub.f32 %v783, %v2254
    %v2619 = vsub.f32 %v788, %v2257
    %v2620 = vsub.f32 %v791, %v2260
    %v2621 = vsub.f32 %v796, %v2263
    %v2622 = vsub.f32 %v799, %v2266
    %v2623 = vsub.f32 %v804, %v2269
    %v2624 = vsub.f32 %v807, %v2272
    %v2625 = vsub.f32 %v881, %v2275
    %v2626 = vsub.f32 %v884, %v2278
    %v2627 = vsub.f32 %v889, %v2281
    %v2628 = vsub.f32 %v892, %v2284
    %v2629 = vsub.f32 %v897, %v2287
    %v2630 = vsub.f32 %v900, %v2290
    %v2631 = vsub.f32 %v905, %v2293
    %v2632 = vsub.f32 %v908, %v2296
    %v2633 = vsub.f32 %v982, %v2299
    %v2634 = vsub.f32 %v985, %v2302
    %v2635 = vsub.f32 %v990, %v2305
    %v2636 = vsub.f32 %v993, %v2308
    %v2637 = vsub.f32 %v998, %v2311
    %v2638 = vsub.f32 %v1001, %v2314
    %v2639 = vsub.f32 %v1006, %v2317
    %v2640 = vsub.f32 %v1009, %v2320
    %v2641 = vsub.f32 %v1083, %v2323
    %v2642 = vsub.f32 %v1086, %v2326
    %v2643 = vsub.f32 %v1091, %v2329
    %v2644 = vsub.f32 %v1094, %v2332
    %v2645 = vsub.f32 %v1099, %v2335
    %v2646 = vsub.f32 %v1102, %v2338
    %v2647 = vsub.f32 %v1107, %v2341
    %v2648 = vsub.f32 %v1110, %v2344
    %v2649 = vsub.f32 %v1184, %v2347
    %v2650 = vsub.f32 %v1187, %v2350
    %v2651 = vsub.f32 %v1192, %v2353
    %v2652 = vsub.f32 %v1195, %v2356
    %v2653 = vsub.f32 %v1200, %v2359
    %v2654 = vsub.f32 %v1203, %v2362
    %v2655 = vsub.f32 %v1208, %v2365
    %v2656 = vsub.f32 %v1211, %v2368
    %v2657 = vsub.f32 %v1285, %v2371
    %v2658 = vsub.f32 %v1288, %v2374
    %v2659 = vsub.f32 %v1293, %v2377
    %v2660 = vsub.f32 %v1296, %v2380
    %v2661 = vsub.f32 %v1301, %v2383
    %v2662 = vsub.f32 %v1304, %v2386
    %v2663 = vsub.f32 %v1309, %v2389
    %v2664 = vsub.f32 %v1312, %v2392
    %v2665 = vsub.f32 %v1386, %v2395
    %v2666 = vsub.f32 %v1389, %v2398
    %v2667 = vsub.f32 %v1394, %v2401
    %v2668 = vsub.f32 %v1397, %v2404
    %v2669 = vsub.f32 %v1402, %v2407
    %v2670 = vsub.f32 %v1405, %v2410
    %v2671 = vsub.f32 %v1410, %v2413
    %v2672 = vsub.f32 %v1413, %v2416
    %v2673 = vsub.f32 %v1487, %v2419
    %v2674 = vsub.f32 %v1490, %v2422
    %v2675 = vsub.f32 %v1495, %v2425
    %v2676 = vsub.f32 %v1498, %v2428
    %v2677 = vsub.f32 %v1503, %v2431
    %v2678 = vsub.f32 %v1506, %v2434
    %v2679 = vsub.f32 %v1511, %v2437
    %v2680 = vsub.f32 %v1514, %v2440
    %v2681 = vsub.f32 %v1588, %v2443
    %v2682 = vsub.f32 %v1591, %v2446
    %v2683 = vsub.f32 %v1596, %v2449
    %v2684 = vsub.f32 %v1599, %v2452
    %v2685 = vsub.f32 %v1604, %v2455
    %v2686 = vsub.f32 %v1607, %v2458
    %v2687 = vsub.f32 %v1612, %v2461
    %v2688 = vsub.f32 %v1615, %v2464
    %v2689 = vsub.f32 %v1689, %v2467
    %v2690 = vsub.f32 %v1692, %v2470
    %v2691 = vsub.f32 %v1697, %v2473
    %v2692 = vsub.f32 %v1700, %v2476
    %v2693 = vsub.f32 %v1705, %v2479
    %v2694 = vsub.f32 %v1708, %v2482
    %v2695 = vsub.f32 %v1713, %v2485
    %v2696 = vsub.f32 %v1716, %v2488
    %v2697 = vsub.f32 %v1790, %v2491
    %v2698 = vsub.f32 %v1793, %v2494
    %v2699 = vsub.f32 %v1798, %v2497
    %v2700 = vsub.f32 %v1801, %v2500
    %v2701 = vsub.f32 %v1806, %v2503
    %v2702 = vsub.f32 %v1809, %v2506
    %v2703 = vsub.f32 %v1814, %v2509
    %v2704 = vsub.f32 %v1817, %v2512
    %v2705 = vsub.f32 %v1891, %v2515
    %v2706 = vsub.f32 %v1894, %v2518
    %v2707 = vsub.f32 %v1899, %v2521
    %v2708 = vsub.f32 %v1902, %v2524
    %v2709 = vsub.f32 %v1907, %v2527
    %v2710 = vsub.f32 %v1910, %v2530
    %v2711 = vsub.f32 %v1915, %v2533
    %v2712 = vsub.f32 %v1918, %v2536
    %v2713 = vsub.f32 %v1992, %v2539
    %v2714 = vsub.f32 %v1995, %v2542
    %v2715 = vsub.f32 %v2000, %v2545
    %v2716 = vsub.f32 %v2003, %v2548
    %v2717 = vsub.f32 %v2008, %v2551
    %v2718 = vsub.f32 %v2011, %v2554
    %v2719 = vsub.f32 %v2016, %v2557
    %v2720 = vsub.f32 %v2019, %v2560
    %v2721 = vsub.f32 %v2093, %v2563
    %v2722 = vsub.f32 %v2096, %v2566
    %v2723 = vsub.f32 %v2101, %v2569
    %v2724 = vsub.f32 %v2104, %v2572
    %v2725 = vsub.f32 %v2109, %v2575
    %v2726 = vsub.f32 %v2112, %v2578
    %v2727 = vsub.f32 %v2117, %v2581
    %v2728 = vsub.f32 %v2120, %v2584
    %v2729 = vsub.f32 %v2194, %v2587
    %v2730 = vsub.f32 %v2197, %v2590
    %v2731 = vsub.f32 %v2202, %v2593
    %v2732 = vsub.f32 %v2205, %v2596
    %v2733 = vsub.f32 %v2210, %v2599
    %v2734 = vsub.f32 %v2213, %v2602
    %v2735 = vsub.f32 %v2218, %v2605
    %v2736 = vsub.f32 %v2221, %v2608
    %v2737 = vmul.f32 %v2609, 1.442695
    %v2738 = vpow.pop %v2737
    %v2739 = vmul.f32 %v2610, 1.442695
    %v2740 = vpow.pop %v2739
    %v2741 = vmul.f32 %v2611, 1.442695
    %v2742 = vpow.pop %v2741
    %v2743 = vmul.f32 %v2612, 1.442695
    %v2744 = vpow.pop %v2743
    %v2745 = vmul.f32 %v2613, 1.442695
    %v2746 = vpow.pop %v2745
    %v2747 = vmul.f32 %v2614, 1.442695
    %v2748 = vpow.pop %v2747
    %v2749 = vmul.f32 %v2615, 1.442695
    %v2750 = vpow.pop %v2749
    %v2751 = vmul.f32 %v2616, 1.442695
    %v2752 = vpow.pop %v2751
    %v2753 = vmul.f32 %v2617, 1.442695
    %v2754 = vpow.pop %v2753
    %v2755 = vmul.f32 %v2618, 1.442695
    %v2756 = vpow.pop %v2755
    %v2757 = vmul.f32 %v2619, 1.442695
    %v2758 = vpow.pop %v2757
    %v2759 = vmul.f32 %v2620, 1.442695
    %v2760 = vpow.pop %v2759
    %v2761 = vmul.f32 %v2621, 1.442695
    %v2762 = vpow.pop %v2761
    %v2763 = vmul.f32 %v2622, 1.442695
    %v2764 = vpow.pop %v2763
    %v2765 = vmul.f32 %v2623, 1.442695
    %v2766 = vpow.pop %v2765
    %v2767 = vmul.f32 %v2624, 1.442695
    %v2768 = vpow.pop %v2767
    %v2769 = vmul.f32 %v2625, 1.442695
    %v2770 = vpow.pop %v2769
    %v2771 = vmul.f32 %v2626, 1.442695
    %v2772 = vpow.pop %v2771
    %v2773 = vmul.f32 %v2627, 1.442695
    %v2774 = vpow.pop %v2773
    %v2775 = vmul.f32 %v2628, 1.442695
    %v2776 = vpow.pop %v2775
    %v2777 = vmul.f32 %v2629, 1.442695
    %v2778 = vpow.pop %v2777
    %v2779 = vmul.f32 %v2630, 1.442695
    %v2780 = vpow.pop %v2779
    %v2781 = vmul.f32 %v2631, 1.442695
    %v2782 = vpow.pop %v2781
    %v2783 = vmul.f32 %v2632, 1.442695
    %v2784 = vpow.pop %v2783
    %v2785 = vmul.f32 %v2633, 1.442695
    %v2786 = vpow.pop %v2785
    %v2787 = vmul.f32 %v2634, 1.442695
    %v2788 = vpow.pop %v2787
    %v2789 = vmul.f32 %v2635, 1.442695
    %v2790 = vpow.pop %v2789
    %v2791 = vmul.f32 %v2636, 1.442695
    %v2792 = vpow.pop %v2791
    %v2793 = vmul.f32 %v2637, 1.442695
    %v2794 = vpow.pop %v2793
    %v2795 = vmul.f32 %v2638, 1.442695
    %v2796 = vpow.pop %v2795
    %v2797 = vmul.f32 %v2639, 1.442695
    %v2798 = vpow.pop %v2797
    %v2799 = vmul.f32 %v2640, 1.442695
    %v2800 = vpow.pop %v2799
    %v2801 = vmul.f32 %v2641, 1.442695
    %v2802 = vpow.pop %v2801
    %v2803 = vmul.f32 %v2642, 1.442695
    %v2804 = vpow.pop %v2803
    %v2805 = vmul.f32 %v2643, 1.442695
    %v2806 = vpow.pop %v2805
    %v2807 = vmul.f32 %v2644, 1.442695
    %v2808 = vpow.pop %v2807
    %v2809 = vmul.f32 %v2645, 1.442695
    %v2810 = vpow.pop %v2809
    %v2811 = vmul.f32 %v2646, 1.442695
    %v2812 = vpow.pop %v2811
    %v2813 = vmul.f32 %v2647, 1.442695
    %v2814 = vpow.pop %v2813
    %v2815 = vmul.f32 %v2648, 1.442695
    %v2816 = vpow.pop %v2815
    %v2817 = vmul.f32 %v2649, 1.442695
    %v2818 = vpow.pop %v2817
    %v2819 = vmul.f32 %v2650, 1.442695
    %v2820 = vpow.pop %v2819
    %v2821 = vmul.f32 %v2651, 1.442695
    %v2822 = vpow.pop %v2821
    %v2823 = vmul.f32 %v2652, 1.442695
    %v2824 = vpow.pop %v2823
    %v2825 = vmul.f32 %v2653, 1.442695
    %v2826 = vpow.pop %v2825
    %v2827 = vmul.f32 %v2654, 1.442695
    %v2828 = vpow.pop %v2827
    %v2829 = vmul.f32 %v2655, 1.442695
    %v2830 = vpow.pop %v2829
    %v2831 = vmul.f32 %v2656, 1.442695
    %v2832 = vpow.pop %v2831
    %v2833 = vmul.f32 %v2657, 1.442695
    %v2834 = vpow.pop %v2833
    %v2835 = vmul.f32 %v2658, 1.442695
    %v2836 = vpow.pop %v2835
    %v2837 = vmul.f32 %v2659, 1.442695
    %v2838 = vpow.pop %v2837
    %v2839 = vmul.f32 %v2660, 1.442695
    %v2840 = vpow.pop %v2839
    %v2841 = vmul.f32 %v2661, 1.442695
    %v2842 = vpow.pop %v2841
    %v2843 = vmul.f32 %v2662, 1.442695
    %v2844 = vpow.pop %v2843
    %v2845 = vmul.f32 %v2663, 1.442695
    %v2846 = vpow.pop %v2845
    %v2847 = vmul.f32 %v2664, 1.442695
    %v2848 = vpow.pop %v2847
    %v2849 = vmul.f32 %v2665, 1.442695
    %v2850 = vpow.pop %v2849
    %v2851 = vmul.f32 %v2666, 1.442695
    %v2852 = vpow.pop %v2851
    %v2853 = vmul.f32 %v2667, 1.442695
    %v2854 = vpow.pop %v2853
    %v2855 = vmul.f32 %v2668, 1.442695
    %v2856 = vpow.pop %v2855
    %v2857 = vmul.f32 %v2669, 1.442695
    %v2858 = vpow.pop %v2857
    %v2859 = vmul.f32 %v2670, 1.442695
    %v2860 = vpow.pop %v2859
    %v2861 = vmul.f32 %v2671, 1.442695
    %v2862 = vpow.pop %v2861
    %v2863 = vmul.f32 %v2672, 1.442695
    %v2864 = vpow.pop %v2863
    %v2865 = vmul.f32 %v2673, 1.442695
    %v2866 = vpow.pop %v2865
    %v2867 = vmul.f32 %v2674, 1.442695
    %v2868 = vpow.pop %v2867
    %v2869 = vmul.f32 %v2675, 1.442695
    %v2870 = vpow.pop %v2869
    %v2871 = vmul.f32 %v2676, 1.442695
    %v2872 = vpow.pop %v2871
    %v2873 = vmul.f32 %v2677, 1.442695
    %v2874 = vpow.pop %v2873
    %v2875 = vmul.f32 %v2678, 1.442695
    %v2876 = vpow.pop %v2875
    %v2877 = vmul.f32 %v2679, 1.442695
    %v2878 = vpow.pop %v2877
    %v2879 = vmul.f32 %v2680, 1.442695
    %v2880 = vpow.pop %v2879
    %v2881 = vmul.f32 %v2681, 1.442695
    %v2882 = vpow.pop %v2881
    %v2883 = vmul.f32 %v2682, 1.442695
    %v2884 = vpow.pop %v2883
    %v2885 = vmul.f32 %v2683, 1.442695
    %v2886 = vpow.pop %v2885
    %v2887 = vmul.f32 %v2684, 1.442695
    %v2888 = vpow.pop %v2887
    %v2889 = vmul.f32 %v2685, 1.442695
    %v2890 = vpow.pop %v2889
    %v2891 = vmul.f32 %v2686, 1.442695
    %v2892 = vpow.pop %v2891
    %v2893 = vmul.f32 %v2687, 1.442695
    %v2894 = vpow.pop %v2893
    %v2895 = vmul.f32 %v2688, 1.442695
    %v2896 = vpow.pop %v2895
    %v2897 = vmul.f32 %v2689, 1.442695
    %v2898 = vpow.pop %v2897
    %v2899 = vmul.f32 %v2690, 1.442695
    %v2900 = vpow.pop %v2899
    %v2901 = vmul.f32 %v2691, 1.442695
    %v2902 = vpow.pop %v2901
    %v2903 = vmul.f32 %v2692, 1.442695
    %v2904 = vpow.pop %v2903
    %v2905 = vmul.f32 %v2693, 1.442695
    %v2906 = vpow.pop %v2905
    %v2907 = vmul.f32 %v2694, 1.442695
    %v2908 = vpow.pop %v2907
    %v2909 = vmul.f32 %v2695, 1.442695
    %v2910 = vpow.pop %v2909
    %v2911 = vmul.f32 %v2696, 1.442695
    %v2912 = vpow.pop %v2911
    %v2913 = vmul.f32 %v2697, 1.442695
    %v2914 = vpow.pop %v2913
    %v2915 = vmul.f32 %v2698, 1.442695
    %v2916 = vpow.pop %v2915
    %v2917 = vmul.f32 %v2699, 1.442695
    %v2918 = vpow.pop %v2917
    %v2919 = vmul.f32 %v2700, 1.442695
    %v2920 = vpow.pop %v2919
    %v2921 = vmul.f32 %v2701, 1.442695
    %v2922 = vpow.pop %v2921
    %v2923 = vmul.f32 %v2702, 1.442695
    %v2924 = vpow.pop %v2923
    %v2925 = vmul.f32 %v2703, 1.442695
    %v2926 = vpow.pop %v2925
    %v2927 = vmul.f32 %v2704, 1.442695
    %v2928 = vpow.pop %v2927
    %v2929 = vmul.f32 %v2705, 1.442695
    %v2930 = vpow.pop %v2929
    %v2931 = vmul.f32 %v2706, 1.442695
    %v2932 = vpow.pop %v2931
    %v2933 = vmul.f32 %v2707, 1.442695
    %v2934 = vpow.pop %v2933
    %v2935 = vmul.f32 %v2708, 1.442695
    %v2936 = vpow.pop %v2935
    %v2937 = vmul.f32 %v2709, 1.442695
    %v2938 = vpow.pop %v2937
    %v2939 = vmul.f32 %v2710, 1.442695
    %v2940 = vpow.pop %v2939
    %v2941 = vmul.f32 %v2711, 1.442695
    %v2942 = vpow.pop %v2941
    %v2943 = vmul.f32 %v2712, 1.442695
    %v2944 = vpow.pop %v2943
    %v2945 = vmul.f32 %v2713, 1.442695
    %v2946 = vpow.pop %v2945
    %v2947 = vmul.f32 %v2714, 1.442695
    %v2948 = vpow.pop %v2947
    %v2949 = vmul.f32 %v2715, 1.442695
    %v2950 = vpow.pop %v2949
    %v2951 = vmul.f32 %v2716, 1.442695
    %v2952 = vpow.pop %v2951
    %v2953 = vmul.f32 %v2717, 1.442695
    %v2954 = vpow.pop %v2953
    %v2955 = vmul.f32 %v2718, 1.442695
    %v2956 = vpow.pop %v2955
    %v2957 = vmul.f32 %v2719, 1.442695
    %v2958 = vpow.pop %v2957
    %v2959 = vmul.f32 %v2720, 1.442695
    %v2960 = vpow.pop %v2959
    %v2961 = vmul.f32 %v2721, 1.442695
    %v2962 = vpow.pop %v2961
    %v2963 = vmul.f32 %v2722, 1.442695
    %v2964 = vpow.pop %v2963
    %v2965 = vmul.f32 %v2723, 1.442695
    %v2966 = vpow.pop %v2965
    %v2967 = vmul.f32 %v2724, 1.442695
    %v2968 = vpow.pop %v2967
    %v2969 = vmul.f32 %v2725, 1.442695
    %v2970 = vpow.pop %v2969
    %v2971 = vmul.f32 %v2726, 1.442695
    %v2972 = vpow.pop %v2971
    %v2973 = vmul.f32 %v2727, 1.442695
    %v2974 = vpow.pop %v2973
    %v2975 = vmul.f32 %v2728, 1.442695
    %v2976 = vpow.pop %v2975
    %v2977 = vmul.f32 %v2729, 1.442695
    %v2978 = vpow.pop %v2977
    %v2979 = vmul.f32 %v2730, 1.442695
    %v2980 = vpow.pop %v2979
    %v2981 = vmul.f32 %v2731, 1.442695
    %v2982 = vpow.pop %v2981
    %v2983 = vmul.f32 %v2732, 1.442695
    %v2984 = vpow.pop %v2983
    %v2985 = vmul.f32 %v2733, 1.442695
    %v2986 = vpow.pop %v2985
    %v2987 = vmul.f32 %v2734, 1.442695
    %v2988 = vpow.pop %v2987
    %v2989 = vmul.f32 %v2735, 1.442695
    %v2990 = vpow.pop %v2989
    %v2991 = vmul.f32 %v2736, 1.442695
    %v2992 = vpow.pop %v2991
    %v2993 = vsel %vm2224, %v2738, 0.0
    %2994 = vadd.xlane.f32.xlu0 %v2993
    %v2995 = vpop.xlane.xlu0 %2994
    %v2996 = vsel %vm2224, %v2740, 0.0
    %2997 = vadd.xlane.f32.xlu0 %v2996
    %v2998 = vpop.xlane.xlu0 %2997
    %v2999 = vsel %vm2224, %v2742, 0.0
    %3000 = vadd.xlane.f32.xlu0 %v2999
    %v3001 = vpop.xlane.xlu0 %3000
    %v3002 = vsel %vm2224, %v2744, 0.0
    %3003 = vadd.xlane.f32.xlu0 %v3002
    %v3004 = vpop.xlane.xlu0 %3003
    %v3005 = vsel %vm2224, %v2746, 0.0
    %3006 = vadd.xlane.f32.xlu0 %v3005
    %v3007 = vpop.xlane.xlu0 %3006
    %v3008 = vsel %vm2224, %v2748, 0.0
    %3009 = vadd.xlane.f32.xlu0 %v3008
    %v3010 = vpop.xlane.xlu0 %3009
    %v3011 = vsel %vm2224, %v2750, 0.0
    %3012 = vadd.xlane.f32.xlu0 %v3011
    %v3013 = vpop.xlane.xlu0 %3012
    %v3014 = vsel %vm2224, %v2752, 0.0
    %3015 = vadd.xlane.f32.xlu0 %v3014
    %v3016 = vpop.xlane.xlu0 %3015
    %v3017 = vsel %vm2224, %v2754, 0.0
    %3018 = vadd.xlane.f32.xlu0 %v3017
    %v3019 = vpop.xlane.xlu0 %3018
    %v3020 = vsel %vm2224, %v2756, 0.0
    %3021 = vadd.xlane.f32.xlu0 %v3020
    %v3022 = vpop.xlane.xlu0 %3021
    %v3023 = vsel %vm2224, %v2758, 0.0
    %3024 = vadd.xlane.f32.xlu0 %v3023
    %v3025 = vpop.xlane.xlu0 %3024
    %v3026 = vsel %vm2224, %v2760, 0.0
    %3027 = vadd.xlane.f32.xlu0 %v3026
    %v3028 = vpop.xlane.xlu0 %3027
    %v3029 = vsel %vm2224, %v2762, 0.0
    %3030 = vadd.xlane.f32.xlu0 %v3029
    %v3031 = vpop.xlane.xlu0 %3030
    %v3032 = vsel %vm2224, %v2764, 0.0
    %3033 = vadd.xlane.f32.xlu0 %v3032
    %v3034 = vpop.xlane.xlu0 %3033
    %v3035 = vsel %vm2224, %v2766, 0.0
    %3036 = vadd.xlane.f32.xlu0 %v3035
    %v3037 = vpop.xlane.xlu0 %3036
    %v3038 = vsel %vm2224, %v2768, 0.0
    %3039 = vadd.xlane.f32.xlu0 %v3038
    %v3040 = vpop.xlane.xlu0 %3039
    %v3041 = vsel %vm2224, %v2770, 0.0
    %3042 = vadd.xlane.f32.xlu0 %v3041
    %v3043 = vpop.xlane.xlu0 %3042
    %v3044 = vsel %vm2224, %v2772, 0.0
    %3045 = vadd.xlane.f32.xlu0 %v3044
    %v3046 = vpop.xlane.xlu0 %3045
    %v3047 = vsel %vm2224, %v2774, 0.0
    %3048 = vadd.xlane.f32.xlu0 %v3047
    %v3049 = vpop.xlane.xlu0 %3048
    %v3050 = vsel %vm2224, %v2776, 0.0
    %3051 = vadd.xlane.f32.xlu0 %v3050
    %v3052 = vpop.xlane.xlu0 %3051
    %v3053 = vsel %vm2224, %v2778, 0.0
    %3054 = vadd.xlane.f32.xlu0 %v3053
    %v3055 = vpop.xlane.xlu0 %3054
    %v3056 = vsel %vm2224, %v2780, 0.0
    %3057 = vadd.xlane.f32.xlu0 %v3056
    %v3058 = vpop.xlane.xlu0 %3057
    %v3059 = vsel %vm2224, %v2782, 0.0
    %3060 = vadd.xlane.f32.xlu0 %v3059
    %v3061 = vpop.xlane.xlu0 %3060
    %v3062 = vsel %vm2224, %v2784, 0.0
    %3063 = vadd.xlane.f32.xlu0 %v3062
    %v3064 = vpop.xlane.xlu0 %3063
    %v3065 = vsel %vm2224, %v2786, 0.0
    %3066 = vadd.xlane.f32.xlu0 %v3065
    %v3067 = vpop.xlane.xlu0 %3066
    %v3068 = vsel %vm2224, %v2788, 0.0
    %3069 = vadd.xlane.f32.xlu0 %v3068
    %v3070 = vpop.xlane.xlu0 %3069
    %v3071 = vsel %vm2224, %v2790, 0.0
    %3072 = vadd.xlane.f32.xlu0 %v3071
    %v3073 = vpop.xlane.xlu0 %3072
    %v3074 = vsel %vm2224, %v2792, 0.0
    %3075 = vadd.xlane.f32.xlu0 %v3074
    %v3076 = vpop.xlane.xlu0 %3075
    %v3077 = vsel %vm2224, %v2794, 0.0
    %3078 = vadd.xlane.f32.xlu0 %v3077
    %v3079 = vpop.xlane.xlu0 %3078
    %v3080 = vsel %vm2224, %v2796, 0.0
    %3081 = vadd.xlane.f32.xlu0 %v3080
    %v3082 = vpop.xlane.xlu0 %3081
    %v3083 = vsel %vm2224, %v2798, 0.0
    %3084 = vadd.xlane.f32.xlu0 %v3083
    %v3085 = vpop.xlane.xlu0 %3084
    %v3086 = vsel %vm2224, %v2800, 0.0
    %3087 = vadd.xlane.f32.xlu0 %v3086
    %v3088 = vpop.xlane.xlu0 %3087
    %v3089 = vsel %vm2224, %v2802, 0.0
    %3090 = vadd.xlane.f32.xlu0 %v3089
    %v3091 = vpop.xlane.xlu0 %3090
    %v3092 = vsel %vm2224, %v2804, 0.0
    %3093 = vadd.xlane.f32.xlu0 %v3092
    %v3094 = vpop.xlane.xlu0 %3093
    %v3095 = vsel %vm2224, %v2806, 0.0
    %3096 = vadd.xlane.f32.xlu0 %v3095
    %v3097 = vpop.xlane.xlu0 %3096
    %v3098 = vsel %vm2224, %v2808, 0.0
    %3099 = vadd.xlane.f32.xlu0 %v3098
    %v3100 = vpop.xlane.xlu0 %3099
    %v3101 = vsel %vm2224, %v2810, 0.0
    %3102 = vadd.xlane.f32.xlu0 %v3101
    %v3103 = vpop.xlane.xlu0 %3102
    %v3104 = vsel %vm2224, %v2812, 0.0
    %3105 = vadd.xlane.f32.xlu0 %v3104
    %v3106 = vpop.xlane.xlu0 %3105
    %v3107 = vsel %vm2224, %v2814, 0.0
    %3108 = vadd.xlane.f32.xlu0 %v3107
    %v3109 = vpop.xlane.xlu0 %3108
    %v3110 = vsel %vm2224, %v2816, 0.0
    %3111 = vadd.xlane.f32.xlu0 %v3110
    %v3112 = vpop.xlane.xlu0 %3111
    %v3113 = vsel %vm2224, %v2818, 0.0
    %3114 = vadd.xlane.f32.xlu0 %v3113
    %v3115 = vpop.xlane.xlu0 %3114
    %v3116 = vsel %vm2224, %v2820, 0.0
    %3117 = vadd.xlane.f32.xlu0 %v3116
    %v3118 = vpop.xlane.xlu0 %3117
    %v3119 = vsel %vm2224, %v2822, 0.0
    %3120 = vadd.xlane.f32.xlu0 %v3119
    %v3121 = vpop.xlane.xlu0 %3120
    %v3122 = vsel %vm2224, %v2824, 0.0
    %3123 = vadd.xlane.f32.xlu0 %v3122
    %v3124 = vpop.xlane.xlu0 %3123
    %v3125 = vsel %vm2224, %v2826, 0.0
    %3126 = vadd.xlane.f32.xlu0 %v3125
    %v3127 = vpop.xlane.xlu0 %3126
    %v3128 = vsel %vm2224, %v2828, 0.0
    %3129 = vadd.xlane.f32.xlu0 %v3128
    %v3130 = vpop.xlane.xlu0 %3129
    %v3131 = vsel %vm2224, %v2830, 0.0
    %3132 = vadd.xlane.f32.xlu0 %v3131
    %v3133 = vpop.xlane.xlu0 %3132
    %v3134 = vsel %vm2224, %v2832, 0.0
    %3135 = vadd.xlane.f32.xlu0 %v3134
    %v3136 = vpop.xlane.xlu0 %3135
    %v3137 = vsel %vm2224, %v2834, 0.0
    %3138 = vadd.xlane.f32.xlu0 %v3137
    %v3139 = vpop.xlane.xlu0 %3138
    %v3140 = vsel %vm2224, %v2836, 0.0
    %3141 = vadd.xlane.f32.xlu0 %v3140
    %v3142 = vpop.xlane.xlu0 %3141
    %v3143 = vsel %vm2224, %v2838, 0.0
    %3144 = vadd.xlane.f32.xlu0 %v3143
    %v3145 = vpop.xlane.xlu0 %3144
    %v3146 = vsel %vm2224, %v2840, 0.0
    %3147 = vadd.xlane.f32.xlu0 %v3146
    %v3148 = vpop.xlane.xlu0 %3147
    %v3149 = vsel %vm2224, %v2842, 0.0
    %3150 = vadd.xlane.f32.xlu0 %v3149
    %v3151 = vpop.xlane.xlu0 %3150
    %v3152 = vsel %vm2224, %v2844, 0.0
    %3153 = vadd.xlane.f32.xlu0 %v3152
    %v3154 = vpop.xlane.xlu0 %3153
    %v3155 = vsel %vm2224, %v2846, 0.0
    %3156 = vadd.xlane.f32.xlu0 %v3155
    %v3157 = vpop.xlane.xlu0 %3156
    %v3158 = vsel %vm2224, %v2848, 0.0
    %3159 = vadd.xlane.f32.xlu0 %v3158
    %v3160 = vpop.xlane.xlu0 %3159
    %v3161 = vsel %vm2224, %v2850, 0.0
    %3162 = vadd.xlane.f32.xlu0 %v3161
    %v3163 = vpop.xlane.xlu0 %3162
    %v3164 = vsel %vm2224, %v2852, 0.0
    %3165 = vadd.xlane.f32.xlu0 %v3164
    %v3166 = vpop.xlane.xlu0 %3165
    %v3167 = vsel %vm2224, %v2854, 0.0
    %3168 = vadd.xlane.f32.xlu0 %v3167
    %v3169 = vpop.xlane.xlu0 %3168
    %v3170 = vsel %vm2224, %v2856, 0.0
    %3171 = vadd.xlane.f32.xlu0 %v3170
    %v3172 = vpop.xlane.xlu0 %3171
    %v3173 = vsel %vm2224, %v2858, 0.0
    %3174 = vadd.xlane.f32.xlu0 %v3173
    %v3175 = vpop.xlane.xlu0 %3174
    %v3176 = vsel %vm2224, %v2860, 0.0
    %3177 = vadd.xlane.f32.xlu0 %v3176
    %v3178 = vpop.xlane.xlu0 %3177
    %v3179 = vsel %vm2224, %v2862, 0.0
    %3180 = vadd.xlane.f32.xlu0 %v3179
    %v3181 = vpop.xlane.xlu0 %3180
    %v3182 = vsel %vm2224, %v2864, 0.0
    %3183 = vadd.xlane.f32.xlu0 %v3182
    %v3184 = vpop.xlane.xlu0 %3183
    %v3185 = vsel %vm2224, %v2866, 0.0
    %3186 = vadd.xlane.f32.xlu0 %v3185
    %v3187 = vpop.xlane.xlu0 %3186
    %v3188 = vsel %vm2224, %v2868, 0.0
    %3189 = vadd.xlane.f32.xlu0 %v3188
    %v3190 = vpop.xlane.xlu0 %3189
    %v3191 = vsel %vm2224, %v2870, 0.0
    %3192 = vadd.xlane.f32.xlu0 %v3191
    %v3193 = vpop.xlane.xlu0 %3192
    %v3194 = vsel %vm2224, %v2872, 0.0
    %3195 = vadd.xlane.f32.xlu0 %v3194
    %v3196 = vpop.xlane.xlu0 %3195
    %v3197 = vsel %vm2224, %v2874, 0.0
    %3198 = vadd.xlane.f32.xlu0 %v3197
    %v3199 = vpop.xlane.xlu0 %3198
    %v3200 = vsel %vm2224, %v2876, 0.0
    %3201 = vadd.xlane.f32.xlu0 %v3200
    %v3202 = vpop.xlane.xlu0 %3201
    %v3203 = vsel %vm2224, %v2878, 0.0
    %3204 = vadd.xlane.f32.xlu0 %v3203
    %v3205 = vpop.xlane.xlu0 %3204
    %v3206 = vsel %vm2224, %v2880, 0.0
    %3207 = vadd.xlane.f32.xlu0 %v3206
    %v3208 = vpop.xlane.xlu0 %3207
    %v3209 = vsel %vm2224, %v2882, 0.0
    %3210 = vadd.xlane.f32.xlu0 %v3209
    %v3211 = vpop.xlane.xlu0 %3210
    %v3212 = vsel %vm2224, %v2884, 0.0
    %3213 = vadd.xlane.f32.xlu0 %v3212
    %v3214 = vpop.xlane.xlu0 %3213
    %v3215 = vsel %vm2224, %v2886, 0.0
    %3216 = vadd.xlane.f32.xlu0 %v3215
    %v3217 = vpop.xlane.xlu0 %3216
    %v3218 = vsel %vm2224, %v2888, 0.0
    %3219 = vadd.xlane.f32.xlu0 %v3218
    %v3220 = vpop.xlane.xlu0 %3219
    %v3221 = vsel %vm2224, %v2890, 0.0
    %3222 = vadd.xlane.f32.xlu0 %v3221
    %v3223 = vpop.xlane.xlu0 %3222
    %v3224 = vsel %vm2224, %v2892, 0.0
    %3225 = vadd.xlane.f32.xlu0 %v3224
    %v3226 = vpop.xlane.xlu0 %3225
    %v3227 = vsel %vm2224, %v2894, 0.0
    %3228 = vadd.xlane.f32.xlu0 %v3227
    %v3229 = vpop.xlane.xlu0 %3228
    %v3230 = vsel %vm2224, %v2896, 0.0
    %3231 = vadd.xlane.f32.xlu0 %v3230
    %v3232 = vpop.xlane.xlu0 %3231
    %v3233 = vsel %vm2224, %v2898, 0.0
    %3234 = vadd.xlane.f32.xlu0 %v3233
    %v3235 = vpop.xlane.xlu0 %3234
    %v3236 = vsel %vm2224, %v2900, 0.0
    %3237 = vadd.xlane.f32.xlu0 %v3236
    %v3238 = vpop.xlane.xlu0 %3237
    %v3239 = vsel %vm2224, %v2902, 0.0
    %3240 = vadd.xlane.f32.xlu0 %v3239
    %v3241 = vpop.xlane.xlu0 %3240
    %v3242 = vsel %vm2224, %v2904, 0.0
    %3243 = vadd.xlane.f32.xlu0 %v3242
    %v3244 = vpop.xlane.xlu0 %3243
    %v3245 = vsel %vm2224, %v2906, 0.0
    %3246 = vadd.xlane.f32.xlu0 %v3245
    %v3247 = vpop.xlane.xlu0 %3246
    %v3248 = vsel %vm2224, %v2908, 0.0
    %3249 = vadd.xlane.f32.xlu0 %v3248
    %v3250 = vpop.xlane.xlu0 %3249
    %v3251 = vsel %vm2224, %v2910, 0.0
    %3252 = vadd.xlane.f32.xlu0 %v3251
    %v3253 = vpop.xlane.xlu0 %3252
    %v3254 = vsel %vm2224, %v2912, 0.0
    %3255 = vadd.xlane.f32.xlu0 %v3254
    %v3256 = vpop.xlane.xlu0 %3255
    %v3257 = vsel %vm2224, %v2914, 0.0
    %3258 = vadd.xlane.f32.xlu0 %v3257
    %v3259 = vpop.xlane.xlu0 %3258
    %v3260 = vsel %vm2224, %v2916, 0.0
    %3261 = vadd.xlane.f32.xlu0 %v3260
    %v3262 = vpop.xlane.xlu0 %3261
    %v3263 = vsel %vm2224, %v2918, 0.0
    %3264 = vadd.xlane.f32.xlu0 %v3263
    %v3265 = vpop.xlane.xlu0 %3264
    %v3266 = vsel %vm2224, %v2920, 0.0
    %3267 = vadd.xlane.f32.xlu0 %v3266
    %v3268 = vpop.xlane.xlu0 %3267
    %v3269 = vsel %vm2224, %v2922, 0.0
    %3270 = vadd.xlane.f32.xlu0 %v3269
    %v3271 = vpop.xlane.xlu0 %3270
    %v3272 = vsel %vm2224, %v2924, 0.0
    %3273 = vadd.xlane.f32.xlu0 %v3272
    %v3274 = vpop.xlane.xlu0 %3273
    %v3275 = vsel %vm2224, %v2926, 0.0
    %3276 = vadd.xlane.f32.xlu0 %v3275
    %v3277 = vpop.xlane.xlu0 %3276
    %v3278 = vsel %vm2224, %v2928, 0.0
    %3279 = vadd.xlane.f32.xlu0 %v3278
    %v3280 = vpop.xlane.xlu0 %3279
    %v3281 = vsel %vm2224, %v2930, 0.0
    %3282 = vadd.xlane.f32.xlu0 %v3281
    %v3283 = vpop.xlane.xlu0 %3282
    %v3284 = vsel %vm2224, %v2932, 0.0
    %3285 = vadd.xlane.f32.xlu0 %v3284
    %v3286 = vpop.xlane.xlu0 %3285
    %v3287 = vsel %vm2224, %v2934, 0.0
    %3288 = vadd.xlane.f32.xlu0 %v3287
    %v3289 = vpop.xlane.xlu0 %3288
    %v3290 = vsel %vm2224, %v2936, 0.0
    %3291 = vadd.xlane.f32.xlu0 %v3290
    %v3292 = vpop.xlane.xlu0 %3291
    %v3293 = vsel %vm2224, %v2938, 0.0
    %3294 = vadd.xlane.f32.xlu0 %v3293
    %v3295 = vpop.xlane.xlu0 %3294
    %v3296 = vsel %vm2224, %v2940, 0.0
    %3297 = vadd.xlane.f32.xlu0 %v3296
    %v3298 = vpop.xlane.xlu0 %3297
    %v3299 = vsel %vm2224, %v2942, 0.0
    %3300 = vadd.xlane.f32.xlu0 %v3299
    %v3301 = vpop.xlane.xlu0 %3300
    %v3302 = vsel %vm2224, %v2944, 0.0
    %3303 = vadd.xlane.f32.xlu0 %v3302
    %v3304 = vpop.xlane.xlu0 %3303
    %v3305 = vsel %vm2224, %v2946, 0.0
    %3306 = vadd.xlane.f32.xlu0 %v3305
    %v3307 = vpop.xlane.xlu0 %3306
    %v3308 = vsel %vm2224, %v2948, 0.0
    %3309 = vadd.xlane.f32.xlu0 %v3308
    %v3310 = vpop.xlane.xlu0 %3309
    %v3311 = vsel %vm2224, %v2950, 0.0
    %3312 = vadd.xlane.f32.xlu0 %v3311
    %v3313 = vpop.xlane.xlu0 %3312
    %v3314 = vsel %vm2224, %v2952, 0.0
    %3315 = vadd.xlane.f32.xlu0 %v3314
    %v3316 = vpop.xlane.xlu0 %3315
    %v3317 = vsel %vm2224, %v2954, 0.0
    %3318 = vadd.xlane.f32.xlu0 %v3317
    %v3319 = vpop.xlane.xlu0 %3318
    %v3320 = vsel %vm2224, %v2956, 0.0
    %3321 = vadd.xlane.f32.xlu0 %v3320
    %v3322 = vpop.xlane.xlu0 %3321
    %v3323 = vsel %vm2224, %v2958, 0.0
    %3324 = vadd.xlane.f32.xlu0 %v3323
    %v3325 = vpop.xlane.xlu0 %3324
    %v3326 = vsel %vm2224, %v2960, 0.0
    %3327 = vadd.xlane.f32.xlu0 %v3326
    %v3328 = vpop.xlane.xlu0 %3327
    %v3329 = vsel %vm2224, %v2962, 0.0
    %3330 = vadd.xlane.f32.xlu0 %v3329
    %v3331 = vpop.xlane.xlu0 %3330
    %v3332 = vsel %vm2224, %v2964, 0.0
    %3333 = vadd.xlane.f32.xlu0 %v3332
    %v3334 = vpop.xlane.xlu0 %3333
    %v3335 = vsel %vm2224, %v2966, 0.0
    %3336 = vadd.xlane.f32.xlu0 %v3335
    %v3337 = vpop.xlane.xlu0 %3336
    %v3338 = vsel %vm2224, %v2968, 0.0
    %3339 = vadd.xlane.f32.xlu0 %v3338
    %v3340 = vpop.xlane.xlu0 %3339
    %v3341 = vsel %vm2224, %v2970, 0.0
    %3342 = vadd.xlane.f32.xlu0 %v3341
    %v3343 = vpop.xlane.xlu0 %3342
    %v3344 = vsel %vm2224, %v2972, 0.0
    %3345 = vadd.xlane.f32.xlu0 %v3344
    %v3346 = vpop.xlane.xlu0 %3345
    %v3347 = vsel %vm2224, %v2974, 0.0
    %3348 = vadd.xlane.f32.xlu0 %v3347
    %v3349 = vpop.xlane.xlu0 %3348
    %v3350 = vsel %vm2224, %v2976, 0.0
    %3351 = vadd.xlane.f32.xlu0 %v3350
    %v3352 = vpop.xlane.xlu0 %3351
    %v3353 = vsel %vm2224, %v2978, 0.0
    %3354 = vadd.xlane.f32.xlu0 %v3353
    %v3355 = vpop.xlane.xlu0 %3354
    %v3356 = vsel %vm2224, %v2980, 0.0
    %3357 = vadd.xlane.f32.xlu0 %v3356
    %v3358 = vpop.xlane.xlu0 %3357
    %v3359 = vsel %vm2224, %v2982, 0.0
    %3360 = vadd.xlane.f32.xlu0 %v3359
    %v3361 = vpop.xlane.xlu0 %3360
    %v3362 = vsel %vm2224, %v2984, 0.0
    %3363 = vadd.xlane.f32.xlu0 %v3362
    %v3364 = vpop.xlane.xlu0 %3363
    %v3365 = vsel %vm2224, %v2986, 0.0
    %3366 = vadd.xlane.f32.xlu0 %v3365
    %v3367 = vpop.xlane.xlu0 %3366
    %v3368 = vsel %vm2224, %v2988, 0.0
    %3369 = vadd.xlane.f32.xlu0 %v3368
    %v3370 = vpop.xlane.xlu0 %3369
    %v3371 = vsel %vm2224, %v2990, 0.0
    %3372 = vadd.xlane.f32.xlu0 %v3371
    %v3373 = vpop.xlane.xlu0 %3372
    %v3374 = vsel %vm2224, %v2992, 0.0
    %3375 = vadd.xlane.f32.xlu0 %v3374
    %v3376 = vpop.xlane.xlu0 %3375
    %v3377 = vrcp.pop %v2995
    %v3378 = vrcp.pop %v2998
    %v3379 = vrcp.pop %v3001
    %v3380 = vrcp.pop %v3004
    %v3381 = vrcp.pop %v3007
    %v3382 = vrcp.pop %v3010
    %v3383 = vrcp.pop %v3013
    %v3384 = vrcp.pop %v3016
    %v3385 = vrcp.pop %v3019
    %v3386 = vrcp.pop %v3022
    %v3387 = vrcp.pop %v3025
    %v3388 = vrcp.pop %v3028
    %v3389 = vrcp.pop %v3031
    %v3390 = vrcp.pop %v3034
    %v3391 = vrcp.pop %v3037
    %v3392 = vrcp.pop %v3040
    %v3393 = vrcp.pop %v3043
    %v3394 = vrcp.pop %v3046
    %v3395 = vrcp.pop %v3049
    %v3396 = vrcp.pop %v3052
    %v3397 = vrcp.pop %v3055
    %v3398 = vrcp.pop %v3058
    %v3399 = vrcp.pop %v3061
    %v3400 = vrcp.pop %v3064
    %v3401 = vrcp.pop %v3067
    %v3402 = vrcp.pop %v3070
    %v3403 = vrcp.pop %v3073
    %v3404 = vrcp.pop %v3076
    %v3405 = vrcp.pop %v3079
    %v3406 = vrcp.pop %v3082
    %v3407 = vrcp.pop %v3085
    %v3408 = vrcp.pop %v3088
    %v3409 = vrcp.pop %v3091
    %v3410 = vrcp.pop %v3094
    %v3411 = vrcp.pop %v3097
    %v3412 = vrcp.pop %v3100
    %v3413 = vrcp.pop %v3103
    %v3414 = vrcp.pop %v3106
    %v3415 = vrcp.pop %v3109
    %v3416 = vrcp.pop %v3112
    %v3417 = vrcp.pop %v3115
    %v3418 = vrcp.pop %v3118
    %v3419 = vrcp.pop %v3121
    %v3420 = vrcp.pop %v3124
    %v3421 = vrcp.pop %v3127
    %v3422 = vrcp.pop %v3130
    %v3423 = vrcp.pop %v3133
    %v3424 = vrcp.pop %v3136
    %v3425 = vrcp.pop %v3139
    %v3426 = vrcp.pop %v3142
    %v3427 = vrcp.pop %v3145
    %v3428 = vrcp.pop %v3148
    %v3429 = vrcp.pop %v3151
    %v3430 = vrcp.pop %v3154
    %v3431 = vrcp.pop %v3157
    %v3432 = vrcp.pop %v3160
    %v3433 = vrcp.pop %v3163
    %v3434 = vrcp.pop %v3166
    %v3435 = vrcp.pop %v3169
    %v3436 = vrcp.pop %v3172
    %v3437 = vrcp.pop %v3175
    %v3438 = vrcp.pop %v3178
    %v3439 = vrcp.pop %v3181
    %v3440 = vrcp.pop %v3184
    %v3441 = vrcp.pop %v3187
    %v3442 = vrcp.pop %v3190
    %v3443 = vrcp.pop %v3193
    %v3444 = vrcp.pop %v3196
    %v3445 = vrcp.pop %v3199
    %v3446 = vrcp.pop %v3202
    %v3447 = vrcp.pop %v3205
    %v3448 = vrcp.pop %v3208
    %v3449 = vrcp.pop %v3211
    %v3450 = vrcp.pop %v3214
    %v3451 = vrcp.pop %v3217
    %v3452 = vrcp.pop %v3220
    %v3453 = vrcp.pop %v3223
    %v3454 = vrcp.pop %v3226
    %v3455 = vrcp.pop %v3229
    %v3456 = vrcp.pop %v3232
    %v3457 = vrcp.pop %v3235
    %v3458 = vrcp.pop %v3238
    %v3459 = vrcp.pop %v3241
    %v3460 = vrcp.pop %v3244
    %v3461 = vrcp.pop %v3247
    %v3462 = vrcp.pop %v3250
    %v3463 = vrcp.pop %v3253
    %v3464 = vrcp.pop %v3256
    %v3465 = vrcp.pop %v3259
    %v3466 = vrcp.pop %v3262
    %v3467 = vrcp.pop %v3265
    %v3468 = vrcp.pop %v3268
    %v3469 = vrcp.pop %v3271
    %v3470 = vrcp.pop %v3274
    %v3471 = vrcp.pop %v3277
    %v3472 = vrcp.pop %v3280
    %v3473 = vrcp.pop %v3283
    %v3474 = vrcp.pop %v3286
    %v3475 = vrcp.pop %v3289
    %v3476 = vrcp.pop %v3292
    %v3477 = vrcp.pop %v3295
    %v3478 = vrcp.pop %v3298
    %v3479 = vrcp.pop %v3301
    %v3480 = vrcp.pop %v3304
    %v3481 = vrcp.pop %v3307
    %v3482 = vrcp.pop %v3310
    %v3483 = vrcp.pop %v3313
    %v3484 = vrcp.pop %v3316
    %v3485 = vrcp.pop %v3319
    %v3486 = vrcp.pop %v3322
    %v3487 = vrcp.pop %v3325
    %v3488 = vrcp.pop %v3328
    %v3489 = vrcp.pop %v3331
    %v3490 = vrcp.pop %v3334
    %v3491 = vrcp.pop %v3337
    %v3492 = vrcp.pop %v3340
    %v3493 = vrcp.pop %v3343
    %v3494 = vrcp.pop %v3346
    %v3495 = vrcp.pop %v3349
    %v3496 = vrcp.pop %v3352
    %v3497 = vrcp.pop %v3355
    %v3498 = vrcp.pop %v3358
    %v3499 = vrcp.pop %v3361
    %v3500 = vrcp.pop %v3364
    %v3501 = vrcp.pop %v3367
    %v3502 = vrcp.pop %v3370
    %v3503 = vrcp.pop %v3373
    %v3504 = vrcp.pop %v3376
    %v3505 = vmul.f32 %v2738, %v3377
    %v3506 = vmul.f32 %v2740, %v3378
    %v3507 = vmul.f32 %v2742, %v3379
    %v3508 = vmul.f32 %v2744, %v3380
    %v3509 = vmul.f32 %v2746, %v3381
    %v3510 = vmul.f32 %v2748, %v3382
    %v3511 = vmul.f32 %v2750, %v3383
    %v3512 = vmul.f32 %v2752, %v3384
    %v3513 = vmul.f32 %v2754, %v3385
    %v3514 = vmul.f32 %v2756, %v3386
    %v3515 = vmul.f32 %v2758, %v3387
    %v3516 = vmul.f32 %v2760, %v3388
    %v3517 = vmul.f32 %v2762, %v3389
    %v3518 = vmul.f32 %v2764, %v3390
    %v3519 = vmul.f32 %v2766, %v3391
    %v3520 = vmul.f32 %v2768, %v3392
    %v3521 = vmul.f32 %v2770, %v3393
    %v3522 = vmul.f32 %v2772, %v3394
    %v3523 = vmul.f32 %v2774, %v3395
    %v3524 = vmul.f32 %v2776, %v3396
    %v3525 = vmul.f32 %v2778, %v3397
    %v3526 = vmul.f32 %v2780, %v3398
    %v3527 = vmul.f32 %v2782, %v3399
    %v3528 = vmul.f32 %v2784, %v3400
    %v3529 = vmul.f32 %v2786, %v3401
    %v3530 = vmul.f32 %v2788, %v3402
    %v3531 = vmul.f32 %v2790, %v3403
    %v3532 = vmul.f32 %v2792, %v3404
    %v3533 = vmul.f32 %v2794, %v3405
    %v3534 = vmul.f32 %v2796, %v3406
    %v3535 = vmul.f32 %v2798, %v3407
    %v3536 = vmul.f32 %v2800, %v3408
    %v3537 = vmul.f32 %v2802, %v3409
    %v3538 = vmul.f32 %v2804, %v3410
    %v3539 = vmul.f32 %v2806, %v3411
    %v3540 = vmul.f32 %v2808, %v3412
    %v3541 = vmul.f32 %v2810, %v3413
    %v3542 = vmul.f32 %v2812, %v3414
    %v3543 = vmul.f32 %v2814, %v3415
    %v3544 = vmul.f32 %v2816, %v3416
    %v3545 = vmul.f32 %v2818, %v3417
    %v3546 = vmul.f32 %v2820, %v3418
    %v3547 = vmul.f32 %v2822, %v3419
    %v3548 = vmul.f32 %v2824, %v3420
    %v3549 = vmul.f32 %v2826, %v3421
    %v3550 = vmul.f32 %v2828, %v3422
    %v3551 = vmul.f32 %v2830, %v3423
    %v3552 = vmul.f32 %v2832, %v3424
    %v3553 = vmul.f32 %v2834, %v3425
    %v3554 = vmul.f32 %v2836, %v3426
    %v3555 = vmul.f32 %v2838, %v3427
    %v3556 = vmul.f32 %v2840, %v3428
    %v3557 = vmul.f32 %v2842, %v3429
    %v3558 = vmul.f32 %v2844, %v3430
    %v3559 = vmul.f32 %v2846, %v3431
    %v3560 = vmul.f32 %v2848, %v3432
    %v3561 = vmul.f32 %v2850, %v3433
    %v3562 = vmul.f32 %v2852, %v3434
    %v3563 = vmul.f32 %v2854, %v3435
    %v3564 = vmul.f32 %v2856, %v3436
    %v3565 = vmul.f32 %v2858, %v3437
    %v3566 = vmul.f32 %v2860, %v3438
    %v3567 = vmul.f32 %v2862, %v3439
    %v3568 = vmul.f32 %v2864, %v3440
    %v3569 = vmul.f32 %v2866, %v3441
    %v3570 = vmul.f32 %v2868, %v3442
    %v3571 = vmul.f32 %v2870, %v3443
    %v3572 = vmul.f32 %v2872, %v3444
    %v3573 = vmul.f32 %v2874, %v3445
    %v3574 = vmul.f32 %v2876, %v3446
    %v3575 = vmul.f32 %v2878, %v3447
    %v3576 = vmul.f32 %v2880, %v3448
    %v3577 = vmul.f32 %v2882, %v3449
    %v3578 = vmul.f32 %v2884, %v3450
    %v3579 = vmul.f32 %v2886, %v3451
    %v3580 = vmul.f32 %v2888, %v3452
    %v3581 = vmul.f32 %v2890, %v3453
    %v3582 = vmul.f32 %v2892, %v3454
    %v3583 = vmul.f32 %v2894, %v3455
    %v3584 = vmul.f32 %v2896, %v3456
    %v3585 = vmul.f32 %v2898, %v3457
    %v3586 = vmul.f32 %v2900, %v3458
    %v3587 = vmul.f32 %v2902, %v3459
    %v3588 = vmul.f32 %v2904, %v3460
    %v3589 = vmul.f32 %v2906, %v3461
    %v3590 = vmul.f32 %v2908, %v3462
    %v3591 = vmul.f32 %v2910, %v3463
    %v3592 = vmul.f32 %v2912, %v3464
    %v3593 = vmul.f32 %v2914, %v3465
    %v3594 = vmul.f32 %v2916, %v3466
    %v3595 = vmul.f32 %v2918, %v3467
    %v3596 = vmul.f32 %v2920, %v3468
    %v3597 = vmul.f32 %v2922, %v3469
    %v3598 = vmul.f32 %v2924, %v3470
    %v3599 = vmul.f32 %v2926, %v3471
    %v3600 = vmul.f32 %v2928, %v3472
    %v3601 = vmul.f32 %v2930, %v3473
    %v3602 = vmul.f32 %v2932, %v3474
    %v3603 = vmul.f32 %v2934, %v3475
    %v3604 = vmul.f32 %v2936, %v3476
    %v3605 = vmul.f32 %v2938, %v3477
    %v3606 = vmul.f32 %v2940, %v3478
    %v3607 = vmul.f32 %v2942, %v3479
    %v3608 = vmul.f32 %v2944, %v3480
    %v3609 = vmul.f32 %v2946, %v3481
    %v3610 = vmul.f32 %v2948, %v3482
    %v3611 = vmul.f32 %v2950, %v3483
    %v3612 = vmul.f32 %v2952, %v3484
    %v3613 = vmul.f32 %v2954, %v3485
    %v3614 = vmul.f32 %v2956, %v3486
    %v3615 = vmul.f32 %v2958, %v3487
    %v3616 = vmul.f32 %v2960, %v3488
    %v3617 = vmul.f32 %v2962, %v3489
    %v3618 = vmul.f32 %v2964, %v3490
    %v3619 = vmul.f32 %v2966, %v3491
    %v3620 = vmul.f32 %v2968, %v3492
    %v3621 = vmul.f32 %v2970, %v3493
    %v3622 = vmul.f32 %v2972, %v3494
    %v3623 = vmul.f32 %v2974, %v3495
    %v3624 = vmul.f32 %v2976, %v3496
    %v3625 = vmul.f32 %v2978, %v3497
    %v3626 = vmul.f32 %v2980, %v3498
    %v3627 = vmul.f32 %v2982, %v3499
    %v3628 = vmul.f32 %v2984, %v3500
    %v3629 = vmul.f32 %v2986, %v3501
    %v3630 = vmul.f32 %v2988, %v3502
    %v3631 = vmul.f32 %v2990, %v3503
    %v3632 = vmul.f32 %v2992, %v3504
    %v3633 = vpack.c.bf16 %v3506, %v3505
    %v3634 = vpack.c.bf16 %v3508, %v3507
    %v3635 = vpack.c.bf16 %v3510, %v3509
    %v3636 = vpack.c.bf16 %v3512, %v3511
    %v3637 = vpack.c.bf16 %v3514, %v3513
    %v3638 = vpack.c.bf16 %v3516, %v3515
    %v3639 = vpack.c.bf16 %v3518, %v3517
    %v3640 = vpack.c.bf16 %v3520, %v3519
    %v3641 = vpack.c.bf16 %v3522, %v3521
    %v3642 = vpack.c.bf16 %v3524, %v3523
    %v3643 = vpack.c.bf16 %v3526, %v3525
    %v3644 = vpack.c.bf16 %v3528, %v3527
    %v3645 = vpack.c.bf16 %v3530, %v3529
    %v3646 = vpack.c.bf16 %v3532, %v3531
    %v3647 = vpack.c.bf16 %v3534, %v3533
    %v3648 = vpack.c.bf16 %v3536, %v3535
    %v3649 = vpack.c.bf16 %v3538, %v3537
    %v3650 = vpack.c.bf16 %v3540, %v3539
    %v3651 = vpack.c.bf16 %v3542, %v3541
    %v3652 = vpack.c.bf16 %v3544, %v3543
    %v3653 = vpack.c.bf16 %v3546, %v3545
    %v3654 = vpack.c.bf16 %v3548, %v3547
    %v3655 = vpack.c.bf16 %v3550, %v3549
    %v3656 = vpack.c.bf16 %v3552, %v3551
    %v3657 = vpack.c.bf16 %v3554, %v3553
    %v3658 = vpack.c.bf16 %v3556, %v3555
    %v3659 = vpack.c.bf16 %v3558, %v3557
    %v3660 = vpack.c.bf16 %v3560, %v3559
    %v3661 = vpack.c.bf16 %v3562, %v3561
    %v3662 = vpack.c.bf16 %v3564, %v3563
    %v3663 = vpack.c.bf16 %v3566, %v3565
    %v3664 = vpack.c.bf16 %v3568, %v3567
    %v3665 = vpack.c.bf16 %v3570, %v3569
    %v3666 = vpack.c.bf16 %v3572, %v3571
    %v3667 = vpack.c.bf16 %v3574, %v3573
    %v3668 = vpack.c.bf16 %v3576, %v3575
    %v3669 = vpack.c.bf16 %v3578, %v3577
    %v3670 = vpack.c.bf16 %v3580, %v3579
    %v3671 = vpack.c.bf16 %v3582, %v3581
    %v3672 = vpack.c.bf16 %v3584, %v3583
    %v3673 = vpack.c.bf16 %v3586, %v3585
    %v3674 = vpack.c.bf16 %v3588, %v3587
    %v3675 = vpack.c.bf16 %v3590, %v3589
    %v3676 = vpack.c.bf16 %v3592, %v3591
    %v3677 = vpack.c.bf16 %v3594, %v3593
    %v3678 = vpack.c.bf16 %v3596, %v3595
    %v3679 = vpack.c.bf16 %v3598, %v3597
    %v3680 = vpack.c.bf16 %v3600, %v3599
    %v3681 = vpack.c.bf16 %v3602, %v3601
    %v3682 = vpack.c.bf16 %v3604, %v3603
    %v3683 = vpack.c.bf16 %v3606, %v3605
    %v3684 = vpack.c.bf16 %v3608, %v3607
    %v3685 = vpack.c.bf16 %v3610, %v3609
    %v3686 = vpack.c.bf16 %v3612, %v3611
    %v3687 = vpack.c.bf16 %v3614, %v3613
    %v3688 = vpack.c.bf16 %v3616, %v3615
    %v3689 = vpack.c.bf16 %v3618, %v3617
    %v3690 = vpack.c.bf16 %v3620, %v3619
    %v3691 = vpack.c.bf16 %v3622, %v3621
    %v3692 = vpack.c.bf16 %v3624, %v3623
    %v3693 = vpack.c.bf16 %v3626, %v3625
    %v3694 = vpack.c.bf16 %v3628, %v3627
    %v3695 = vpack.c.bf16 %v3630, %v3629
    %v3696 = vpack.c.bf16 %v3632, %v3631
    %3697 = vrot.lane.b32.xlu0 %v543, 120
    %v3698 = vpop.permute.xlu0 %3697
    %3699 = vrot.lane.b32.xlu0 %v544, 120
    %v3700 = vpop.permute.xlu0 %3699
    %3701 = vrot.lane.b32.xlu0 %v545, 120
    %v3702 = vpop.permute.xlu0 %3701
    %3703 = vrot.lane.b32.xlu0 %v546, 120
    %v3704 = vpop.permute.xlu0 %3703
    %v3710 = vsel %vm2224, %v3633, 0
    %v3713 = vsel %vm2224, %v3634, 0
    %v3716 = vsel %vm2224, %v3635, 0
    %v3719 = vsel %vm2224, %v3636, 0
    %3721 = vmatprep.subr.bf16.mxu0 0
    %3722 = vmatpush1.bf16.msra.mxu0 %v3698
    %3723 = vmatprep.subr.bf16.mxu0 0
    %3724 = vmatpush1.bf16.msra.mxu0 %v3700
    %3725 = vmatprep.subr.bf16.mxu0 0
    %3726 = vmatpush1.bf16.msra.mxu0 %v3702
    %3727 = vmatprep.subr.bf16.mxu0 0
    %3728 = vmatpush1.bf16.msra.mxu0 %v3704
    %3729 = vmatprep.subr.bf16.mxu0 0
    %3730 = vmatpush1.bf16.msra.mxu0 0
    %3731 = vmatprep.subr.bf16.mxu0 0
    %3732 = vmatpush1.bf16.msra.mxu0 0
    %3733 = vmatprep.subr.bf16.mxu0 0
    %3734 = vmatpush1.bf16.msra.mxu0 0
    %3735 = vmatprep.subr.bf16.mxu0 0
    %3736 = vmatpush1.bf16.msra.mxu0 0
    %3737 = vmatprep.subr.bf16.mxu0 0
    %3738 = vmatpush1.bf16.msra.mxu0 0
    %3739 = vmatprep.subr.bf16.mxu0 0
    %3740 = vmatpush1.bf16.msra.mxu0 0
    %3741 = vmatprep.subr.bf16.mxu0 0
    %3742 = vmatpush1.bf16.msra.mxu0 0
    %3743 = vmatprep.subr.bf16.mxu0 0
    %3744 = vmatpush1.bf16.msra.mxu0 0
    %3745 = vmatprep.subr.bf16.mxu0 0
    %3746 = vmatpush1.bf16.msra.mxu0 0
    %3747 = vmatprep.subr.bf16.mxu0 0
    %3748 = vmatpush1.bf16.msra.mxu0 0
    %3749 = vmatprep.subr.bf16.mxu0 0
    %3750 = vmatpush1.bf16.msra.mxu0 0
    %3751 = vmatprep.subr.bf16.mxu0 0
    %3752 = vmatpush1.bf16.msra.mxu0 0
    %3753 = vmatprep.mubr.bf16.mxu0 0
    %3754 = vmatmul.mubr.bf16.gmra.mrb[0].mxu0 %v3710
    %v3755 = vpop.f32.mrb[0].mxu0
    %v3756 = vadd.f32 0.0, %v3755
    %v3757 = vpop.f32.mrb[0].mxu0
    %v3758 = vpop.f32.mrb[0].mxu0
    %v3759 = vadd.f32 0.0, %v3758
    %v3760 = vpop.f32.mrb[0].mxu0
    %3761 = vmatprep.mubr.bf16.mxu0 0
    %3762 = vmatmul.mubr.bf16.gmra.mrb[0].mxu0 %v3713
    %v3763 = vpop.f32.mrb[0].mxu0
    %v3764 = vadd.f32 0.0, %v3763
    %v3765 = vpop.f32.mrb[0].mxu0
    %v3766 = vpop.f32.mrb[0].mxu0
    %v3767 = vadd.f32 0.0, %v3766
    %v3768 = vpop.f32.mrb[0].mxu0
    %3769 = vmatprep.mubr.bf16.mxu0 0
    %3770 = vmatmul.mubr.bf16.gmra.mrb[0].mxu0 %v3716
    %v3771 = vpop.f32.mrb[0].mxu0
    %v3772 = vadd.f32 0.0, %v3771
    %v3773 = vpop.f32.mrb[0].mxu0
    %v3774 = vpop.f32.mrb[0].mxu0
    %v3775 = vadd.f32 0.0, %v3774
    %v3776 = vpop.f32.mrb[0].mxu0
    %3777 = vmatprep.mubr.bf16.mxu0 0
    %3778 = vmatmul.mubr.bf16.gmra.mrb[0].mxu0 %v3719
    %v3779 = vpop.f32.mrb[0].mxu0
    %v3780 = vadd.f32 0.0, %v3779
    %v3781 = vpop.f32.mrb[0].mxu0
    %v3782 = vpop.f32.mrb[0].mxu0
    %v3783 = vadd.f32 0.0, %v3782
    %v3784 = vpop.f32.mrb[0].mxu0
    %3785 = vdwg.mxu0
    %3786 = vrot.lane.b32.xlu0 %v547, 120
    %v3787 = vpop.permute.xlu0 %3786
    %3788 = vrot.lane.b32.xlu0 %v548, 120
    %v3789 = vpop.permute.xlu0 %3788
    %3790 = vrot.lane.b32.xlu0 %v549, 120
    %v3791 = vpop.permute.xlu0 %3790
    %3792 = vrot.lane.b32.xlu0 %v550, 120
    %v3793 = vpop.permute.xlu0 %3792
    %v3799 = vsel %vm2224, %v3637, 0
    %v3802 = vsel %vm2224, %v3638, 0
    %v3805 = vsel %vm2224, %v3639, 0
    %v3808 = vsel %vm2224, %v3640, 0
    %3810 = vmatprep.subr.bf16.mxu0 0
    %3811 = vmatpush1.bf16.msra.mxu0 %v3787
    %3812 = vmatprep.subr.bf16.mxu0 0
    %3813 = vmatpush1.bf16.msra.mxu0 %v3789
    %3814 = vmatprep.subr.bf16.mxu0 0
    %3815 = vmatpush1.bf16.msra.mxu0 %v3791
    %3816 = vmatprep.subr.bf16.mxu0 0
    %3817 = vmatpush1.bf16.msra.mxu0 %v3793
    %3818 = vmatprep.subr.bf16.mxu0 0
    %3819 = vmatpush1.bf16.msra.mxu0 0
    %3820 = vmatprep.subr.bf16.mxu0 0
    %3821 = vmatpush1.bf16.msra.mxu0 0
    %3822 = vmatprep.subr.bf16.mxu0 0
    %3823 = vmatpush1.bf16.msra.mxu0 0
    %3824 = vmatprep.subr.bf16.mxu0 0
    %3825 = vmatpush1.bf16.msra.mxu0 0
    %3826 = vmatprep.subr.bf16.mxu0 0
    %3827 = vmatpush1.bf16.msra.mxu0 0
    %3828 = vmatprep.subr.bf16.mxu0 0
    %3829 = vmatpush1.bf16.msra.mxu0 0
    %3830 = vmatprep.subr.bf16.mxu0 0
    %3831 = vmatpush1.bf16.msra.mxu0 0
    %3832 = vmatprep.subr.bf16.mxu0 0
    %3833 = vmatpush1.bf16.msra.mxu0 0
    %3834 = vmatprep.subr.bf16.mxu0 0
    %3835 = vmatpush1.bf16.msra.mxu0 0
    %3836 = vmatprep.subr.bf16.mxu0 0
    %3837 = vmatpush1.bf16.msra.mxu0 0
    %3838 = vmatprep.subr.bf16.mxu0 0
    %3839 = vmatpush1.bf16.msra.mxu0 0
    %3840 = vmatprep.subr.bf16.mxu0 0
    %3841 = vmatpush1.bf16.msra.mxu0 0
    %3842 = vmatprep.mubr.bf16.mxu0 0
    %3843 = vmatmul.mubr.bf16.gmra.mrb[0].mxu0 %v3799
    %v3844 = vpop.f32.mrb[0].mxu0
    %v3845 = vadd.f32 0.0, %v3844
    %v3846 = vpop.f32.mrb[0].mxu0
    %v3847 = vpop.f32.mrb[0].mxu0
    %v3848 = vadd.f32 0.0, %v3847
    %v3849 = vpop.f32.mrb[0].mxu0
    %3850 = vmatprep.mubr.bf16.mxu0 0
    %3851 = vmatmul.mubr.bf16.gmra.mrb[0].mxu0 %v3802
    %v3852 = vpop.f32.mrb[0].mxu0
    %v3853 = vadd.f32 0.0, %v3852
    %v3854 = vpop.f32.mrb[0].mxu0
    %v3855 = vpop.f32.mrb[0].mxu0
    %v3856 = vadd.f32 0.0, %v3855
    %v3857 = vpop.f32.mrb[0].mxu0
    %3858 = vmatprep.mubr.bf16.mxu0 0
    %3859 = vmatmul.mubr.bf16.gmra.mrb[0].mxu0 %v3805
    %v3860 = vpop.f32.mrb[0].mxu0
    %v3861 = vadd.f32 0.0, %v3860
    %v3862 = vpop.f32.mrb[0].mxu0
    %v3863 = vpop.f32.mrb[0].mxu0
    %v3864 = vadd.f32 0.0, %v3863
    %v3865 = vpop.f32.mrb[0].mxu0
    %3866 = vmatprep.mubr.bf16.mxu0 0
    %3867 = vmatmul.mubr.bf16.gmra.mrb[0].mxu0 %v3808
    %v3868 = vpop.f32.mrb[0].mxu0
    %v3869 = vadd.f32 0.0, %v3868
    %v3870 = vpop.f32.mrb[0].mxu0
    %v3871 = vpop.f32.mrb[0].mxu0
    %v3872 = vadd.f32 0.0, %v3871
    %v3873 = vpop.f32.mrb[0].mxu0
    %3874 = vdwg.mxu0
    %3875 = vrot.lane.b32.xlu0 %v551, 120
    %v3876 = vpop.permute.xlu0 %3875
    %3877 = vrot.lane.b32.xlu0 %v552, 120
    %v3878 = vpop.permute.xlu0 %3877
    %3879 = vrot.lane.b32.xlu0 %v553, 120
    %v3880 = vpop.permute.xlu0 %3879
    %3881 = vrot.lane.b32.xlu0 %v554, 120
    %v3882 = vpop.permute.xlu0 %3881
    %v3888 = vsel %vm2224, %v3641, 0
    %v3891 = vsel %vm2224, %v3642, 0
    %v3894 = vsel %vm2224, %v3643, 0
    %v3897 = vsel %vm2224, %v3644, 0
    %3899 = vmatprep.subr.bf16.mxu0 0
    %3900 = vmatpush1.bf16.msra.mxu0 %v3876
    %3901 = vmatprep.subr.bf16.mxu0 0
    %3902 = vmatpush1.bf16.msra.mxu0 %v3878
    %3903 = vmatprep.subr.bf16.mxu0 0
    %3904 = vmatpush1.bf16.msra.mxu0 %v3880
    %3905 = vmatprep.subr.bf16.mxu0 0
    %3906 = vmatpush1.bf16.msra.mxu0 %v3882
    %3907 = vmatprep.subr.bf16.mxu0 0
    %3908 = vmatpush1.bf16.msra.mxu0 0
    %3909 = vmatprep.subr.bf16.mxu0 0
    %3910 = vmatpush1.bf16.msra.mxu0 0
    %3911 = vmatprep.subr.bf16.mxu0 0
    %3912 = vmatpush1.bf16.msra.mxu0 0
    %3913 = vmatprep.subr.bf16.mxu0 0
    %3914 = vmatpush1.bf16.msra.mxu0 0
    %3915 = vmatprep.subr.bf16.mxu0 0
    %3916 = vmatpush1.bf16.msra.mxu0 0
    %3917 = vmatprep.subr.bf16.mxu0 0
    %3918 = vmatpush1.bf16.msra.mxu0 0
    %3919 = vmatprep.subr.bf16.mxu0 0
    %3920 = vmatpush1.bf16.msra.mxu0 0
    %3921 = vmatprep.subr.bf16.mxu0 0
    %3922 = vmatpush1.bf16.msra.mxu0 0
    %3923 = vmatprep.subr.bf16.mxu0 0
    %3924 = vmatpush1.bf16.msra.mxu0 0
    %3925 = vmatprep.subr.bf16.mxu0 0
    %3926 = vmatpush1.bf16.msra.mxu0 0
    %3927 = vmatprep.subr.bf16.mxu0 0
    %3928 = vmatpush1.bf16.msra.mxu0 0
    %3929 = vmatprep.subr.bf16.mxu0 0
    %3930 = vmatpush1.bf16.msra.mxu0 0
    %3931 = vmatprep.mubr.bf16.mxu0 0
    %3932 = vmatmul.mubr.bf16.gmra.mrb[0].mxu0 %v3888
    %v3933 = vpop.f32.mrb[0].mxu0
    %v3934 = vadd.f32 0.0, %v3933
    %v3935 = vpop.f32.mrb[0].mxu0
    %v3936 = vpop.f32.mrb[0].mxu0
    %v3937 = vadd.f32 0.0, %v3936
    %v3938 = vpop.f32.mrb[0].mxu0
    %3939 = vmatprep.mubr.bf16.mxu0 0
    %3940 = vmatmul.mubr.bf16.gmra.mrb[0].mxu0 %v3891
    %v3941 = vpop.f32.mrb[0].mxu0
    %v3942 = vadd.f32 0.0, %v3941
    %v3943 = vpop.f32.mrb[0].mxu0
    %v3944 = vpop.f32.mrb[0].mxu0
    %v3945 = vadd.f32 0.0, %v3944
    %v3946 = vpop.f32.mrb[0].mxu0
    %3947 = vmatprep.mubr.bf16.mxu0 0
    %3948 = vmatmul.mubr.bf16.gmra.mrb[0].mxu0 %v3894
    %v3949 = vpop.f32.mrb[0].mxu0
    %v3950 = vadd.f32 0.0, %v3949
    %v3951 = vpop.f32.mrb[0].mxu0
    %v3952 = vpop.f32.mrb[0].mxu0
    %v3953 = vadd.f32 0.0, %v3952
    %v3954 = vpop.f32.mrb[0].mxu0
    %3955 = vmatprep.mubr.bf16.mxu0 0
    %3956 = vmatmul.mubr.bf16.gmra.mrb[0].mxu0 %v3897
    %v3957 = vpop.f32.mrb[0].mxu0
    %v3958 = vadd.f32 0.0, %v3957
    %v3959 = vpop.f32.mrb[0].mxu0
    %v3960 = vpop.f32.mrb[0].mxu0
    %v3961 = vadd.f32 0.0, %v3960
    %v3962 = vpop.f32.mrb[0].mxu0
    %3963 = vdwg.mxu0
    %3964 = vrot.lane.b32.xlu0 %v555, 120
    %v3965 = vpop.permute.xlu0 %3964
    %3966 = vrot.lane.b32.xlu0 %v556, 120
    %v3967 = vpop.permute.xlu0 %3966
    %3968 = vrot.lane.b32.xlu0 %v557, 120
    %v3969 = vpop.permute.xlu0 %3968
    %3970 = vrot.lane.b32.xlu0 %v558, 120
    %v3971 = vpop.permute.xlu0 %3970
    %v3977 = vsel %vm2224, %v3645, 0
    %v3980 = vsel %vm2224, %v3646, 0
    %v3983 = vsel %vm2224, %v3647, 0
    %v3986 = vsel %vm2224, %v3648, 0
    %3988 = vmatprep.subr.bf16.mxu0 0
    %3989 = vmatpush1.bf16.msra.mxu0 %v3965
    %3990 = vmatprep.subr.bf16.mxu0 0
    %3991 = vmatpush1.bf16.msra.mxu0 %v3967
    %3992 = vmatprep.subr.bf16.mxu0 0
    %3993 = vmatpush1.bf16.msra.mxu0 %v3969
    %3994 = vmatprep.subr.bf16.mxu0 0
    %3995 = vmatpush1.bf16.msra.mxu0 %v3971
    %3996 = vmatprep.subr.bf16.mxu0 0
    %3997 = vmatpush1.bf16.msra.mxu0 0
    %3998 = vmatprep.subr.bf16.mxu0 0
    %3999 = vmatpush1.bf16.msra.mxu0 0
    %4000 = vmatprep.subr.bf16.mxu0 0
    %4001 = vmatpush1.bf16.msra.mxu0 0
    %4002 = vmatprep.subr.bf16.mxu0 0
    %4003 = vmatpush1.bf16.msra.mxu0 0
    %4004 = vmatprep.subr.bf16.mxu0 0
    %4005 = vmatpush1.bf16.msra.mxu0 0
    %4006 = vmatprep.subr.bf16.mxu0 0
    %4007 = vmatpush1.bf16.msra.mxu0 0
    %4008 = vmatprep.subr.bf16.mxu0 0
    %4009 = vmatpush1.bf16.msra.mxu0 0
    %4010 = vmatprep.subr.bf16.mxu0 0
    %4011 = vmatpush1.bf16.msra.mxu0 0
    %4012 = vmatprep.subr.bf16.mxu0 0
    %4013 = vmatpush1.bf16.msra.mxu0 0
    %4014 = vmatprep.subr.bf16.mxu0 0
    %4015 = vmatpush1.bf16.msra.mxu0 0
    %4016 = vmatprep.subr.bf16.mxu0 0
    %4017 = vmatpush1.bf16.msra.mxu0 0
    %4018 = vmatprep.subr.bf16.mxu0 0
    %4019 = vmatpush1.bf16.msra.mxu0 0
    %4020 = vmatprep.mubr.bf16.mxu0 0
    %4021 = vmatmul.mubr.bf16.gmra.mrb[0].mxu0 %v3977
    %v4022 = vpop.f32.mrb[0].mxu0
    %v4023 = vadd.f32 0.0, %v4022
    %v4024 = vpop.f32.mrb[0].mxu0
    %v4025 = vpop.f32.mrb[0].mxu0
    %v4026 = vadd.f32 0.0, %v4025
    %v4027 = vpop.f32.mrb[0].mxu0
    %4028 = vmatprep.mubr.bf16.mxu0 0
    %4029 = vmatmul.mubr.bf16.gmra.mrb[0].mxu0 %v3980
    %v4030 = vpop.f32.mrb[0].mxu0
    %v4031 = vadd.f32 0.0, %v4030
    %v4032 = vpop.f32.mrb[0].mxu0
    %v4033 = vpop.f32.mrb[0].mxu0
    %v4034 = vadd.f32 0.0, %v4033
    %v4035 = vpop.f32.mrb[0].mxu0
    %4036 = vmatprep.mubr.bf16.mxu0 0
    %4037 = vmatmul.mubr.bf16.gmra.mrb[0].mxu0 %v3983
    %v4038 = vpop.f32.mrb[0].mxu0
    %v4039 = vadd.f32 0.0, %v4038
    %v4040 = vpop.f32.mrb[0].mxu0
    %v4041 = vpop.f32.mrb[0].mxu0
    %v4042 = vadd.f32 0.0, %v4041
    %v4043 = vpop.f32.mrb[0].mxu0
    %4044 = vmatprep.mubr.bf16.mxu0 0
    %4045 = vmatmul.mubr.bf16.gmra.mrb[0].mxu0 %v3986
    %v4046 = vpop.f32.mrb[0].mxu0
    %v4047 = vadd.f32 0.0, %v4046
    %v4048 = vpop.f32.mrb[0].mxu0
    %v4049 = vpop.f32.mrb[0].mxu0
    %v4050 = vadd.f32 0.0, %v4049
    %v4051 = vpop.f32.mrb[0].mxu0
    %4052 = vdwg.mxu0
    %4053 = vrot.lane.b32.xlu0 %v559, 120
    %v4054 = vpop.permute.xlu0 %4053
    %4055 = vrot.lane.b32.xlu0 %v560, 120
    %v4056 = vpop.permute.xlu0 %4055
    %4057 = vrot.lane.b32.xlu0 %v561, 120
    %v4058 = vpop.permute.xlu0 %4057
    %4059 = vrot.lane.b32.xlu0 %v562, 120
    %v4060 = vpop.permute.xlu0 %4059
    %v4066 = vsel %vm2224, %v3649, 0
    %v4069 = vsel %vm2224, %v3650, 0
    %v4072 = vsel %vm2224, %v3651, 0
    %v4075 = vsel %vm2224, %v3652, 0
    %4077 = vmatprep.subr.bf16.mxu0 0
    %4078 = vmatpush1.bf16.msra.mxu0 %v4054
    %4079 = vmatprep.subr.bf16.mxu0 0
    %4080 = vmatpush1.bf16.msra.mxu0 %v4056
    %4081 = vmatprep.subr.bf16.mxu0 0
    %4082 = vmatpush1.bf16.msra.mxu0 %v4058
    %4083 = vmatprep.subr.bf16.mxu0 0
    %4084 = vmatpush1.bf16.msra.mxu0 %v4060
    %4085 = vmatprep.subr.bf16.mxu0 0
    %4086 = vmatpush1.bf16.msra.mxu0 0
    %4087 = vmatprep.subr.bf16.mxu0 0
    %4088 = vmatpush1.bf16.msra.mxu0 0
    %4089 = vmatprep.subr.bf16.mxu0 0
    %4090 = vmatpush1.bf16.msra.mxu0 0
    %4091 = vmatprep.subr.bf16.mxu0 0
    %4092 = vmatpush1.bf16.msra.mxu0 0
    %4093 = vmatprep.subr.bf16.mxu0 0
    %4094 = vmatpush1.bf16.msra.mxu0 0
    %4095 = vmatprep.subr.bf16.mxu0 0
    %4096 = vmatpush1.bf16.msra.mxu0 0
    %4097 = vmatprep.subr.bf16.mxu0 0
    %4098 = vmatpush1.bf16.msra.mxu0 0
    %4099 = vmatprep.subr.bf16.mxu0 0
    %4100 = vmatpush1.bf16.msra.mxu0 0
    %4101 = vmatprep.subr.bf16.mxu0 0
    %4102 = vmatpush1.bf16.msra.mxu0 0
    %4103 = vmatprep.subr.bf16.mxu0 0
    %4104 = vmatpush1.bf16.msra.mxu0 0
    %4105 = vmatprep.subr.bf16.mxu0 0
    %4106 = vmatpush1.bf16.msra.mxu0 0
    %4107 = vmatprep.subr.bf16.mxu0 0
    %4108 = vmatpush1.bf16.msra.mxu0 0
    %4109 = vmatprep.mubr.bf16.mxu0 0
    %4110 = vmatmul.mubr.bf16.gmra.mrb[0].mxu0 %v4066
    %v4111 = vpop.f32.mrb[0].mxu0
    %v4112 = vadd.f32 0.0, %v4111
    %v4113 = vpop.f32.mrb[0].mxu0
    %v4114 = vpop.f32.mrb[0].mxu0
    %v4115 = vadd.f32 0.0, %v4114
    %v4116 = vpop.f32.mrb[0].mxu0
    %4117 = vmatprep.mubr.bf16.mxu0 0
    %4118 = vmatmul.mubr.bf16.gmra.mrb[0].mxu0 %v4069
    %v4119 = vpop.f32.mrb[0].mxu0
    %v4120 = vadd.f32 0.0, %v4119
    %v4121 = vpop.f32.mrb[0].mxu0
    %v4122 = vpop.f32.mrb[0].mxu0
    %v4123 = vadd.f32 0.0, %v4122
    %v4124 = vpop.f32.mrb[0].mxu0
    %4125 = vmatprep.mubr.bf16.mxu0 0
    %4126 = vmatmul.mubr.bf16.gmra.mrb[0].mxu0 %v4072
    %v4127 = vpop.f32.mrb[0].mxu0
    %v4128 = vadd.f32 0.0, %v4127
    %v4129 = vpop.f32.mrb[0].mxu0
    %v4130 = vpop.f32.mrb[0].mxu0
    %v4131 = vadd.f32 0.0, %v4130
    %v4132 = vpop.f32.mrb[0].mxu0
    %4133 = vmatprep.mubr.bf16.mxu0 0
    %4134 = vmatmul.mubr.bf16.gmra.mrb[0].mxu0 %v4075
    %v4135 = vpop.f32.mrb[0].mxu0
    %v4136 = vadd.f32 0.0, %v4135
    %v4137 = vpop.f32.mrb[0].mxu0
    %v4138 = vpop.f32.mrb[0].mxu0
    %v4139 = vadd.f32 0.0, %v4138
    %v4140 = vpop.f32.mrb[0].mxu0
    %4141 = vdwg.mxu0
    %4142 = vrot.lane.b32.xlu0 %v563, 120
    %v4143 = vpop.permute.xlu0 %4142
    %4144 = vrot.lane.b32.xlu0 %v564, 120
    %v4145 = vpop.permute.xlu0 %4144
    %4146 = vrot.lane.b32.xlu0 %v565, 120
    %v4147 = vpop.permute.xlu0 %4146
    %4148 = vrot.lane.b32.xlu0 %v566, 120
    %v4149 = vpop.permute.xlu0 %4148
    %v4155 = vsel %vm2224, %v3653, 0
    %v4158 = vsel %vm2224, %v3654, 0
    %v4161 = vsel %vm2224, %v3655, 0
    %v4164 = vsel %vm2224, %v3656, 0
    %4166 = vmatprep.subr.bf16.mxu0 0
    %4167 = vmatpush1.bf16.msra.mxu0 %v4143
    %4168 = vmatprep.subr.bf16.mxu0 0
    %4169 = vmatpush1.bf16.msra.mxu0 %v4145
    %4170 = vmatprep.subr.bf16.mxu0 0
    %4171 = vmatpush1.bf16.msra.mxu0 %v4147
    %4172 = vmatprep.subr.bf16.mxu0 0
    %4173 = vmatpush1.bf16.msra.mxu0 %v4149
    %4174 = vmatprep.subr.bf16.mxu0 0
    %4175 = vmatpush1.bf16.msra.mxu0 0
    %4176 = vmatprep.subr.bf16.mxu0 0
    %4177 = vmatpush1.bf16.msra.mxu0 0
    %4178 = vmatprep.subr.bf16.mxu0 0
    %4179 = vmatpush1.bf16.msra.mxu0 0
    %4180 = vmatprep.subr.bf16.mxu0 0
    %4181 = vmatpush1.bf16.msra.mxu0 0
    %4182 = vmatprep.subr.bf16.mxu0 0
    %4183 = vmatpush1.bf16.msra.mxu0 0
    %4184 = vmatprep.subr.bf16.mxu0 0
    %4185 = vmatpush1.bf16.msra.mxu0 0
    %4186 = vmatprep.subr.bf16.mxu0 0
    %4187 = vmatpush1.bf16.msra.mxu0 0
    %4188 = vmatprep.subr.bf16.mxu0 0
    %4189 = vmatpush1.bf16.msra.mxu0 0
    %4190 = vmatprep.subr.bf16.mxu0 0
    %4191 = vmatpush1.bf16.msra.mxu0 0
    %4192 = vmatprep.subr.bf16.mxu0 0
    %4193 = vmatpush1.bf16.msra.mxu0 0
    %4194 = vmatprep.subr.bf16.mxu0 0
    %4195 = vmatpush1.bf16.msra.mxu0 0
    %4196 = vmatprep.subr.bf16.mxu0 0
    %4197 = vmatpush1.bf16.msra.mxu0 0
    %4198 = vmatprep.mubr.bf16.mxu0 0
    %4199 = vmatmul.mubr.bf16.gmra.mrb[0].mxu0 %v4155
    %v4200 = vpop.f32.mrb[0].mxu0
    %v4201 = vadd.f32 0.0, %v4200
    %v4202 = vpop.f32.mrb[0].mxu0
    %v4203 = vpop.f32.mrb[0].mxu0
    %v4204 = vadd.f32 0.0, %v4203
    %v4205 = vpop.f32.mrb[0].mxu0
    %4206 = vmatprep.mubr.bf16.mxu0 0
    %4207 = vmatmul.mubr.bf16.gmra.mrb[0].mxu0 %v4158
    %v4208 = vpop.f32.mrb[0].mxu0
    %v4209 = vadd.f32 0.0, %v4208
    %v4210 = vpop.f32.mrb[0].mxu0
    %v4211 = vpop.f32.mrb[0].mxu0
    %v4212 = vadd.f32 0.0, %v4211
    %v4213 = vpop.f32.mrb[0].mxu0
    %4214 = vmatprep.mubr.bf16.mxu0 0
    %4215 = vmatmul.mubr.bf16.gmra.mrb[0].mxu0 %v4161
    %v4216 = vpop.f32.mrb[0].mxu0
    %v4217 = vadd.f32 0.0, %v4216
    %v4218 = vpop.f32.mrb[0].mxu0
    %v4219 = vpop.f32.mrb[0].mxu0
    %v4220 = vadd.f32 0.0, %v4219
    %v4221 = vpop.f32.mrb[0].mxu0
    %4222 = vmatprep.mubr.bf16.mxu0 0
    %4223 = vmatmul.mubr.bf16.gmra.mrb[0].mxu0 %v4164
    %v4224 = vpop.f32.mrb[0].mxu0
    %v4225 = vadd.f32 0.0, %v4224
    %v4226 = vpop.f32.mrb[0].mxu0
    %v4227 = vpop.f32.mrb[0].mxu0
    %v4228 = vadd.f32 0.0, %v4227
    %v4229 = vpop.f32.mrb[0].mxu0
    %4230 = vdwg.mxu0
    %4231 = vrot.lane.b32.xlu0 %v567, 120
    %v4232 = vpop.permute.xlu0 %4231
    %4233 = vrot.lane.b32.xlu0 %v568, 120
    %v4234 = vpop.permute.xlu0 %4233
    %4235 = vrot.lane.b32.xlu0 %v569, 120
    %v4236 = vpop.permute.xlu0 %4235
    %4237 = vrot.lane.b32.xlu0 %v570, 120
    %v4238 = vpop.permute.xlu0 %4237
    %v4244 = vsel %vm2224, %v3657, 0
    %v4247 = vsel %vm2224, %v3658, 0
    %v4250 = vsel %vm2224, %v3659, 0
    %v4253 = vsel %vm2224, %v3660, 0
    %4255 = vmatprep.subr.bf16.mxu0 0
    %4256 = vmatpush1.bf16.msra.mxu0 %v4232
    %4257 = vmatprep.subr.bf16.mxu0 0
    %4258 = vmatpush1.bf16.msra.mxu0 %v4234
    %4259 = vmatprep.subr.bf16.mxu0 0
    %4260 = vmatpush1.bf16.msra.mxu0 %v4236
    %4261 = vmatprep.subr.bf16.mxu0 0
    %4262 = vmatpush1.bf16.msra.mxu0 %v4238
    %4263 = vmatprep.subr.bf16.mxu0 0
    %4264 = vmatpush1.bf16.msra.mxu0 0
    %4265 = vmatprep.subr.bf16.mxu0 0
    %4266 = vmatpush1.bf16.msra.mxu0 0
    %4267 = vmatprep.subr.bf16.mxu0 0
    %4268 = vmatpush1.bf16.msra.mxu0 0
    %4269 = vmatprep.subr.bf16.mxu0 0
    %4270 = vmatpush1.bf16.msra.mxu0 0
    %4271 = vmatprep.subr.bf16.mxu0 0
    %4272 = vmatpush1.bf16.msra.mxu0 0
    %4273 = vmatprep.subr.bf16.mxu0 0
    %4274 = vmatpush1.bf16.msra.mxu0 0
    %4275 = vmatprep.subr.bf16.mxu0 0
    %4276 = vmatpush1.bf16.msra.mxu0 0
    %4277 = vmatprep.subr.bf16.mxu0 0
    %4278 = vmatpush1.bf16.msra.mxu0 0
    %4279 = vmatprep.subr.bf16.mxu0 0
    %4280 = vmatpush1.bf16.msra.mxu0 0
    %4281 = vmatprep.subr.bf16.mxu0 0
    %4282 = vmatpush1.bf16.msra.mxu0 0
    %4283 = vmatprep.subr.bf16.mxu0 0
    %4284 = vmatpush1.bf16.msra.mxu0 0
    %4285 = vmatprep.subr.bf16.mxu0 0
    %4286 = vmatpush1.bf16.msra.mxu0 0
    %4287 = vmatprep.mubr.bf16.mxu0 0
    %4288 = vmatmul.mubr.bf16.gmra.mrb[0].mxu0 %v4244
    %v4289 = vpop.f32.mrb[0].mxu0
    %v4290 = vadd.f32 0.0, %v4289
    %v4291 = vpop.f32.mrb[0].mxu0
    %v4292 = vpop.f32.mrb[0].mxu0
    %v4293 = vadd.f32 0.0, %v4292
    %v4294 = vpop.f32.mrb[0].mxu0
    %4295 = vmatprep.mubr.bf16.mxu0 0
    %4296 = vmatmul.mubr.bf16.gmra.mrb[0].mxu0 %v4247
    %v4297 = vpop.f32.mrb[0].mxu0
    %v4298 = vadd.f32 0.0, %v4297
    %v4299 = vpop.f32.mrb[0].mxu0
    %v4300 = vpop.f32.mrb[0].mxu0
    %v4301 = vadd.f32 0.0, %v4300
    %v4302 = vpop.f32.mrb[0].mxu0
    %4303 = vmatprep.mubr.bf16.mxu0 0
    %4304 = vmatmul.mubr.bf16.gmra.mrb[0].mxu0 %v4250
    %v4305 = vpop.f32.mrb[0].mxu0
    %v4306 = vadd.f32 0.0, %v4305
    %v4307 = vpop.f32.mrb[0].mxu0
    %v4308 = vpop.f32.mrb[0].mxu0
    %v4309 = vadd.f32 0.0, %v4308
    %v4310 = vpop.f32.mrb[0].mxu0
    %4311 = vmatprep.mubr.bf16.mxu0 0
    %4312 = vmatmul.mubr.bf16.gmra.mrb[0].mxu0 %v4253
    %v4313 = vpop.f32.mrb[0].mxu0
    %v4314 = vadd.f32 0.0, %v4313
    %v4315 = vpop.f32.mrb[0].mxu0
    %v4316 = vpop.f32.mrb[0].mxu0
    %v4317 = vadd.f32 0.0, %v4316
    %v4318 = vpop.f32.mrb[0].mxu0
    %4319 = vdwg.mxu0
    %4320 = vrot.lane.b32.xlu0 %v571, 120
    %v4321 = vpop.permute.xlu0 %4320
    %4322 = vrot.lane.b32.xlu0 %v572, 120
    %v4323 = vpop.permute.xlu0 %4322
    %4324 = vrot.lane.b32.xlu0 %v573, 120
    %v4325 = vpop.permute.xlu0 %4324
    %4326 = vrot.lane.b32.xlu0 %v574, 120
    %v4327 = vpop.permute.xlu0 %4326
    %v4333 = vsel %vm2224, %v3661, 0
    %v4336 = vsel %vm2224, %v3662, 0
    %v4339 = vsel %vm2224, %v3663, 0
    %v4342 = vsel %vm2224, %v3664, 0
    %4344 = vmatprep.subr.bf16.mxu0 0
    %4345 = vmatpush1.bf16.msra.mxu0 %v4321
    %4346 = vmatprep.subr.bf16.mxu0 0
    %4347 = vmatpush1.bf16.msra.mxu0 %v4323
    %4348 = vmatprep.subr.bf16.mxu0 0
    %4349 = vmatpush1.bf16.msra.mxu0 %v4325
    %4350 = vmatprep.subr.bf16.mxu0 0
    %4351 = vmatpush1.bf16.msra.mxu0 %v4327
    %4352 = vmatprep.subr.bf16.mxu0 0
    %4353 = vmatpush1.bf16.msra.mxu0 0
    %4354 = vmatprep.subr.bf16.mxu0 0
    %4355 = vmatpush1.bf16.msra.mxu0 0
    %4356 = vmatprep.subr.bf16.mxu0 0
    %4357 = vmatpush1.bf16.msra.mxu0 0
    %4358 = vmatprep.subr.bf16.mxu0 0
    %4359 = vmatpush1.bf16.msra.mxu0 0
    %4360 = vmatprep.subr.bf16.mxu0 0
    %4361 = vmatpush1.bf16.msra.mxu0 0
    %4362 = vmatprep.subr.bf16.mxu0 0
    %4363 = vmatpush1.bf16.msra.mxu0 0
    %4364 = vmatprep.subr.bf16.mxu0 0
    %4365 = vmatpush1.bf16.msra.mxu0 0
    %4366 = vmatprep.subr.bf16.mxu0 0
    %4367 = vmatpush1.bf16.msra.mxu0 0
    %4368 = vmatprep.subr.bf16.mxu0 0
    %4369 = vmatpush1.bf16.msra.mxu0 0
    %4370 = vmatprep.subr.bf16.mxu0 0
    %4371 = vmatpush1.bf16.msra.mxu0 0
    %4372 = vmatprep.subr.bf16.mxu0 0
    %4373 = vmatpush1.bf16.msra.mxu0 0
    %4374 = vmatprep.subr.bf16.mxu0 0
    %4375 = vmatpush1.bf16.msra.mxu0 0
    %4376 = vmatprep.mubr.bf16.mxu0 0
    %4377 = vmatmul.mubr.bf16.gmra.mrb[0].mxu0 %v4333
    %v4378 = vpop.f32.mrb[0].mxu0
    %v4379 = vadd.f32 0.0, %v4378
    %v4380 = vpop.f32.mrb[0].mxu0
    %v4381 = vpop.f32.mrb[0].mxu0
    %v4382 = vadd.f32 0.0, %v4381
    %v4383 = vpop.f32.mrb[0].mxu0
    %4384 = vmatprep.mubr.bf16.mxu0 0
    %4385 = vmatmul.mubr.bf16.gmra.mrb[0].mxu0 %v4336
    %v4386 = vpop.f32.mrb[0].mxu0
    %v4387 = vadd.f32 0.0, %v4386
    %v4388 = vpop.f32.mrb[0].mxu0
    %v4389 = vpop.f32.mrb[0].mxu0
    %v4390 = vadd.f32 0.0, %v4389
    %v4391 = vpop.f32.mrb[0].mxu0
    %4392 = vmatprep.mubr.bf16.mxu0 0
    %4393 = vmatmul.mubr.bf16.gmra.mrb[0].mxu0 %v4339
    %v4394 = vpop.f32.mrb[0].mxu0
    %v4395 = vadd.f32 0.0, %v4394
    %v4396 = vpop.f32.mrb[0].mxu0
    %v4397 = vpop.f32.mrb[0].mxu0
    %v4398 = vadd.f32 0.0, %v4397
    %v4399 = vpop.f32.mrb[0].mxu0
    %4400 = vmatprep.mubr.bf16.mxu0 0
    %4401 = vmatmul.mubr.bf16.gmra.mrb[0].mxu0 %v4342
    %v4402 = vpop.f32.mrb[0].mxu0
    %v4403 = vadd.f32 0.0, %v4402
    %v4404 = vpop.f32.mrb[0].mxu0
    %v4405 = vpop.f32.mrb[0].mxu0
    %v4406 = vadd.f32 0.0, %v4405
    %v4407 = vpop.f32.mrb[0].mxu0
    %4408 = vdwg.mxu0
    %4409 = vrot.lane.b32.xlu0 %v575, 120
    %v4410 = vpop.permute.xlu0 %4409
    %4411 = vrot.lane.b32.xlu0 %v576, 120
    %v4412 = vpop.permute.xlu0 %4411
    %4413 = vrot.lane.b32.xlu0 %v577, 120
    %v4414 = vpop.permute.xlu0 %4413
    %4415 = vrot.lane.b32.xlu0 %v578, 120
    %v4416 = vpop.permute.xlu0 %4415
    %v4422 = vsel %vm2224, %v3665, 0
    %v4425 = vsel %vm2224, %v3666, 0
    %v4428 = vsel %vm2224, %v3667, 0
    %v4431 = vsel %vm2224, %v3668, 0
    %4433 = vmatprep.subr.bf16.mxu0 0
    %4434 = vmatpush1.bf16.msra.mxu0 %v4410
    %4435 = vmatprep.subr.bf16.mxu0 0
    %4436 = vmatpush1.bf16.msra.mxu0 %v4412
    %4437 = vmatprep.subr.bf16.mxu0 0
    %4438 = vmatpush1.bf16.msra.mxu0 %v4414
    %4439 = vmatprep.subr.bf16.mxu0 0
    %4440 = vmatpush1.bf16.msra.mxu0 %v4416
    %4441 = vmatprep.subr.bf16.mxu0 0
    %4442 = vmatpush1.bf16.msra.mxu0 0
    %4443 = vmatprep.subr.bf16.mxu0 0
    %4444 = vmatpush1.bf16.msra.mxu0 0
    %4445 = vmatprep.subr.bf16.mxu0 0
    %4446 = vmatpush1.bf16.msra.mxu0 0
    %4447 = vmatprep.subr.bf16.mxu0 0
    %4448 = vmatpush1.bf16.msra.mxu0 0
    %4449 = vmatprep.subr.bf16.mxu0 0
    %4450 = vmatpush1.bf16.msra.mxu0 0
    %4451 = vmatprep.subr.bf16.mxu0 0
    %4452 = vmatpush1.bf16.msra.mxu0 0
    %4453 = vmatprep.subr.bf16.mxu0 0
    %4454 = vmatpush1.bf16.msra.mxu0 0
    %4455 = vmatprep.subr.bf16.mxu0 0
    %4456 = vmatpush1.bf16.msra.mxu0 0
    %4457 = vmatprep.subr.bf16.mxu0 0
    %4458 = vmatpush1.bf16.msra.mxu0 0
    %4459 = vmatprep.subr.bf16.mxu0 0
    %4460 = vmatpush1.bf16.msra.mxu0 0
    %4461 = vmatprep.subr.bf16.mxu0 0
    %4462 = vmatpush1.bf16.msra.mxu0 0
    %4463 = vmatprep.subr.bf16.mxu0 0
    %4464 = vmatpush1.bf16.msra.mxu0 0
    %4465 = vmatprep.mubr.bf16.mxu0 0
    %4466 = vmatmul.mubr.bf16.gmra.mrb[0].mxu0 %v4422
    %v4467 = vpop.f32.mrb[0].mxu0
    %v4468 = vadd.f32 0.0, %v4467
    %v4469 = vpop.f32.mrb[0].mxu0
    %v4470 = vpop.f32.mrb[0].mxu0
    %v4471 = vadd.f32 0.0, %v4470
    %v4472 = vpop.f32.mrb[0].mxu0
    %4473 = vmatprep.mubr.bf16.mxu0 0
    %4474 = vmatmul.mubr.bf16.gmra.mrb[0].mxu0 %v4425
    %v4475 = vpop.f32.mrb[0].mxu0
    %v4476 = vadd.f32 0.0, %v4475
    %v4477 = vpop.f32.mrb[0].mxu0
    %v4478 = vpop.f32.mrb[0].mxu0
    %v4479 = vadd.f32 0.0, %v4478
    %v4480 = vpop.f32.mrb[0].mxu0
    %4481 = vmatprep.mubr.bf16.mxu0 0
    %4482 = vmatmul.mubr.bf16.gmra.mrb[0].mxu0 %v4428
    %v4483 = vpop.f32.mrb[0].mxu0
    %v4484 = vadd.f32 0.0, %v4483
    %v4485 = vpop.f32.mrb[0].mxu0
    %v4486 = vpop.f32.mrb[0].mxu0
    %v4487 = vadd.f32 0.0, %v4486
    %v4488 = vpop.f32.mrb[0].mxu0
    %4489 = vmatprep.mubr.bf16.mxu0 0
    %4490 = vmatmul.mubr.bf16.gmra.mrb[0].mxu0 %v4431
    %v4491 = vpop.f32.mrb[0].mxu0
    %v4492 = vadd.f32 0.0, %v4491
    %v4493 = vpop.f32.mrb[0].mxu0
    %v4494 = vpop.f32.mrb[0].mxu0
    %v4495 = vadd.f32 0.0, %v4494
    %v4496 = vpop.f32.mrb[0].mxu0
    %4497 = vdwg.mxu0
    %4498 = vrot.lane.b32.xlu0 %v579, 120
    %v4499 = vpop.permute.xlu0 %4498
    %4500 = vrot.lane.b32.xlu0 %v580, 120
    %v4501 = vpop.permute.xlu0 %4500
    %4502 = vrot.lane.b32.xlu0 %v581, 120
    %v4503 = vpop.permute.xlu0 %4502
    %4504 = vrot.lane.b32.xlu0 %v582, 120
    %v4505 = vpop.permute.xlu0 %4504
    %v4511 = vsel %vm2224, %v3669, 0
    %v4514 = vsel %vm2224, %v3670, 0
    %v4517 = vsel %vm2224, %v3671, 0
    %v4520 = vsel %vm2224, %v3672, 0
    %4522 = vmatprep.subr.bf16.mxu0 0
    %4523 = vmatpush1.bf16.msra.mxu0 %v4499
    %4524 = vmatprep.subr.bf16.mxu0 0
    %4525 = vmatpush1.bf16.msra.mxu0 %v4501
    %4526 = vmatprep.subr.bf16.mxu0 0
    %4527 = vmatpush1.bf16.msra.mxu0 %v4503
    %4528 = vmatprep.subr.bf16.mxu0 0
    %4529 = vmatpush1.bf16.msra.mxu0 %v4505
    %4530 = vmatprep.subr.bf16.mxu0 0
    %4531 = vmatpush1.bf16.msra.mxu0 0
    %4532 = vmatprep.subr.bf16.mxu0 0
    %4533 = vmatpush1.bf16.msra.mxu0 0
    %4534 = vmatprep.subr.bf16.mxu0 0
    %4535 = vmatpush1.bf16.msra.mxu0 0
    %4536 = vmatprep.subr.bf16.mxu0 0
    %4537 = vmatpush1.bf16.msra.mxu0 0
    %4538 = vmatprep.subr.bf16.mxu0 0
    %4539 = vmatpush1.bf16.msra.mxu0 0
    %4540 = vmatprep.subr.bf16.mxu0 0
    %4541 = vmatpush1.bf16.msra.mxu0 0
    %4542 = vmatprep.subr.bf16.mxu0 0
    %4543 = vmatpush1.bf16.msra.mxu0 0
    %4544 = vmatprep.subr.bf16.mxu0 0
    %4545 = vmatpush1.bf16.msra.mxu0 0
    %4546 = vmatprep.subr.bf16.mxu0 0
    %4547 = vmatpush1.bf16.msra.mxu0 0
    %4548 = vmatprep.subr.bf16.mxu0 0
    %4549 = vmatpush1.bf16.msra.mxu0 0
    %4550 = vmatprep.subr.bf16.mxu0 0
    %4551 = vmatpush1.bf16.msra.mxu0 0
    %4552 = vmatprep.subr.bf16.mxu0 0
    %4553 = vmatpush1.bf16.msra.mxu0 0
    %4554 = vmatprep.mubr.bf16.mxu0 0
    %4555 = vmatmul.mubr.bf16.gmra.mrb[0].mxu0 %v4511
    %v4556 = vpop.f32.mrb[0].mxu0
    %v4557 = vadd.f32 0.0, %v4556
    %v4558 = vpop.f32.mrb[0].mxu0
    %v4559 = vpop.f32.mrb[0].mxu0
    %v4560 = vadd.f32 0.0, %v4559
    %v4561 = vpop.f32.mrb[0].mxu0
    %4562 = vmatprep.mubr.bf16.mxu0 0
    %4563 = vmatmul.mubr.bf16.gmra.mrb[0].mxu0 %v4514
    %v4564 = vpop.f32.mrb[0].mxu0
    %v4565 = vadd.f32 0.0, %v4564
    %v4566 = vpop.f32.mrb[0].mxu0
    %v4567 = vpop.f32.mrb[0].mxu0
    %v4568 = vadd.f32 0.0, %v4567
    %v4569 = vpop.f32.mrb[0].mxu0
    %4570 = vmatprep.mubr.bf16.mxu0 0
    %4571 = vmatmul.mubr.bf16.gmra.mrb[0].mxu0 %v4517
    %v4572 = vpop.f32.mrb[0].mxu0
    %v4573 = vadd.f32 0.0, %v4572
    %v4574 = vpop.f32.mrb[0].mxu0
    %v4575 = vpop.f32.mrb[0].mxu0
    %v4576 = vadd.f32 0.0, %v4575
    %v4577 = vpop.f32.mrb[0].mxu0
    %4578 = vmatprep.mubr.bf16.mxu0 0
    %4579 = vmatmul.mubr.bf16.gmra.mrb[0].mxu0 %v4520
    %v4580 = vpop.f32.mrb[0].mxu0
    %v4581 = vadd.f32 0.0, %v4580
    %v4582 = vpop.f32.mrb[0].mxu0
    %v4583 = vpop.f32.mrb[0].mxu0
    %v4584 = vadd.f32 0.0, %v4583
    %v4585 = vpop.f32.mrb[0].mxu0
    %4586 = vdwg.mxu0
    %4587 = vrot.lane.b32.xlu0 %v583, 120
    %v4588 = vpop.permute.xlu0 %4587
    %4589 = vrot.lane.b32.xlu0 %v584, 120
    %v4590 = vpop.permute.xlu0 %4589
    %4591 = vrot.lane.b32.xlu0 %v585, 120
    %v4592 = vpop.permute.xlu0 %4591
    %4593 = vrot.lane.b32.xlu0 %v586, 120
    %v4594 = vpop.permute.xlu0 %4593
    %v4600 = vsel %vm2224, %v3673, 0
    %v4603 = vsel %vm2224, %v3674, 0
    %v4606 = vsel %vm2224, %v3675, 0
    %v4609 = vsel %vm2224, %v3676, 0
    %4611 = vmatprep.subr.bf16.mxu0 0
    %4612 = vmatpush1.bf16.msra.mxu0 %v4588
    %4613 = vmatprep.subr.bf16.mxu0 0
    %4614 = vmatpush1.bf16.msra.mxu0 %v4590
    %4615 = vmatprep.subr.bf16.mxu0 0
    %4616 = vmatpush1.bf16.msra.mxu0 %v4592
    %4617 = vmatprep.subr.bf16.mxu0 0
    %4618 = vmatpush1.bf16.msra.mxu0 %v4594
    %4619 = vmatprep.subr.bf16.mxu0 0
    %4620 = vmatpush1.bf16.msra.mxu0 0
    %4621 = vmatprep.subr.bf16.mxu0 0
    %4622 = vmatpush1.bf16.msra.mxu0 0
    %4623 = vmatprep.subr.bf16.mxu0 0
    %4624 = vmatpush1.bf16.msra.mxu0 0
    %4625 = vmatprep.subr.bf16.mxu0 0
    %4626 = vmatpush1.bf16.msra.mxu0 0
    %4627 = vmatprep.subr.bf16.mxu0 0
    %4628 = vmatpush1.bf16.msra.mxu0 0
    %4629 = vmatprep.subr.bf16.mxu0 0
    %4630 = vmatpush1.bf16.msra.mxu0 0
    %4631 = vmatprep.subr.bf16.mxu0 0
    %4632 = vmatpush1.bf16.msra.mxu0 0
    %4633 = vmatprep.subr.bf16.mxu0 0
    %4634 = vmatpush1.bf16.msra.mxu0 0
    %4635 = vmatprep.subr.bf16.mxu0 0
    %4636 = vmatpush1.bf16.msra.mxu0 0
    %4637 = vmatprep.subr.bf16.mxu0 0
    %4638 = vmatpush1.bf16.msra.mxu0 0
    %4639 = vmatprep.subr.bf16.mxu0 0
    %4640 = vmatpush1.bf16.msra.mxu0 0
    %4641 = vmatprep.subr.bf16.mxu0 0
    %4642 = vmatpush1.bf16.msra.mxu0 0
    %4643 = vmatprep.mubr.bf16.mxu0 0
    %4644 = vmatmul.mubr.bf16.gmra.mrb[0].mxu0 %v4600
    %v4645 = vpop.f32.mrb[0].mxu0
    %v4646 = vadd.f32 0.0, %v4645
    %v4647 = vpop.f32.mrb[0].mxu0
    %v4648 = vpop.f32.mrb[0].mxu0
    %v4649 = vadd.f32 0.0, %v4648
    %v4650 = vpop.f32.mrb[0].mxu0
    %4651 = vmatprep.mubr.bf16.mxu0 0
    %4652 = vmatmul.mubr.bf16.gmra.mrb[0].mxu0 %v4603
    %v4653 = vpop.f32.mrb[0].mxu0
    %v4654 = vadd.f32 0.0, %v4653
    %v4655 = vpop.f32.mrb[0].mxu0
    %v4656 = vpop.f32.mrb[0].mxu0
    %v4657 = vadd.f32 0.0, %v4656
    %v4658 = vpop.f32.mrb[0].mxu0
    %4659 = vmatprep.mubr.bf16.mxu0 0
    %4660 = vmatmul.mubr.bf16.gmra.mrb[0].mxu0 %v4606
    %v4661 = vpop.f32.mrb[0].mxu0
    %v4662 = vadd.f32 0.0, %v4661
    %v4663 = vpop.f32.mrb[0].mxu0
    %v4664 = vpop.f32.mrb[0].mxu0
    %v4665 = vadd.f32 0.0, %v4664
    %v4666 = vpop.f32.mrb[0].mxu0
    %4667 = vmatprep.mubr.bf16.mxu0 0
    %4668 = vmatmul.mubr.bf16.gmra.mrb[0].mxu0 %v4609
    %v4669 = vpop.f32.mrb[0].mxu0
    %v4670 = vadd.f32 0.0, %v4669
    %v4671 = vpop.f32.mrb[0].mxu0
    %v4672 = vpop.f32.mrb[0].mxu0
    %v4673 = vadd.f32 0.0, %v4672
    %v4674 = vpop.f32.mrb[0].mxu0
    %4675 = vdwg.mxu0
    %4676 = vrot.lane.b32.xlu0 %v587, 120
    %v4677 = vpop.permute.xlu0 %4676
    %4678 = vrot.lane.b32.xlu0 %v588, 120
    %v4679 = vpop.permute.xlu0 %4678
    %4680 = vrot.lane.b32.xlu0 %v589, 120
    %v4681 = vpop.permute.xlu0 %4680
    %4682 = vrot.lane.b32.xlu0 %v590, 120
    %v4683 = vpop.permute.xlu0 %4682
    %v4689 = vsel %vm2224, %v3677, 0
    %v4692 = vsel %vm2224, %v3678, 0
    %v4695 = vsel %vm2224, %v3679, 0
    %v4698 = vsel %vm2224, %v3680, 0
    %4700 = vmatprep.subr.bf16.mxu0 0
    %4701 = vmatpush1.bf16.msra.mxu0 %v4677
    %4702 = vmatprep.subr.bf16.mxu0 0
    %4703 = vmatpush1.bf16.msra.mxu0 %v4679
    %4704 = vmatprep.subr.bf16.mxu0 0
    %4705 = vmatpush1.bf16.msra.mxu0 %v4681
    %4706 = vmatprep.subr.bf16.mxu0 0
    %4707 = vmatpush1.bf16.msra.mxu0 %v4683
    %4708 = vmatprep.subr.bf16.mxu0 0
    %4709 = vmatpush1.bf16.msra.mxu0 0
    %4710 = vmatprep.subr.bf16.mxu0 0
    %4711 = vmatpush1.bf16.msra.mxu0 0
    %4712 = vmatprep.subr.bf16.mxu0 0
    %4713 = vmatpush1.bf16.msra.mxu0 0
    %4714 = vmatprep.subr.bf16.mxu0 0
    %4715 = vmatpush1.bf16.msra.mxu0 0
    %4716 = vmatprep.subr.bf16.mxu0 0
    %4717 = vmatpush1.bf16.msra.mxu0 0
    %4718 = vmatprep.subr.bf16.mxu0 0
    %4719 = vmatpush1.bf16.msra.mxu0 0
    %4720 = vmatprep.subr.bf16.mxu0 0
    %4721 = vmatpush1.bf16.msra.mxu0 0
    %4722 = vmatprep.subr.bf16.mxu0 0
    %4723 = vmatpush1.bf16.msra.mxu0 0
    %4724 = vmatprep.subr.bf16.mxu0 0
    %4725 = vmatpush1.bf16.msra.mxu0 0
    %4726 = vmatprep.subr.bf16.mxu0 0
    %4727 = vmatpush1.bf16.msra.mxu0 0
    %4728 = vmatprep.subr.bf16.mxu0 0
    %4729 = vmatpush1.bf16.msra.mxu0 0
    %4730 = vmatprep.subr.bf16.mxu0 0
    %4731 = vmatpush1.bf16.msra.mxu0 0
    %4732 = vmatprep.mubr.bf16.mxu0 0
    %4733 = vmatmul.mubr.bf16.gmra.mrb[0].mxu0 %v4689
    %v4734 = vpop.f32.mrb[0].mxu0
    %v4735 = vadd.f32 0.0, %v4734
    %v4736 = vpop.f32.mrb[0].mxu0
    %v4737 = vpop.f32.mrb[0].mxu0
    %v4738 = vadd.f32 0.0, %v4737
    %v4739 = vpop.f32.mrb[0].mxu0
    %4740 = vmatprep.mubr.bf16.mxu0 0
    %4741 = vmatmul.mubr.bf16.gmra.mrb[0].mxu0 %v4692
    %v4742 = vpop.f32.mrb[0].mxu0
    %v4743 = vadd.f32 0.0, %v4742
    %v4744 = vpop.f32.mrb[0].mxu0
    %v4745 = vpop.f32.mrb[0].mxu0
    %v4746 = vadd.f32 0.0, %v4745
    %v4747 = vpop.f32.mrb[0].mxu0
    %4748 = vmatprep.mubr.bf16.mxu0 0
    %4749 = vmatmul.mubr.bf16.gmra.mrb[0].mxu0 %v4695
    %v4750 = vpop.f32.mrb[0].mxu0
    %v4751 = vadd.f32 0.0, %v4750
    %v4752 = vpop.f32.mrb[0].mxu0
    %v4753 = vpop.f32.mrb[0].mxu0
    %v4754 = vadd.f32 0.0, %v4753
    %v4755 = vpop.f32.mrb[0].mxu0
    %4756 = vmatprep.mubr.bf16.mxu0 0
    %4757 = vmatmul.mubr.bf16.gmra.mrb[0].mxu0 %v4698
    %v4758 = vpop.f32.mrb[0].mxu0
    %v4759 = vadd.f32 0.0, %v4758
    %v4760 = vpop.f32.mrb[0].mxu0
    %v4761 = vpop.f32.mrb[0].mxu0
    %v4762 = vadd.f32 0.0, %v4761
    %v4763 = vpop.f32.mrb[0].mxu0
    %4764 = vdwg.mxu0
    %4765 = vrot.lane.b32.xlu0 %v591, 120
    %v4766 = vpop.permute.xlu0 %4765
    %4767 = vrot.lane.b32.xlu0 %v592, 120
    %v4768 = vpop.permute.xlu0 %4767
    %4769 = vrot.lane.b32.xlu0 %v593, 120
    %v4770 = vpop.permute.xlu0 %4769
    %4771 = vrot.lane.b32.xlu0 %v594, 120
    %v4772 = vpop.permute.xlu0 %4771
    %v4778 = vsel %vm2224, %v3681, 0
    %v4781 = vsel %vm2224, %v3682, 0
    %v4784 = vsel %vm2224, %v3683, 0
    %v4787 = vsel %vm2224, %v3684, 0
    %4789 = vmatprep.subr.bf16.mxu0 0
    %4790 = vmatpush1.bf16.msra.mxu0 %v4766
    %4791 = vmatprep.subr.bf16.mxu0 0
    %4792 = vmatpush1.bf16.msra.mxu0 %v4768
    %4793 = vmatprep.subr.bf16.mxu0 0
    %4794 = vmatpush1.bf16.msra.mxu0 %v4770
    %4795 = vmatprep.subr.bf16.mxu0 0
    %4796 = vmatpush1.bf16.msra.mxu0 %v4772
    %4797 = vmatprep.subr.bf16.mxu0 0
    %4798 = vmatpush1.bf16.msra.mxu0 0
    %4799 = vmatprep.subr.bf16.mxu0 0
    %4800 = vmatpush1.bf16.msra.mxu0 0
    %4801 = vmatprep.subr.bf16.mxu0 0
    %4802 = vmatpush1.bf16.msra.mxu0 0
    %4803 = vmatprep.subr.bf16.mxu0 0
    %4804 = vmatpush1.bf16.msra.mxu0 0
    %4805 = vmatprep.subr.bf16.mxu0 0
    %4806 = vmatpush1.bf16.msra.mxu0 0
    %4807 = vmatprep.subr.bf16.mxu0 0
    %4808 = vmatpush1.bf16.msra.mxu0 0
    %4809 = vmatprep.subr.bf16.mxu0 0
    %4810 = vmatpush1.bf16.msra.mxu0 0
    %4811 = vmatprep.subr.bf16.mxu0 0
    %4812 = vmatpush1.bf16.msra.mxu0 0
    %4813 = vmatprep.subr.bf16.mxu0 0
    %4814 = vmatpush1.bf16.msra.mxu0 0
    %4815 = vmatprep.subr.bf16.mxu0 0
    %4816 = vmatpush1.bf16.msra.mxu0 0
    %4817 = vmatprep.subr.bf16.mxu0 0
    %4818 = vmatpush1.bf16.msra.mxu0 0
    %4819 = vmatprep.subr.bf16.mxu0 0
    %4820 = vmatpush1.bf16.msra.mxu0 0
    %4821 = vmatprep.mubr.bf16.mxu0 0
    %4822 = vmatmul.mubr.bf16.gmra.mrb[0].mxu0 %v4778
    %v4823 = vpop.f32.mrb[0].mxu0
    %v4824 = vadd.f32 0.0, %v4823
    %v4825 = vpop.f32.mrb[0].mxu0
    %v4826 = vpop.f32.mrb[0].mxu0
    %v4827 = vadd.f32 0.0, %v4826
    %v4828 = vpop.f32.mrb[0].mxu0
    %4829 = vmatprep.mubr.bf16.mxu0 0
    %4830 = vmatmul.mubr.bf16.gmra.mrb[0].mxu0 %v4781
    %v4831 = vpop.f32.mrb[0].mxu0
    %v4832 = vadd.f32 0.0, %v4831
    %v4833 = vpop.f32.mrb[0].mxu0
    %v4834 = vpop.f32.mrb[0].mxu0
    %v4835 = vadd.f32 0.0, %v4834
    %v4836 = vpop.f32.mrb[0].mxu0
    %4837 = vmatprep.mubr.bf16.mxu0 0
    %4838 = vmatmul.mubr.bf16.gmra.mrb[0].mxu0 %v4784
    %v4839 = vpop.f32.mrb[0].mxu0
    %v4840 = vadd.f32 0.0, %v4839
    %v4841 = vpop.f32.mrb[0].mxu0
    %v4842 = vpop.f32.mrb[0].mxu0
    %v4843 = vadd.f32 0.0, %v4842
    %v4844 = vpop.f32.mrb[0].mxu0
    %4845 = vmatprep.mubr.bf16.mxu0 0
    %4846 = vmatmul.mubr.bf16.gmra.mrb[0].mxu0 %v4787
    %v4847 = vpop.f32.mrb[0].mxu0
    %v4848 = vadd.f32 0.0, %v4847
    %v4849 = vpop.f32.mrb[0].mxu0
    %v4850 = vpop.f32.mrb[0].mxu0
    %v4851 = vadd.f32 0.0, %v4850
    %v4852 = vpop.f32.mrb[0].mxu0
    %4853 = vdwg.mxu0
    %4854 = vrot.lane.b32.xlu0 %v595, 120
    %v4855 = vpop.permute.xlu0 %4854
    %4856 = vrot.lane.b32.xlu0 %v596, 120
    %v4857 = vpop.permute.xlu0 %4856
    %4858 = vrot.lane.b32.xlu0 %v597, 120
    %v4859 = vpop.permute.xlu0 %4858
    %4860 = vrot.lane.b32.xlu0 %v598, 120
    %v4861 = vpop.permute.xlu0 %4860
    %v4867 = vsel %vm2224, %v3685, 0
    %v4870 = vsel %vm2224, %v3686, 0
    %v4873 = vsel %vm2224, %v3687, 0
    %v4876 = vsel %vm2224, %v3688, 0
    %4878 = vmatprep.subr.bf16.mxu0 0
    %4879 = vmatpush1.bf16.msra.mxu0 %v4855
    %4880 = vmatprep.subr.bf16.mxu0 0
    %4881 = vmatpush1.bf16.msra.mxu0 %v4857
    %4882 = vmatprep.subr.bf16.mxu0 0
    %4883 = vmatpush1.bf16.msra.mxu0 %v4859
    %4884 = vmatprep.subr.bf16.mxu0 0
    %4885 = vmatpush1.bf16.msra.mxu0 %v4861
    %4886 = vmatprep.subr.bf16.mxu0 0
    %4887 = vmatpush1.bf16.msra.mxu0 0
    %4888 = vmatprep.subr.bf16.mxu0 0
    %4889 = vmatpush1.bf16.msra.mxu0 0
    %4890 = vmatprep.subr.bf16.mxu0 0
    %4891 = vmatpush1.bf16.msra.mxu0 0
    %4892 = vmatprep.subr.bf16.mxu0 0
    %4893 = vmatpush1.bf16.msra.mxu0 0
    %4894 = vmatprep.subr.bf16.mxu0 0
    %4895 = vmatpush1.bf16.msra.mxu0 0
    %4896 = vmatprep.subr.bf16.mxu0 0
    %4897 = vmatpush1.bf16.msra.mxu0 0
    %4898 = vmatprep.subr.bf16.mxu0 0
    %4899 = vmatpush1.bf16.msra.mxu0 0
    %4900 = vmatprep.subr.bf16.mxu0 0
    %4901 = vmatpush1.bf16.msra.mxu0 0
    %4902 = vmatprep.subr.bf16.mxu0 0
    %4903 = vmatpush1.bf16.msra.mxu0 0
    %4904 = vmatprep.subr.bf16.mxu0 0
    %4905 = vmatpush1.bf16.msra.mxu0 0
    %4906 = vmatprep.subr.bf16.mxu0 0
    %4907 = vmatpush1.bf16.msra.mxu0 0
    %4908 = vmatprep.subr.bf16.mxu0 0
    %4909 = vmatpush1.bf16.msra.mxu0 0
    %4910 = vmatprep.mubr.bf16.mxu0 0
    %4911 = vmatmul.mubr.bf16.gmra.mrb[0].mxu0 %v4867
    %v4912 = vpop.f32.mrb[0].mxu0
    %v4913 = vadd.f32 0.0, %v4912
    %v4914 = vpop.f32.mrb[0].mxu0
    %v4915 = vpop.f32.mrb[0].mxu0
    %v4916 = vadd.f32 0.0, %v4915
    %v4917 = vpop.f32.mrb[0].mxu0
    %4918 = vmatprep.mubr.bf16.mxu0 0
    %4919 = vmatmul.mubr.bf16.gmra.mrb[0].mxu0 %v4870
    %v4920 = vpop.f32.mrb[0].mxu0
    %v4921 = vadd.f32 0.0, %v4920
    %v4922 = vpop.f32.mrb[0].mxu0
    %v4923 = vpop.f32.mrb[0].mxu0
    %v4924 = vadd.f32 0.0, %v4923
    %v4925 = vpop.f32.mrb[0].mxu0
    %4926 = vmatprep.mubr.bf16.mxu0 0
    %4927 = vmatmul.mubr.bf16.gmra.mrb[0].mxu0 %v4873
    %v4928 = vpop.f32.mrb[0].mxu0
    %v4929 = vadd.f32 0.0, %v4928
    %v4930 = vpop.f32.mrb[0].mxu0
    %v4931 = vpop.f32.mrb[0].mxu0
    %v4932 = vadd.f32 0.0, %v4931
    %v4933 = vpop.f32.mrb[0].mxu0
    %4934 = vmatprep.mubr.bf16.mxu0 0
    %4935 = vmatmul.mubr.bf16.gmra.mrb[0].mxu0 %v4876
    %v4936 = vpop.f32.mrb[0].mxu0
    %v4937 = vadd.f32 0.0, %v4936
    %v4938 = vpop.f32.mrb[0].mxu0
    %v4939 = vpop.f32.mrb[0].mxu0
    %v4940 = vadd.f32 0.0, %v4939
    %v4941 = vpop.f32.mrb[0].mxu0
    %4942 = vdwg.mxu0
    %4943 = vrot.lane.b32.xlu0 %v599, 120
    %v4944 = vpop.permute.xlu0 %4943
    %4945 = vrot.lane.b32.xlu0 %v600, 120
    %v4946 = vpop.permute.xlu0 %4945
    %4947 = vrot.lane.b32.xlu0 %v601, 120
    %v4948 = vpop.permute.xlu0 %4947
    %4949 = vrot.lane.b32.xlu0 %v602, 120
    %v4950 = vpop.permute.xlu0 %4949
    %v4956 = vsel %vm2224, %v3689, 0
    %v4959 = vsel %vm2224, %v3690, 0
    %v4962 = vsel %vm2224, %v3691, 0
    %v4965 = vsel %vm2224, %v3692, 0
    %4967 = vmatprep.subr.bf16.mxu0 0
    %4968 = vmatpush1.bf16.msra.mxu0 %v4944
    %4969 = vmatprep.subr.bf16.mxu0 0
    %4970 = vmatpush1.bf16.msra.mxu0 %v4946
    %4971 = vmatprep.subr.bf16.mxu0 0
    %4972 = vmatpush1.bf16.msra.mxu0 %v4948
    %4973 = vmatprep.subr.bf16.mxu0 0
    %4974 = vmatpush1.bf16.msra.mxu0 %v4950
    %4975 = vmatprep.subr.bf16.mxu0 0
    %4976 = vmatpush1.bf16.msra.mxu0 0
    %4977 = vmatprep.subr.bf16.mxu0 0
    %4978 = vmatpush1.bf16.msra.mxu0 0
    %4979 = vmatprep.subr.bf16.mxu0 0
    %4980 = vmatpush1.bf16.msra.mxu0 0
    %4981 = vmatprep.subr.bf16.mxu0 0
    %4982 = vmatpush1.bf16.msra.mxu0 0
    %4983 = vmatprep.subr.bf16.mxu0 0
    %4984 = vmatpush1.bf16.msra.mxu0 0
    %4985 = vmatprep.subr.bf16.mxu0 0
    %4986 = vmatpush1.bf16.msra.mxu0 0
    %4987 = vmatprep.subr.bf16.mxu0 0
    %4988 = vmatpush1.bf16.msra.mxu0 0
    %4989 = vmatprep.subr.bf16.mxu0 0
    %4990 = vmatpush1.bf16.msra.mxu0 0
    %4991 = vmatprep.subr.bf16.mxu0 0
    %4992 = vmatpush1.bf16.msra.mxu0 0
    %4993 = vmatprep.subr.bf16.mxu0 0
    %4994 = vmatpush1.bf16.msra.mxu0 0
    %4995 = vmatprep.subr.bf16.mxu0 0
    %4996 = vmatpush1.bf16.msra.mxu0 0
    %4997 = vmatprep.subr.bf16.mxu0 0
    %4998 = vmatpush1.bf16.msra.mxu0 0
    %4999 = vmatprep.mubr.bf16.mxu0 0
    %5000 = vmatmul.mubr.bf16.gmra.mrb[0].mxu0 %v4956
    %v5001 = vpop.f32.mrb[0].mxu0
    %v5002 = vadd.f32 0.0, %v5001
    %v5003 = vpop.f32.mrb[0].mxu0
    %v5004 = vpop.f32.mrb[0].mxu0
    %v5005 = vadd.f32 0.0, %v5004
    %v5006 = vpop.f32.mrb[0].mxu0
    %5007 = vmatprep.mubr.bf16.mxu0 0
    %5008 = vmatmul.mubr.bf16.gmra.mrb[0].mxu0 %v4959
    %v5009 = vpop.f32.mrb[0].mxu0
    %v5010 = vadd.f32 0.0, %v5009
    %v5011 = vpop.f32.mrb[0].mxu0
    %v5012 = vpop.f32.mrb[0].mxu0
    %v5013 = vadd.f32 0.0, %v5012
    %v5014 = vpop.f32.mrb[0].mxu0
    %5015 = vmatprep.mubr.bf16.mxu0 0
    %5016 = vmatmul.mubr.bf16.gmra.mrb[0].mxu0 %v4962
    %v5017 = vpop.f32.mrb[0].mxu0
    %v5018 = vadd.f32 0.0, %v5017
    %v5019 = vpop.f32.mrb[0].mxu0
    %v5020 = vpop.f32.mrb[0].mxu0
    %v5021 = vadd.f32 0.0, %v5020
    %v5022 = vpop.f32.mrb[0].mxu0
    %5023 = vmatprep.mubr.bf16.mxu0 0
    %5024 = vmatmul.mubr.bf16.gmra.mrb[0].mxu0 %v4965
    %v5025 = vpop.f32.mrb[0].mxu0
    %v5026 = vadd.f32 0.0, %v5025
    %v5027 = vpop.f32.mrb[0].mxu0
    %v5028 = vpop.f32.mrb[0].mxu0
    %v5029 = vadd.f32 0.0, %v5028
    %v5030 = vpop.f32.mrb[0].mxu0
    %5031 = vdwg.mxu0
    %5032 = vrot.lane.b32.xlu0 %v603, 120
    %v5033 = vpop.permute.xlu0 %5032
    %5034 = vrot.lane.b32.xlu0 %v604, 120
    %v5035 = vpop.permute.xlu0 %5034
    %5036 = vrot.lane.b32.xlu0 %v605, 120
    %v5037 = vpop.permute.xlu0 %5036
    %5038 = vrot.lane.b32.xlu0 %v606, 120
    %v5039 = vpop.permute.xlu0 %5038
    %v5045 = vsel %vm2224, %v3693, 0
    %v5048 = vsel %vm2224, %v3694, 0
    %v5051 = vsel %vm2224, %v3695, 0
    %v5054 = vsel %vm2224, %v3696, 0
    %5056 = vmatprep.subr.bf16.mxu0 0
    %5057 = vmatpush1.bf16.msra.mxu0 %v5033
    %5058 = vmatprep.subr.bf16.mxu0 0
    %5059 = vmatpush1.bf16.msra.mxu0 %v5035
    %5060 = vmatprep.subr.bf16.mxu0 0
    %5061 = vmatpush1.bf16.msra.mxu0 %v5037
    %5062 = vmatprep.subr.bf16.mxu0 0
    %5063 = vmatpush1.bf16.msra.mxu0 %v5039
    %5064 = vmatprep.subr.bf16.mxu0 0
    %5065 = vmatpush1.bf16.msra.mxu0 0
    %5066 = vmatprep.subr.bf16.mxu0 0
    %5067 = vmatpush1.bf16.msra.mxu0 0
    %5068 = vmatprep.subr.bf16.mxu0 0
    %5069 = vmatpush1.bf16.msra.mxu0 0
    %5070 = vmatprep.subr.bf16.mxu0 0
    %5071 = vmatpush1.bf16.msra.mxu0 0
    %5072 = vmatprep.subr.bf16.mxu0 0
    %5073 = vmatpush1.bf16.msra.mxu0 0
    %5074 = vmatprep.subr.bf16.mxu0 0
    %5075 = vmatpush1.bf16.msra.mxu0 0
    %5076 = vmatprep.subr.bf16.mxu0 0
    %5077 = vmatpush1.bf16.msra.mxu0 0
    %5078 = vmatprep.subr.bf16.mxu0 0
    %5079 = vmatpush1.bf16.msra.mxu0 0
    %5080 = vmatprep.subr.bf16.mxu0 0
    %5081 = vmatpush1.bf16.msra.mxu0 0
    %5082 = vmatprep.subr.bf16.mxu0 0
    %5083 = vmatpush1.bf16.msra.mxu0 0
    %5084 = vmatprep.subr.bf16.mxu0 0
    %5085 = vmatpush1.bf16.msra.mxu0 0
    %5086 = vmatprep.subr.bf16.mxu0 0
    %5087 = vmatpush1.bf16.msra.mxu0 0
    %5088 = vmatprep.mubr.bf16.mxu0 0
    %5089 = vmatmul.mubr.bf16.gmra.mrb[0].mxu0 %v5045
    %v5090 = vpop.f32.mrb[0].mxu0
    %v5091 = vadd.f32 0.0, %v5090
    %v5092 = vpop.f32.mrb[0].mxu0
    %v5093 = vpop.f32.mrb[0].mxu0
    %v5094 = vadd.f32 0.0, %v5093
    %v5095 = vpop.f32.mrb[0].mxu0
    %5096 = vmatprep.mubr.bf16.mxu0 0
    %5097 = vmatmul.mubr.bf16.gmra.mrb[0].mxu0 %v5048
    %v5098 = vpop.f32.mrb[0].mxu0
    %v5099 = vadd.f32 0.0, %v5098
    %v5100 = vpop.f32.mrb[0].mxu0
    %v5101 = vpop.f32.mrb[0].mxu0
    %v5102 = vadd.f32 0.0, %v5101
    %v5103 = vpop.f32.mrb[0].mxu0
    %5104 = vmatprep.mubr.bf16.mxu0 0
    %5105 = vmatmul.mubr.bf16.gmra.mrb[0].mxu0 %v5051
    %v5106 = vpop.f32.mrb[0].mxu0
    %v5107 = vadd.f32 0.0, %v5106
    %v5108 = vpop.f32.mrb[0].mxu0
    %v5109 = vpop.f32.mrb[0].mxu0
    %v5110 = vadd.f32 0.0, %v5109
    %v5111 = vpop.f32.mrb[0].mxu0
    %5112 = vmatprep.mubr.bf16.mxu0 0
    %5113 = vmatmul.mubr.bf16.gmra.mrb[0].mxu0 %v5054
    %v5114 = vpop.f32.mrb[0].mxu0
    %v5115 = vadd.f32 0.0, %v5114
    %v5116 = vpop.f32.mrb[0].mxu0
    %v5117 = vpop.f32.mrb[0].mxu0
    %v5118 = vadd.f32 0.0, %v5117
    %v5119 = vpop.f32.mrb[0].mxu0
    %5120 = vdwg.mxu0
    %v5121 = vpack.c.bf16 %v3759, %v3756
    %v5122 = vpack.c.bf16 %v3767, %v3764
    %v5123 = vpack.c.bf16 %v3775, %v3772
    %v5124 = vpack.c.bf16 %v3783, %v3780
    %v5125 = vpack.c.bf16 %v3848, %v3845
    %v5126 = vpack.c.bf16 %v3856, %v3853
    %v5127 = vpack.c.bf16 %v3864, %v3861
    %v5128 = vpack.c.bf16 %v3872, %v3869
    %v5129 = vpack.c.bf16 %v3937, %v3934
    %v5130 = vpack.c.bf16 %v3945, %v3942
    %v5131 = vpack.c.bf16 %v3953, %v3950
    %v5132 = vpack.c.bf16 %v3961, %v3958
    %v5133 = vpack.c.bf16 %v4026, %v4023
    %v5134 = vpack.c.bf16 %v4034, %v4031
    %v5135 = vpack.c.bf16 %v4042, %v4039
    %v5136 = vpack.c.bf16 %v4050, %v4047
    %v5137 = vpack.c.bf16 %v4115, %v4112
    %v5138 = vpack.c.bf16 %v4123, %v4120
    %v5139 = vpack.c.bf16 %v4131, %v4128
    %v5140 = vpack.c.bf16 %v4139, %v4136
    %v5141 = vpack.c.bf16 %v4204, %v4201
    %v5142 = vpack.c.bf16 %v4212, %v4209
    %v5143 = vpack.c.bf16 %v4220, %v4217
    %v5144 = vpack.c.bf16 %v4228, %v4225
    %v5145 = vpack.c.bf16 %v4293, %v4290
    %v5146 = vpack.c.bf16 %v4301, %v4298
    %v5147 = vpack.c.bf16 %v4309, %v4306
    %v5148 = vpack.c.bf16 %v4317, %v4314
    %v5149 = vpack.c.bf16 %v4382, %v4379
    %v5150 = vpack.c.bf16 %v4390, %v4387
    %v5151 = vpack.c.bf16 %v4398, %v4395
    %v5152 = vpack.c.bf16 %v4406, %v4403
    %v5153 = vpack.c.bf16 %v4471, %v4468
    %v5154 = vpack.c.bf16 %v4479, %v4476
    %v5155 = vpack.c.bf16 %v4487, %v4484
    %v5156 = vpack.c.bf16 %v4495, %v4492
    %v5157 = vpack.c.bf16 %v4560, %v4557
    %v5158 = vpack.c.bf16 %v4568, %v4565
    %v5159 = vpack.c.bf16 %v4576, %v4573
    %v5160 = vpack.c.bf16 %v4584, %v4581
    %v5161 = vpack.c.bf16 %v4649, %v4646
    %v5162 = vpack.c.bf16 %v4657, %v4654
    %v5163 = vpack.c.bf16 %v4665, %v4662
    %v5164 = vpack.c.bf16 %v4673, %v4670
    %v5165 = vpack.c.bf16 %v4738, %v4735
    %v5166 = vpack.c.bf16 %v4746, %v4743
    %v5167 = vpack.c.bf16 %v4754, %v4751
    %v5168 = vpack.c.bf16 %v4762, %v4759
    %v5169 = vpack.c.bf16 %v4827, %v4824
    %v5170 = vpack.c.bf16 %v4835, %v4832
    %v5171 = vpack.c.bf16 %v4843, %v4840
    %v5172 = vpack.c.bf16 %v4851, %v4848
    %v5173 = vpack.c.bf16 %v4916, %v4913
    %v5174 = vpack.c.bf16 %v4924, %v4921
    %v5175 = vpack.c.bf16 %v4932, %v4929
    %v5176 = vpack.c.bf16 %v4940, %v4937
    %v5177 = vpack.c.bf16 %v5005, %v5002
    %v5178 = vpack.c.bf16 %v5013, %v5010
    %v5179 = vpack.c.bf16 %v5021, %v5018
    %v5180 = vpack.c.bf16 %v5029, %v5026
    %v5181 = vpack.c.bf16 %v5094, %v5091
    %v5182 = vpack.c.bf16 %v5102, %v5099
    %v5183 = vpack.c.bf16 %v5110, %v5107
    %v5184 = vpack.c.bf16 %v5118, %v5115
    %v5185 = vld [vmem:[%s3] sm:$0x3]
    %v5186 = vld [vmem:[%s3 + $0x2] sm:$0x3]
    %v5187 = vld [vmem:[%s3 + $0x4] sm:$0x3]
    %v5188 = vld [vmem:[%s3 + $0x6] sm:$0x3]
    %v5189 = vld [vmem:[%s3 + $0x8] sm:$0x3]
    %v5190 = vld [vmem:[%s3 + $0xa] sm:$0x3]
    %v5191 = vld [vmem:[%s3 + $0xc] sm:$0x3]
    %v5192 = vld [vmem:[%s3 + $0xe] sm:$0x3]
    %v5193 = vld [vmem:[%s3 + $0x10] sm:$0x3]
    %v5194 = vld [vmem:[%s3 + $0x12] sm:$0x3]
    %v5195 = vld [vmem:[%s3 + $0x14] sm:$0x3]
    %v5196 = vld [vmem:[%s3 + $0x16] sm:$0x3]
    %v5197 = vld [vmem:[%s3 + $0x18] sm:$0x3]
    %v5198 = vld [vmem:[%s3 + $0x1a] sm:$0x3]
    %v5199 = vld [vmem:[%s3 + $0x1c] sm:$0x3]
    %v5200 = vld [vmem:[%s3 + $0x1e] sm:$0x3]
    %v5202 = vsel %vm619, %v5121, 0
    %v5205 = vsel %vm619, %v5122, 0
    %v5208 = vsel %vm619, %v5123, 0
    %v5211 = vsel %vm619, %v5124, 0
    %vm5213 = vcmask 1041408
    %v5215 = vsel %vm5213, %v5185, 0
    %5217 = vmatprep.subr.bf16.mxu0 0
    %5218 = vmatpush1.bf16.msra.mxu0 %v5215
    %5219 = vmatprep.subr.bf16.mxu0 0
    %5220 = vmatpush1.bf16.msra.mxu0 0
    %5221 = vmatprep.subr.bf16.mxu0 0
    %5222 = vmatpush1.bf16.msra.mxu0 0
    %5223 = vmatprep.subr.bf16.mxu0 0
    %5224 = vmatpush1.bf16.msra.mxu0 0
    %5225 = vmatprep.subr.bf16.mxu0 0
    %5226 = vmatpush1.bf16.msra.mxu0 0
    %5227 = vmatprep.subr.bf16.mxu0 0
    %5228 = vmatpush1.bf16.msra.mxu0 0
    %5229 = vmatprep.subr.bf16.mxu0 0
    %5230 = vmatpush1.bf16.msra.mxu0 0
    %5231 = vmatprep.subr.bf16.mxu0 0
    %5232 = vmatpush1.bf16.msra.mxu0 0
    %5233 = vmatprep.subr.bf16.mxu0 0
    %5234 = vmatpush1.bf16.msra.mxu0 0
    %5235 = vmatprep.subr.bf16.mxu0 0
    %5236 = vmatpush1.bf16.msra.mxu0 0
    %5237 = vmatprep.subr.bf16.mxu0 0
    %5238 = vmatpush1.bf16.msra.mxu0 0
    %5239 = vmatprep.subr.bf16.mxu0 0
    %5240 = vmatpush1.bf16.msra.mxu0 0
    %5241 = vmatprep.subr.bf16.mxu0 0
    %5242 = vmatpush1.bf16.msra.mxu0 0
    %5243 = vmatprep.subr.bf16.mxu0 0
    %5244 = vmatpush1.bf16.msra.mxu0 0
    %5245 = vmatprep.subr.bf16.mxu0 0
    %5246 = vmatpush1.bf16.msra.mxu0 0
    %5247 = vmatprep.subr.bf16.mxu0 0
    %5248 = vmatpush1.bf16.msra.mxu0 0
    %5249 = vmatprep.mubr.bf16.mxu0 0
    %5250 = vmatmul.mubr.bf16.gmra.mrb[0].mxu0 %v5202
    %v5251 = vpop.f32.mrb[0].mxu0
    %v5252 = vadd.f32 0.0, %v5251
    %v5253 = vpop.f32.mrb[0].mxu0
    %v5254 = vpop.f32.mrb[0].mxu0
    %v5255 = vadd.f32 0.0, %v5254
    %v5256 = vpop.f32.mrb[0].mxu0
    %5257 = vmatprep.mubr.bf16.mxu0 0
    %5258 = vmatmul.mubr.bf16.gmra.mrb[0].mxu0 %v5205
    %v5259 = vpop.f32.mrb[0].mxu0
    %v5260 = vadd.f32 0.0, %v5259
    %v5261 = vpop.f32.mrb[0].mxu0
    %v5262 = vpop.f32.mrb[0].mxu0
    %v5263 = vadd.f32 0.0, %v5262
    %v5264 = vpop.f32.mrb[0].mxu0
    %5265 = vmatprep.mubr.bf16.mxu0 0
    %5266 = vmatmul.mubr.bf16.gmra.mrb[0].mxu0 %v5208
    %v5267 = vpop.f32.mrb[0].mxu0
    %v5268 = vadd.f32 0.0, %v5267
    %v5269 = vpop.f32.mrb[0].mxu0
    %v5270 = vpop.f32.mrb[0].mxu0
    %v5271 = vadd.f32 0.0, %v5270
    %v5272 = vpop.f32.mrb[0].mxu0
    %5273 = vmatprep.mubr.bf16.mxu0 0
    %5274 = vmatmul.mubr.bf16.gmra.mrb[0].mxu0 %v5211
    %v5275 = vpop.f32.mrb[0].mxu0
    %v5276 = vadd.f32 0.0, %v5275
    %v5277 = vpop.f32.mrb[0].mxu0
    %v5278 = vpop.f32.mrb[0].mxu0
    %v5279 = vadd.f32 0.0, %v5278
    %v5280 = vpop.f32.mrb[0].mxu0
    %5281 = vdwg.mxu0
    %v5283 = vsel %vm619, %v5125, 0
    %v5286 = vsel %vm619, %v5126, 0
    %v5289 = vsel %vm619, %v5127, 0
    %v5292 = vsel %vm619, %v5128, 0
    %v5295 = vsel %vm5213, %v5186, 0
    %5297 = vmatprep.subr.bf16.mxu0 0
    %5298 = vmatpush1.bf16.msra.mxu0 %v5295
    %5299 = vmatprep.subr.bf16.mxu0 0
    %5300 = vmatpush1.bf16.msra.mxu0 0
    %5301 = vmatprep.subr.bf16.mxu0 0
    %5302 = vmatpush1.bf16.msra.mxu0 0
    %5303 = vmatprep.subr.bf16.mxu0 0
    %5304 = vmatpush1.bf16.msra.mxu0 0
    %5305 = vmatprep.subr.bf16.mxu0 0
    %5306 = vmatpush1.bf16.msra.mxu0 0
    %5307 = vmatprep.subr.bf16.mxu0 0
    %5308 = vmatpush1.bf16.msra.mxu0 0
    %5309 = vmatprep.subr.bf16.mxu0 0
    %5310 = vmatpush1.bf16.msra.mxu0 0
    %5311 = vmatprep.subr.bf16.mxu0 0
    %5312 = vmatpush1.bf16.msra.mxu0 0
    %5313 = vmatprep.subr.bf16.mxu0 0
    %5314 = vmatpush1.bf16.msra.mxu0 0
    %5315 = vmatprep.subr.bf16.mxu0 0
    %5316 = vmatpush1.bf16.msra.mxu0 0
    %5317 = vmatprep.subr.bf16.mxu0 0
    %5318 = vmatpush1.bf16.msra.mxu0 0
    %5319 = vmatprep.subr.bf16.mxu0 0
    %5320 = vmatpush1.bf16.msra.mxu0 0
    %5321 = vmatprep.subr.bf16.mxu0 0
    %5322 = vmatpush1.bf16.msra.mxu0 0
    %5323 = vmatprep.subr.bf16.mxu0 0
    %5324 = vmatpush1.bf16.msra.mxu0 0
    %5325 = vmatprep.subr.bf16.mxu0 0
    %5326 = vmatpush1.bf16.msra.mxu0 0
    %5327 = vmatprep.subr.bf16.mxu0 0
    %5328 = vmatpush1.bf16.msra.mxu0 0
    %5329 = vmatprep.mubr.bf16.mxu0 0
    %5330 = vmatmul.mubr.bf16.gmra.mrb[0].mxu0 %v5283
    %v5331 = vpop.f32.mrb[0].mxu0
    %v5332 = vadd.f32 0.0, %v5331
    %v5333 = vpop.f32.mrb[0].mxu0
    %v5334 = vpop.f32.mrb[0].mxu0
    %v5335 = vadd.f32 0.0, %v5334
    %v5336 = vpop.f32.mrb[0].mxu0
    %5337 = vmatprep.mubr.bf16.mxu0 0
    %5338 = vmatmul.mubr.bf16.gmra.mrb[0].mxu0 %v5286
    %v5339 = vpop.f32.mrb[0].mxu0
    %v5340 = vadd.f32 0.0, %v5339
    %v5341 = vpop.f32.mrb[0].mxu0
    %v5342 = vpop.f32.mrb[0].mxu0
    %v5343 = vadd.f32 0.0, %v5342
    %v5344 = vpop.f32.mrb[0].mxu0
    %5345 = vmatprep.mubr.bf16.mxu0 0
    %5346 = vmatmul.mubr.bf16.gmra.mrb[0].mxu0 %v5289
    %v5347 = vpop.f32.mrb[0].mxu0
    %v5348 = vadd.f32 0.0, %v5347
    %v5349 = vpop.f32.mrb[0].mxu0
    %v5350 = vpop.f32.mrb[0].mxu0
    %v5351 = vadd.f32 0.0, %v5350
    %v5352 = vpop.f32.mrb[0].mxu0
    %5353 = vmatprep.mubr.bf16.mxu0 0
    %5354 = vmatmul.mubr.bf16.gmra.mrb[0].mxu0 %v5292
    %v5355 = vpop.f32.mrb[0].mxu0
    %v5356 = vadd.f32 0.0, %v5355
    %v5357 = vpop.f32.mrb[0].mxu0
    %v5358 = vpop.f32.mrb[0].mxu0
    %v5359 = vadd.f32 0.0, %v5358
    %v5360 = vpop.f32.mrb[0].mxu0
    %5361 = vdwg.mxu0
    %v5363 = vsel %vm619, %v5129, 0
    %v5366 = vsel %vm619, %v5130, 0
    %v5369 = vsel %vm619, %v5131, 0
    %v5372 = vsel %vm619, %v5132, 0
    %v5375 = vsel %vm5213, %v5187, 0
    %5377 = vmatprep.subr.bf16.mxu0 0
    %5378 = vmatpush1.bf16.msra.mxu0 %v5375
    %5379 = vmatprep.subr.bf16.mxu0 0
    %5380 = vmatpush1.bf16.msra.mxu0 0
    %5381 = vmatprep.subr.bf16.mxu0 0
    %5382 = vmatpush1.bf16.msra.mxu0 0
    %5383 = vmatprep.subr.bf16.mxu0 0
    %5384 = vmatpush1.bf16.msra.mxu0 0
    %5385 = vmatprep.subr.bf16.mxu0 0
    %5386 = vmatpush1.bf16.msra.mxu0 0
    %5387 = vmatprep.subr.bf16.mxu0 0
    %5388 = vmatpush1.bf16.msra.mxu0 0
    %5389 = vmatprep.subr.bf16.mxu0 0
    %5390 = vmatpush1.bf16.msra.mxu0 0
    %5391 = vmatprep.subr.bf16.mxu0 0
    %5392 = vmatpush1.bf16.msra.mxu0 0
    %5393 = vmatprep.subr.bf16.mxu0 0
    %5394 = vmatpush1.bf16.msra.mxu0 0
    %5395 = vmatprep.subr.bf16.mxu0 0
    %5396 = vmatpush1.bf16.msra.mxu0 0
    %5397 = vmatprep.subr.bf16.mxu0 0
    %5398 = vmatpush1.bf16.msra.mxu0 0
    %5399 = vmatprep.subr.bf16.mxu0 0
    %5400 = vmatpush1.bf16.msra.mxu0 0
    %5401 = vmatprep.subr.bf16.mxu0 0
    %5402 = vmatpush1.bf16.msra.mxu0 0
    %5403 = vmatprep.subr.bf16.mxu0 0
    %5404 = vmatpush1.bf16.msra.mxu0 0
    %5405 = vmatprep.subr.bf16.mxu0 0
    %5406 = vmatpush1.bf16.msra.mxu0 0
    %5407 = vmatprep.subr.bf16.mxu0 0
    %5408 = vmatpush1.bf16.msra.mxu0 0
    %5409 = vmatprep.mubr.bf16.mxu0 0
    %5410 = vmatmul.mubr.bf16.gmra.mrb[0].mxu0 %v5363
    %v5411 = vpop.f32.mrb[0].mxu0
    %v5412 = vadd.f32 0.0, %v5411
    %v5413 = vpop.f32.mrb[0].mxu0
    %v5414 = vpop.f32.mrb[0].mxu0
    %v5415 = vadd.f32 0.0, %v5414
    %v5416 = vpop.f32.mrb[0].mxu0
    %5417 = vmatprep.mubr.bf16.mxu0 0
    %5418 = vmatmul.mubr.bf16.gmra.mrb[0].mxu0 %v5366
    %v5419 = vpop.f32.mrb[0].mxu0
    %v5420 = vadd.f32 0.0, %v5419
    %v5421 = vpop.f32.mrb[0].mxu0
    %v5422 = vpop.f32.mrb[0].mxu0
    %v5423 = vadd.f32 0.0, %v5422
    %v5424 = vpop.f32.mrb[0].mxu0
    %5425 = vmatprep.mubr.bf16.mxu0 0
    %5426 = vmatmul.mubr.bf16.gmra.mrb[0].mxu0 %v5369
    %v5427 = vpop.f32.mrb[0].mxu0
    %v5428 = vadd.f32 0.0, %v5427
    %v5429 = vpop.f32.mrb[0].mxu0
    %v5430 = vpop.f32.mrb[0].mxu0
    %v5431 = vadd.f32 0.0, %v5430
    %v5432 = vpop.f32.mrb[0].mxu0
    %5433 = vmatprep.mubr.bf16.mxu0 0
    %5434 = vmatmul.mubr.bf16.gmra.mrb[0].mxu0 %v5372
    %v5435 = vpop.f32.mrb[0].mxu0
    %v5436 = vadd.f32 0.0, %v5435
    %v5437 = vpop.f32.mrb[0].mxu0
    %v5438 = vpop.f32.mrb[0].mxu0
    %v5439 = vadd.f32 0.0, %v5438
    %v5440 = vpop.f32.mrb[0].mxu0
    %5441 = vdwg.mxu0
    %v5443 = vsel %vm619, %v5133, 0
    %v5446 = vsel %vm619, %v5134, 0
    %v5449 = vsel %vm619, %v5135, 0
    %v5452 = vsel %vm619, %v5136, 0
    %v5455 = vsel %vm5213, %v5188, 0
    %5457 = vmatprep.subr.bf16.mxu0 0
    %5458 = vmatpush1.bf16.msra.mxu0 %v5455
    %5459 = vmatprep.subr.bf16.mxu0 0
    %5460 = vmatpush1.bf16.msra.mxu0 0
    %5461 = vmatprep.subr.bf16.mxu0 0
    %5462 = vmatpush1.bf16.msra.mxu0 0
    %5463 = vmatprep.subr.bf16.mxu0 0
    %5464 = vmatpush1.bf16.msra.mxu0 0
    %5465 = vmatprep.subr.bf16.mxu0 0
    %5466 = vmatpush1.bf16.msra.mxu0 0
    %5467 = vmatprep.subr.bf16.mxu0 0
    %5468 = vmatpush1.bf16.msra.mxu0 0
    %5469 = vmatprep.subr.bf16.mxu0 0
    %5470 = vmatpush1.bf16.msra.mxu0 0
    %5471 = vmatprep.subr.bf16.mxu0 0
    %5472 = vmatpush1.bf16.msra.mxu0 0
    %5473 = vmatprep.subr.bf16.mxu0 0
    %5474 = vmatpush1.bf16.msra.mxu0 0
    %5475 = vmatprep.subr.bf16.mxu0 0
    %5476 = vmatpush1.bf16.msra.mxu0 0
    %5477 = vmatprep.subr.bf16.mxu0 0
    %5478 = vmatpush1.bf16.msra.mxu0 0
    %5479 = vmatprep.subr.bf16.mxu0 0
    %5480 = vmatpush1.bf16.msra.mxu0 0
    %5481 = vmatprep.subr.bf16.mxu0 0
    %5482 = vmatpush1.bf16.msra.mxu0 0
    %5483 = vmatprep.subr.bf16.mxu0 0
    %5484 = vmatpush1.bf16.msra.mxu0 0
    %5485 = vmatprep.subr.bf16.mxu0 0
    %5486 = vmatpush1.bf16.msra.mxu0 0
    %5487 = vmatprep.subr.bf16.mxu0 0
    %5488 = vmatpush1.bf16.msra.mxu0 0
    %5489 = vmatprep.mubr.bf16.mxu0 0
    %5490 = vmatmul.mubr.bf16.gmra.mrb[0].mxu0 %v5443
    %v5491 = vpop.f32.mrb[0].mxu0
    %v5492 = vadd.f32 0.0, %v5491
    %v5493 = vpop.f32.mrb[0].mxu0
    %v5494 = vpop.f32.mrb[0].mxu0
    %v5495 = vadd.f32 0.0, %v5494
    %v5496 = vpop.f32.mrb[0].mxu0
    %5497 = vmatprep.mubr.bf16.mxu0 0
    %5498 = vmatmul.mubr.bf16.gmra.mrb[0].mxu0 %v5446
    %v5499 = vpop.f32.mrb[0].mxu0
    %v5500 = vadd.f32 0.0, %v5499
    %v5501 = vpop.f32.mrb[0].mxu0
    %v5502 = vpop.f32.mrb[0].mxu0
    %v5503 = vadd.f32 0.0, %v5502
    %v5504 = vpop.f32.mrb[0].mxu0
    %5505 = vmatprep.mubr.bf16.mxu0 0
    %5506 = vmatmul.mubr.bf16.gmra.mrb[0].mxu0 %v5449
    %v5507 = vpop.f32.mrb[0].mxu0
    %v5508 = vadd.f32 0.0, %v5507
    %v5509 = vpop.f32.mrb[0].mxu0
    %v5510 = vpop.f32.mrb[0].mxu0
    %v5511 = vadd.f32 0.0, %v5510
    %v5512 = vpop.f32.mrb[0].mxu0
    %5513 = vmatprep.mubr.bf16.mxu0 0
    %5514 = vmatmul.mubr.bf16.gmra.mrb[0].mxu0 %v5452
    %v5515 = vpop.f32.mrb[0].mxu0
    %v5516 = vadd.f32 0.0, %v5515
    %v5517 = vpop.f32.mrb[0].mxu0
    %v5518 = vpop.f32.mrb[0].mxu0
    %v5519 = vadd.f32 0.0, %v5518
    %v5520 = vpop.f32.mrb[0].mxu0
    %5521 = vdwg.mxu0
    %v5523 = vsel %vm619, %v5137, 0
    %v5526 = vsel %vm619, %v5138, 0
    %v5529 = vsel %vm619, %v5139, 0
    %v5532 = vsel %vm619, %v5140, 0
    %v5535 = vsel %vm5213, %v5189, 0
    %5537 = vmatprep.subr.bf16.mxu0 0
    %5538 = vmatpush1.bf16.msra.mxu0 %v5535
    %5539 = vmatprep.subr.bf16.mxu0 0
    %5540 = vmatpush1.bf16.msra.mxu0 0
    %5541 = vmatprep.subr.bf16.mxu0 0
    %5542 = vmatpush1.bf16.msra.mxu0 0
    %5543 = vmatprep.subr.bf16.mxu0 0
    %5544 = vmatpush1.bf16.msra.mxu0 0
    %5545 = vmatprep.subr.bf16.mxu0 0
    %5546 = vmatpush1.bf16.msra.mxu0 0
    %5547 = vmatprep.subr.bf16.mxu0 0
    %5548 = vmatpush1.bf16.msra.mxu0 0
    %5549 = vmatprep.subr.bf16.mxu0 0
    %5550 = vmatpush1.bf16.msra.mxu0 0
    %5551 = vmatprep.subr.bf16.mxu0 0
    %5552 = vmatpush1.bf16.msra.mxu0 0
    %5553 = vmatprep.subr.bf16.mxu0 0
    %5554 = vmatpush1.bf16.msra.mxu0 0
    %5555 = vmatprep.subr.bf16.mxu0 0
    %5556 = vmatpush1.bf16.msra.mxu0 0
    %5557 = vmatprep.subr.bf16.mxu0 0
    %5558 = vmatpush1.bf16.msra.mxu0 0
    %5559 = vmatprep.subr.bf16.mxu0 0
    %5560 = vmatpush1.bf16.msra.mxu0 0
    %5561 = vmatprep.subr.bf16.mxu0 0
    %5562 = vmatpush1.bf16.msra.mxu0 0
    %5563 = vmatprep.subr.bf16.mxu0 0
    %5564 = vmatpush1.bf16.msra.mxu0 0
    %5565 = vmatprep.subr.bf16.mxu0 0
    %5566 = vmatpush1.bf16.msra.mxu0 0
    %5567 = vmatprep.subr.bf16.mxu0 0
    %5568 = vmatpush1.bf16.msra.mxu0 0
    %5569 = vmatprep.mubr.bf16.mxu0 0
    %5570 = vmatmul.mubr.bf16.gmra.mrb[0].mxu0 %v5523
    %v5571 = vpop.f32.mrb[0].mxu0
    %v5572 = vadd.f32 0.0, %v5571
    %v5573 = vpop.f32.mrb[0].mxu0
    %v5574 = vpop.f32.mrb[0].mxu0
    %v5575 = vadd.f32 0.0, %v5574
    %v5576 = vpop.f32.mrb[0].mxu0
    %5577 = vmatprep.mubr.bf16.mxu0 0
    %5578 = vmatmul.mubr.bf16.gmra.mrb[0].mxu0 %v5526
    %v5579 = vpop.f32.mrb[0].mxu0
    %v5580 = vadd.f32 0.0, %v5579
    %v5581 = vpop.f32.mrb[0].mxu0
    %v5582 = vpop.f32.mrb[0].mxu0
    %v5583 = vadd.f32 0.0, %v5582
    %v5584 = vpop.f32.mrb[0].mxu0
    %5585 = vmatprep.mubr.bf16.mxu0 0
    %5586 = vmatmul.mubr.bf16.gmra.mrb[0].mxu0 %v5529
    %v5587 = vpop.f32.mrb[0].mxu0
    %v5588 = vadd.f32 0.0, %v5587
    %v5589 = vpop.f32.mrb[0].mxu0
    %v5590 = vpop.f32.mrb[0].mxu0
    %v5591 = vadd.f32 0.0, %v5590
    %v5592 = vpop.f32.mrb[0].mxu0
    %5593 = vmatprep.mubr.bf16.mxu0 0
    %5594 = vmatmul.mubr.bf16.gmra.mrb[0].mxu0 %v5532
    %v5595 = vpop.f32.mrb[0].mxu0
    %v5596 = vadd.f32 0.0, %v5595
    %v5597 = vpop.f32.mrb[0].mxu0
    %v5598 = vpop.f32.mrb[0].mxu0
    %v5599 = vadd.f32 0.0, %v5598
    %v5600 = vpop.f32.mrb[0].mxu0
    %5601 = vdwg.mxu0
    %v5603 = vsel %vm619, %v5141, 0
    %v5606 = vsel %vm619, %v5142, 0
    %v5609 = vsel %vm619, %v5143, 0
    %v5612 = vsel %vm619, %v5144, 0
    %v5615 = vsel %vm5213, %v5190, 0
    %5617 = vmatprep.subr.bf16.mxu0 0
    %5618 = vmatpush1.bf16.msra.mxu0 %v5615
    %5619 = vmatprep.subr.bf16.mxu0 0
    %5620 = vmatpush1.bf16.msra.mxu0 0
    %5621 = vmatprep.subr.bf16.mxu0 0
    %5622 = vmatpush1.bf16.msra.mxu0 0
    %5623 = vmatprep.subr.bf16.mxu0 0
    %5624 = vmatpush1.bf16.msra.mxu0 0
    %5625 = vmatprep.subr.bf16.mxu0 0
    %5626 = vmatpush1.bf16.msra.mxu0 0
    %5627 = vmatprep.subr.bf16.mxu0 0
    %5628 = vmatpush1.bf16.msra.mxu0 0
    %5629 = vmatprep.subr.bf16.mxu0 0
    %5630 = vmatpush1.bf16.msra.mxu0 0
    %5631 = vmatprep.subr.bf16.mxu0 0
    %5632 = vmatpush1.bf16.msra.mxu0 0
    %5633 = vmatprep.subr.bf16.mxu0 0
    %5634 = vmatpush1.bf16.msra.mxu0 0
    %5635 = vmatprep.subr.bf16.mxu0 0
    %5636 = vmatpush1.bf16.msra.mxu0 0
    %5637 = vmatprep.subr.bf16.mxu0 0
    %5638 = vmatpush1.bf16.msra.mxu0 0
    %5639 = vmatprep.subr.bf16.mxu0 0
    %5640 = vmatpush1.bf16.msra.mxu0 0
    %5641 = vmatprep.subr.bf16.mxu0 0
    %5642 = vmatpush1.bf16.msra.mxu0 0
    %5643 = vmatprep.subr.bf16.mxu0 0
    %5644 = vmatpush1.bf16.msra.mxu0 0
    %5645 = vmatprep.subr.bf16.mxu0 0
    %5646 = vmatpush1.bf16.msra.mxu0 0
    %5647 = vmatprep.subr.bf16.mxu0 0
    %5648 = vmatpush1.bf16.msra.mxu0 0
    %5649 = vmatprep.mubr.bf16.mxu0 0
    %5650 = vmatmul.mubr.bf16.gmra.mrb[0].mxu0 %v5603
    %v5651 = vpop.f32.mrb[0].mxu0
    %v5652 = vadd.f32 0.0, %v5651
    %v5653 = vpop.f32.mrb[0].mxu0
    %v5654 = vpop.f32.mrb[0].mxu0
    %v5655 = vadd.f32 0.0, %v5654
    %v5656 = vpop.f32.mrb[0].mxu0
    %5657 = vmatprep.mubr.bf16.mxu0 0
    %5658 = vmatmul.mubr.bf16.gmra.mrb[0].mxu0 %v5606
    %v5659 = vpop.f32.mrb[0].mxu0
    %v5660 = vadd.f32 0.0, %v5659
    %v5661 = vpop.f32.mrb[0].mxu0
    %v5662 = vpop.f32.mrb[0].mxu0
    %v5663 = vadd.f32 0.0, %v5662
    %v5664 = vpop.f32.mrb[0].mxu0
    %5665 = vmatprep.mubr.bf16.mxu0 0
    %5666 = vmatmul.mubr.bf16.gmra.mrb[0].mxu0 %v5609
    %v5667 = vpop.f32.mrb[0].mxu0
    %v5668 = vadd.f32 0.0, %v5667
    %v5669 = vpop.f32.mrb[0].mxu0
    %v5670 = vpop.f32.mrb[0].mxu0
    %v5671 = vadd.f32 0.0, %v5670
    %v5672 = vpop.f32.mrb[0].mxu0
    %5673 = vmatprep.mubr.bf16.mxu0 0
    %5674 = vmatmul.mubr.bf16.gmra.mrb[0].mxu0 %v5612
    %v5675 = vpop.f32.mrb[0].mxu0
    %v5676 = vadd.f32 0.0, %v5675
    %v5677 = vpop.f32.mrb[0].mxu0
    %v5678 = vpop.f32.mrb[0].mxu0
    %v5679 = vadd.f32 0.0, %v5678
    %v5680 = vpop.f32.mrb[0].mxu0
    %5681 = vdwg.mxu0
    %v5683 = vsel %vm619, %v5145, 0
    %v5686 = vsel %vm619, %v5146, 0
    %v5689 = vsel %vm619, %v5147, 0
    %v5692 = vsel %vm619, %v5148, 0
    %v5695 = vsel %vm5213, %v5191, 0
    %5697 = vmatprep.subr.bf16.mxu0 0
    %5698 = vmatpush1.bf16.msra.mxu0 %v5695
    %5699 = vmatprep.subr.bf16.mxu0 0
    %5700 = vmatpush1.bf16.msra.mxu0 0
    %5701 = vmatprep.subr.bf16.mxu0 0
    %5702 = vmatpush1.bf16.msra.mxu0 0
    %5703 = vmatprep.subr.bf16.mxu0 0
    %5704 = vmatpush1.bf16.msra.mxu0 0
    %5705 = vmatprep.subr.bf16.mxu0 0
    %5706 = vmatpush1.bf16.msra.mxu0 0
    %5707 = vmatprep.subr.bf16.mxu0 0
    %5708 = vmatpush1.bf16.msra.mxu0 0
    %5709 = vmatprep.subr.bf16.mxu0 0
    %5710 = vmatpush1.bf16.msra.mxu0 0
    %5711 = vmatprep.subr.bf16.mxu0 0
    %5712 = vmatpush1.bf16.msra.mxu0 0
    %5713 = vmatprep.subr.bf16.mxu0 0
    %5714 = vmatpush1.bf16.msra.mxu0 0
    %5715 = vmatprep.subr.bf16.mxu0 0
    %5716 = vmatpush1.bf16.msra.mxu0 0
    %5717 = vmatprep.subr.bf16.mxu0 0
    %5718 = vmatpush1.bf16.msra.mxu0 0
    %5719 = vmatprep.subr.bf16.mxu0 0
    %5720 = vmatpush1.bf16.msra.mxu0 0
    %5721 = vmatprep.subr.bf16.mxu0 0
    %5722 = vmatpush1.bf16.msra.mxu0 0
    %5723 = vmatprep.subr.bf16.mxu0 0
    %5724 = vmatpush1.bf16.msra.mxu0 0
    %5725 = vmatprep.subr.bf16.mxu0 0
    %5726 = vmatpush1.bf16.msra.mxu0 0
    %5727 = vmatprep.subr.bf16.mxu0 0
    %5728 = vmatpush1.bf16.msra.mxu0 0
    %5729 = vmatprep.mubr.bf16.mxu0 0
    %5730 = vmatmul.mubr.bf16.gmra.mrb[0].mxu0 %v5683
    %v5731 = vpop.f32.mrb[0].mxu0
    %v5732 = vadd.f32 0.0, %v5731
    %v5733 = vpop.f32.mrb[0].mxu0
    %v5734 = vpop.f32.mrb[0].mxu0
    %v5735 = vadd.f32 0.0, %v5734
    %v5736 = vpop.f32.mrb[0].mxu0
    %5737 = vmatprep.mubr.bf16.mxu0 0
    %5738 = vmatmul.mubr.bf16.gmra.mrb[0].mxu0 %v5686
    %v5739 = vpop.f32.mrb[0].mxu0
    %v5740 = vadd.f32 0.0, %v5739
    %v5741 = vpop.f32.mrb[0].mxu0
    %v5742 = vpop.f32.mrb[0].mxu0
    %v5743 = vadd.f32 0.0, %v5742
    %v5744 = vpop.f32.mrb[0].mxu0
    %5745 = vmatprep.mubr.bf16.mxu0 0
    %5746 = vmatmul.mubr.bf16.gmra.mrb[0].mxu0 %v5689
    %v5747 = vpop.f32.mrb[0].mxu0
    %v5748 = vadd.f32 0.0, %v5747
    %v5749 = vpop.f32.mrb[0].mxu0
    %v5750 = vpop.f32.mrb[0].mxu0
    %v5751 = vadd.f32 0.0, %v5750
    %v5752 = vpop.f32.mrb[0].mxu0
    %5753 = vmatprep.mubr.bf16.mxu0 0
    %5754 = vmatmul.mubr.bf16.gmra.mrb[0].mxu0 %v5692
    %v5755 = vpop.f32.mrb[0].mxu0
    %v5756 = vadd.f32 0.0, %v5755
    %v5757 = vpop.f32.mrb[0].mxu0
    %v5758 = vpop.f32.mrb[0].mxu0
    %v5759 = vadd.f32 0.0, %v5758
    %v5760 = vpop.f32.mrb[0].mxu0
    %5761 = vdwg.mxu0
    %v5763 = vsel %vm619, %v5149, 0
    %v5766 = vsel %vm619, %v5150, 0
    %v5769 = vsel %vm619, %v5151, 0
    %v5772 = vsel %vm619, %v5152, 0
    %v5775 = vsel %vm5213, %v5192, 0
    %5777 = vmatprep.subr.bf16.mxu0 0
    %5778 = vmatpush1.bf16.msra.mxu0 %v5775
    %5779 = vmatprep.subr.bf16.mxu0 0
    %5780 = vmatpush1.bf16.msra.mxu0 0
    %5781 = vmatprep.subr.bf16.mxu0 0
    %5782 = vmatpush1.bf16.msra.mxu0 0
    %5783 = vmatprep.subr.bf16.mxu0 0
    %5784 = vmatpush1.bf16.msra.mxu0 0
    %5785 = vmatprep.subr.bf16.mxu0 0
    %5786 = vmatpush1.bf16.msra.mxu0 0
    %5787 = vmatprep.subr.bf16.mxu0 0
    %5788 = vmatpush1.bf16.msra.mxu0 0
    %5789 = vmatprep.subr.bf16.mxu0 0
    %5790 = vmatpush1.bf16.msra.mxu0 0
    %5791 = vmatprep.subr.bf16.mxu0 0
    %5792 = vmatpush1.bf16.msra.mxu0 0
    %5793 = vmatprep.subr.bf16.mxu0 0
    %5794 = vmatpush1.bf16.msra.mxu0 0
    %5795 = vmatprep.subr.bf16.mxu0 0
    %5796 = vmatpush1.bf16.msra.mxu0 0
    %5797 = vmatprep.subr.bf16.mxu0 0
    %5798 = vmatpush1.bf16.msra.mxu0 0
    %5799 = vmatprep.subr.bf16.mxu0 0
    %5800 = vmatpush1.bf16.msra.mxu0 0
    %5801 = vmatprep.subr.bf16.mxu0 0
    %5802 = vmatpush1.bf16.msra.mxu0 0
    %5803 = vmatprep.subr.bf16.mxu0 0
    %5804 = vmatpush1.bf16.msra.mxu0 0
    %5805 = vmatprep.subr.bf16.mxu0 0
    %5806 = vmatpush1.bf16.msra.mxu0 0
    %5807 = vmatprep.subr.bf16.mxu0 0
    %5808 = vmatpush1.bf16.msra.mxu0 0
    %5809 = vmatprep.mubr.bf16.mxu0 0
    %5810 = vmatmul.mubr.bf16.gmra.mrb[0].mxu0 %v5763
    %v5811 = vpop.f32.mrb[0].mxu0
    %v5812 = vadd.f32 0.0, %v5811
    %v5813 = vpop.f32.mrb[0].mxu0
    %v5814 = vpop.f32.mrb[0].mxu0
    %v5815 = vadd.f32 0.0, %v5814
    %v5816 = vpop.f32.mrb[0].mxu0
    %5817 = vmatprep.mubr.bf16.mxu0 0
    %5818 = vmatmul.mubr.bf16.gmra.mrb[0].mxu0 %v5766
    %v5819 = vpop.f32.mrb[0].mxu0
    %v5820 = vadd.f32 0.0, %v5819
    %v5821 = vpop.f32.mrb[0].mxu0
    %v5822 = vpop.f32.mrb[0].mxu0
    %v5823 = vadd.f32 0.0, %v5822
    %v5824 = vpop.f32.mrb[0].mxu0
    %5825 = vmatprep.mubr.bf16.mxu0 0
    %5826 = vmatmul.mubr.bf16.gmra.mrb[0].mxu0 %v5769
    %v5827 = vpop.f32.mrb[0].mxu0
    %v5828 = vadd.f32 0.0, %v5827
    %v5829 = vpop.f32.mrb[0].mxu0
    %v5830 = vpop.f32.mrb[0].mxu0
    %v5831 = vadd.f32 0.0, %v5830
    %v5832 = vpop.f32.mrb[0].mxu0
    %5833 = vmatprep.mubr.bf16.mxu0 0
    %5834 = vmatmul.mubr.bf16.gmra.mrb[0].mxu0 %v5772
    %v5835 = vpop.f32.mrb[0].mxu0
    %v5836 = vadd.f32 0.0, %v5835
    %v5837 = vpop.f32.mrb[0].mxu0
    %v5838 = vpop.f32.mrb[0].mxu0
    %v5839 = vadd.f32 0.0, %v5838
    %v5840 = vpop.f32.mrb[0].mxu0
    %5841 = vdwg.mxu0
    %v5843 = vsel %vm619, %v5153, 0
    %v5846 = vsel %vm619, %v5154, 0
    %v5849 = vsel %vm619, %v5155, 0
    %v5852 = vsel %vm619, %v5156, 0
    %v5855 = vsel %vm5213, %v5193, 0
    %5857 = vmatprep.subr.bf16.mxu0 0
    %5858 = vmatpush1.bf16.msra.mxu0 %v5855
    %5859 = vmatprep.subr.bf16.mxu0 0
    %5860 = vmatpush1.bf16.msra.mxu0 0
    %5861 = vmatprep.subr.bf16.mxu0 0
    %5862 = vmatpush1.bf16.msra.mxu0 0
    %5863 = vmatprep.subr.bf16.mxu0 0
    %5864 = vmatpush1.bf16.msra.mxu0 0
    %5865 = vmatprep.subr.bf16.mxu0 0
    %5866 = vmatpush1.bf16.msra.mxu0 0
    %5867 = vmatprep.subr.bf16.mxu0 0
    %5868 = vmatpush1.bf16.msra.mxu0 0
    %5869 = vmatprep.subr.bf16.mxu0 0
    %5870 = vmatpush1.bf16.msra.mxu0 0
    %5871 = vmatprep.subr.bf16.mxu0 0
    %5872 = vmatpush1.bf16.msra.mxu0 0
    %5873 = vmatprep.subr.bf16.mxu0 0
    %5874 = vmatpush1.bf16.msra.mxu0 0
    %5875 = vmatprep.subr.bf16.mxu0 0
    %5876 = vmatpush1.bf16.msra.mxu0 0
    %5877 = vmatprep.subr.bf16.mxu0 0
    %5878 = vmatpush1.bf16.msra.mxu0 0
    %5879 = vmatprep.subr.bf16.mxu0 0
    %5880 = vmatpush1.bf16.msra.mxu0 0
    %5881 = vmatprep.subr.bf16.mxu0 0
    %5882 = vmatpush1.bf16.msra.mxu0 0
    %5883 = vmatprep.subr.bf16.mxu0 0
    %5884 = vmatpush1.bf16.msra.mxu0 0
    %5885 = vmatprep.subr.bf16.mxu0 0
    %5886 = vmatpush1.bf16.msra.mxu0 0
    %5887 = vmatprep.subr.bf16.mxu0 0
    %5888 = vmatpush1.bf16.msra.mxu0 0
    %5889 = vmatprep.mubr.bf16.mxu0 0
    %5890 = vmatmul.mubr.bf16.gmra.mrb[0].mxu0 %v5843
    %v5891 = vpop.f32.mrb[0].mxu0
    %v5892 = vadd.f32 0.0, %v5891
    %v5893 = vpop.f32.mrb[0].mxu0
    %v5894 = vpop.f32.mrb[0].mxu0
    %v5895 = vadd.f32 0.0, %v5894
    %v5896 = vpop.f32.mrb[0].mxu0
    %5897 = vmatprep.mubr.bf16.mxu0 0
    %5898 = vmatmul.mubr.bf16.gmra.mrb[0].mxu0 %v5846
    %v5899 = vpop.f32.mrb[0].mxu0
    %v5900 = vadd.f32 0.0, %v5899
    %v5901 = vpop.f32.mrb[0].mxu0
    %v5902 = vpop.f32.mrb[0].mxu0
    %v5903 = vadd.f32 0.0, %v5902
    %v5904 = vpop.f32.mrb[0].mxu0
    %5905 = vmatprep.mubr.bf16.mxu0 0
    %5906 = vmatmul.mubr.bf16.gmra.mrb[0].mxu0 %v5849
    %v5907 = vpop.f32.mrb[0].mxu0
    %v5908 = vadd.f32 0.0, %v5907
    %v5909 = vpop.f32.mrb[0].mxu0
    %v5910 = vpop.f32.mrb[0].mxu0
    %v5911 = vadd.f32 0.0, %v5910
    %v5912 = vpop.f32.mrb[0].mxu0
    %5913 = vmatprep.mubr.bf16.mxu0 0
    %5914 = vmatmul.mubr.bf16.gmra.mrb[0].mxu0 %v5852
    %v5915 = vpop.f32.mrb[0].mxu0
    %v5916 = vadd.f32 0.0, %v5915
    %v5917 = vpop.f32.mrb[0].mxu0
    %v5918 = vpop.f32.mrb[0].mxu0
    %v5919 = vadd.f32 0.0, %v5918
    %v5920 = vpop.f32.mrb[0].mxu0
    %5921 = vdwg.mxu0
    %v5923 = vsel %vm619, %v5157, 0
    %v5926 = vsel %vm619, %v5158, 0
    %v5929 = vsel %vm619, %v5159, 0
    %v5932 = vsel %vm619, %v5160, 0
    %v5935 = vsel %vm5213, %v5194, 0
    %5937 = vmatprep.subr.bf16.mxu0 0
    %5938 = vmatpush1.bf16.msra.mxu0 %v5935
    %5939 = vmatprep.subr.bf16.mxu0 0
    %5940 = vmatpush1.bf16.msra.mxu0 0
    %5941 = vmatprep.subr.bf16.mxu0 0
    %5942 = vmatpush1.bf16.msra.mxu0 0
    %5943 = vmatprep.subr.bf16.mxu0 0
    %5944 = vmatpush1.bf16.msra.mxu0 0
    %5945 = vmatprep.subr.bf16.mxu0 0
    %5946 = vmatpush1.bf16.msra.mxu0 0
    %5947 = vmatprep.subr.bf16.mxu0 0
    %5948 = vmatpush1.bf16.msra.mxu0 0
    %5949 = vmatprep.subr.bf16.mxu0 0
    %5950 = vmatpush1.bf16.msra.mxu0 0
    %5951 = vmatprep.subr.bf16.mxu0 0
    %5952 = vmatpush1.bf16.msra.mxu0 0
    %5953 = vmatprep.subr.bf16.mxu0 0
    %5954 = vmatpush1.bf16.msra.mxu0 0
    %5955 = vmatprep.subr.bf16.mxu0 0
    %5956 = vmatpush1.bf16.msra.mxu0 0
    %5957 = vmatprep.subr.bf16.mxu0 0
    %5958 = vmatpush1.bf16.msra.mxu0 0
    %5959 = vmatprep.subr.bf16.mxu0 0
    %5960 = vmatpush1.bf16.msra.mxu0 0
    %5961 = vmatprep.subr.bf16.mxu0 0
    %5962 = vmatpush1.bf16.msra.mxu0 0
    %5963 = vmatprep.subr.bf16.mxu0 0
    %5964 = vmatpush1.bf16.msra.mxu0 0
    %5965 = vmatprep.subr.bf16.mxu0 0
    %5966 = vmatpush1.bf16.msra.mxu0 0
    %5967 = vmatprep.subr.bf16.mxu0 0
    %5968 = vmatpush1.bf16.msra.mxu0 0
    %5969 = vmatprep.mubr.bf16.mxu0 0
    %5970 = vmatmul.mubr.bf16.gmra.mrb[0].mxu0 %v5923
    %v5971 = vpop.f32.mrb[0].mxu0
    %v5972 = vadd.f32 0.0, %v5971
    %v5973 = vpop.f32.mrb[0].mxu0
    %v5974 = vpop.f32.mrb[0].mxu0
    %v5975 = vadd.f32 0.0, %v5974
    %v5976 = vpop.f32.mrb[0].mxu0
    %5977 = vmatprep.mubr.bf16.mxu0 0
    %5978 = vmatmul.mubr.bf16.gmra.mrb[0].mxu0 %v5926
    %v5979 = vpop.f32.mrb[0].mxu0
    %v5980 = vadd.f32 0.0, %v5979
    %v5981 = vpop.f32.mrb[0].mxu0
    %v5982 = vpop.f32.mrb[0].mxu0
    %v5983 = vadd.f32 0.0, %v5982
    %v5984 = vpop.f32.mrb[0].mxu0
    %5985 = vmatprep.mubr.bf16.mxu0 0
    %5986 = vmatmul.mubr.bf16.gmra.mrb[0].mxu0 %v5929
    %v5987 = vpop.f32.mrb[0].mxu0
    %v5988 = vadd.f32 0.0, %v5987
    %v5989 = vpop.f32.mrb[0].mxu0
    %v5990 = vpop.f32.mrb[0].mxu0
    %v5991 = vadd.f32 0.0, %v5990
    %v5992 = vpop.f32.mrb[0].mxu0
    %5993 = vmatprep.mubr.bf16.mxu0 0
    %5994 = vmatmul.mubr.bf16.gmra.mrb[0].mxu0 %v5932
    %v5995 = vpop.f32.mrb[0].mxu0
    %v5996 = vadd.f32 0.0, %v5995
    %v5997 = vpop.f32.mrb[0].mxu0
    %v5998 = vpop.f32.mrb[0].mxu0
    %v5999 = vadd.f32 0.0, %v5998
    %v6000 = vpop.f32.mrb[0].mxu0
    %6001 = vdwg.mxu0
    %v6003 = vsel %vm619, %v5161, 0
    %v6006 = vsel %vm619, %v5162, 0
    %v6009 = vsel %vm619, %v5163, 0
    %v6012 = vsel %vm619, %v5164, 0
    %v6015 = vsel %vm5213, %v5195, 0
    %6017 = vmatprep.subr.bf16.mxu0 0
    %6018 = vmatpush1.bf16.msra.mxu0 %v6015
    %6019 = vmatprep.subr.bf16.mxu0 0
    %6020 = vmatpush1.bf16.msra.mxu0 0
    %6021 = vmatprep.subr.bf16.mxu0 0
    %6022 = vmatpush1.bf16.msra.mxu0 0
    %6023 = vmatprep.subr.bf16.mxu0 0
    %6024 = vmatpush1.bf16.msra.mxu0 0
    %6025 = vmatprep.subr.bf16.mxu0 0
    %6026 = vmatpush1.bf16.msra.mxu0 0
    %6027 = vmatprep.subr.bf16.mxu0 0
    %6028 = vmatpush1.bf16.msra.mxu0 0
    %6029 = vmatprep.subr.bf16.mxu0 0
    %6030 = vmatpush1.bf16.msra.mxu0 0
    %6031 = vmatprep.subr.bf16.mxu0 0
    %6032 = vmatpush1.bf16.msra.mxu0 0
    %6033 = vmatprep.subr.bf16.mxu0 0
    %6034 = vmatpush1.bf16.msra.mxu0 0
    %6035 = vmatprep.subr.bf16.mxu0 0
    %6036 = vmatpush1.bf16.msra.mxu0 0
    %6037 = vmatprep.subr.bf16.mxu0 0
    %6038 = vmatpush1.bf16.msra.mxu0 0
    %6039 = vmatprep.subr.bf16.mxu0 0
    %6040 = vmatpush1.bf16.msra.mxu0 0
    %6041 = vmatprep.subr.bf16.mxu0 0
    %6042 = vmatpush1.bf16.msra.mxu0 0
    %6043 = vmatprep.subr.bf16.mxu0 0
    %6044 = vmatpush1.bf16.msra.mxu0 0
    %6045 = vmatprep.subr.bf16.mxu0 0
    %6046 = vmatpush1.bf16.msra.mxu0 0
    %6047 = vmatprep.subr.bf16.mxu0 0
    %6048 = vmatpush1.bf16.msra.mxu0 0
    %6049 = vmatprep.mubr.bf16.mxu0 0
    %6050 = vmatmul.mubr.bf16.gmra.mrb[0].mxu0 %v6003
    %v6051 = vpop.f32.mrb[0].mxu0
    %v6052 = vadd.f32 0.0, %v6051
    %v6053 = vpop.f32.mrb[0].mxu0
    %v6054 = vpop.f32.mrb[0].mxu0
    %v6055 = vadd.f32 0.0, %v6054
    %v6056 = vpop.f32.mrb[0].mxu0
    %6057 = vmatprep.mubr.bf16.mxu0 0
    %6058 = vmatmul.mubr.bf16.gmra.mrb[0].mxu0 %v6006
    %v6059 = vpop.f32.mrb[0].mxu0
    %v6060 = vadd.f32 0.0, %v6059
    %v6061 = vpop.f32.mrb[0].mxu0
    %v6062 = vpop.f32.mrb[0].mxu0
    %v6063 = vadd.f32 0.0, %v6062
    %v6064 = vpop.f32.mrb[0].mxu0
    %6065 = vmatprep.mubr.bf16.mxu0 0
    %6066 = vmatmul.mubr.bf16.gmra.mrb[0].mxu0 %v6009
    %v6067 = vpop.f32.mrb[0].mxu0
    %v6068 = vadd.f32 0.0, %v6067
    %v6069 = vpop.f32.mrb[0].mxu0
    %v6070 = vpop.f32.mrb[0].mxu0
    %v6071 = vadd.f32 0.0, %v6070
    %v6072 = vpop.f32.mrb[0].mxu0
    %6073 = vmatprep.mubr.bf16.mxu0 0
    %6074 = vmatmul.mubr.bf16.gmra.mrb[0].mxu0 %v6012
    %v6075 = vpop.f32.mrb[0].mxu0
    %v6076 = vadd.f32 0.0, %v6075
    %v6077 = vpop.f32.mrb[0].mxu0
    %v6078 = vpop.f32.mrb[0].mxu0
    %v6079 = vadd.f32 0.0, %v6078
    %v6080 = vpop.f32.mrb[0].mxu0
    %6081 = vdwg.mxu0
    %v6083 = vsel %vm619, %v5165, 0
    %v6086 = vsel %vm619, %v5166, 0
    %v6089 = vsel %vm619, %v5167, 0
    %v6092 = vsel %vm619, %v5168, 0
    %v6095 = vsel %vm5213, %v5196, 0
    %6097 = vmatprep.subr.bf16.mxu0 0
    %6098 = vmatpush1.bf16.msra.mxu0 %v6095
    %6099 = vmatprep.subr.bf16.mxu0 0
    %6100 = vmatpush1.bf16.msra.mxu0 0
    %6101 = vmatprep.subr.bf16.mxu0 0
    %6102 = vmatpush1.bf16.msra.mxu0 0
    %6103 = vmatprep.subr.bf16.mxu0 0
    %6104 = vmatpush1.bf16.msra.mxu0 0
    %6105 = vmatprep.subr.bf16.mxu0 0
    %6106 = vmatpush1.bf16.msra.mxu0 0
    %6107 = vmatprep.subr.bf16.mxu0 0
    %6108 = vmatpush1.bf16.msra.mxu0 0
    %6109 = vmatprep.subr.bf16.mxu0 0
    %6110 = vmatpush1.bf16.msra.mxu0 0
    %6111 = vmatprep.subr.bf16.mxu0 0
    %6112 = vmatpush1.bf16.msra.mxu0 0
    %6113 = vmatprep.subr.bf16.mxu0 0
    %6114 = vmatpush1.bf16.msra.mxu0 0
    %6115 = vmatprep.subr.bf16.mxu0 0
    %6116 = vmatpush1.bf16.msra.mxu0 0
    %6117 = vmatprep.subr.bf16.mxu0 0
    %6118 = vmatpush1.bf16.msra.mxu0 0
    %6119 = vmatprep.subr.bf16.mxu0 0
    %6120 = vmatpush1.bf16.msra.mxu0 0
    %6121 = vmatprep.subr.bf16.mxu0 0
    %6122 = vmatpush1.bf16.msra.mxu0 0
    %6123 = vmatprep.subr.bf16.mxu0 0
    %6124 = vmatpush1.bf16.msra.mxu0 0
    %6125 = vmatprep.subr.bf16.mxu0 0
    %6126 = vmatpush1.bf16.msra.mxu0 0
    %6127 = vmatprep.subr.bf16.mxu0 0
    %6128 = vmatpush1.bf16.msra.mxu0 0
    %6129 = vmatprep.mubr.bf16.mxu0 0
    %6130 = vmatmul.mubr.bf16.gmra.mrb[0].mxu0 %v6083
    %v6131 = vpop.f32.mrb[0].mxu0
    %v6132 = vadd.f32 0.0, %v6131
    %v6133 = vpop.f32.mrb[0].mxu0
    %v6134 = vpop.f32.mrb[0].mxu0
    %v6135 = vadd.f32 0.0, %v6134
    %v6136 = vpop.f32.mrb[0].mxu0
    %6137 = vmatprep.mubr.bf16.mxu0 0
    %6138 = vmatmul.mubr.bf16.gmra.mrb[0].mxu0 %v6086
    %v6139 = vpop.f32.mrb[0].mxu0
    %v6140 = vadd.f32 0.0, %v6139
    %v6141 = vpop.f32.mrb[0].mxu0
    %v6142 = vpop.f32.mrb[0].mxu0
    %v6143 = vadd.f32 0.0, %v6142
    %v6144 = vpop.f32.mrb[0].mxu0
    %6145 = vmatprep.mubr.bf16.mxu0 0
    %6146 = vmatmul.mubr.bf16.gmra.mrb[0].mxu0 %v6089
    %v6147 = vpop.f32.mrb[0].mxu0
    %v6148 = vadd.f32 0.0, %v6147
    %v6149 = vpop.f32.mrb[0].mxu0
    %v6150 = vpop.f32.mrb[0].mxu0
    %v6151 = vadd.f32 0.0, %v6150
    %v6152 = vpop.f32.mrb[0].mxu0
    %6153 = vmatprep.mubr.bf16.mxu0 0
    %6154 = vmatmul.mubr.bf16.gmra.mrb[0].mxu0 %v6092
    %v6155 = vpop.f32.mrb[0].mxu0
    %v6156 = vadd.f32 0.0, %v6155
    %v6157 = vpop.f32.mrb[0].mxu0
    %v6158 = vpop.f32.mrb[0].mxu0
    %v6159 = vadd.f32 0.0, %v6158
    %v6160 = vpop.f32.mrb[0].mxu0
    %6161 = vdwg.mxu0
    %v6163 = vsel %vm619, %v5169, 0
    %v6166 = vsel %vm619, %v5170, 0
    %v6169 = vsel %vm619, %v5171, 0
    %v6172 = vsel %vm619, %v5172, 0
    %v6175 = vsel %vm5213, %v5197, 0
    %6177 = vmatprep.subr.bf16.mxu0 0
    %6178 = vmatpush1.bf16.msra.mxu0 %v6175
    %6179 = vmatprep.subr.bf16.mxu0 0
    %6180 = vmatpush1.bf16.msra.mxu0 0
    %6181 = vmatprep.subr.bf16.mxu0 0
    %6182 = vmatpush1.bf16.msra.mxu0 0
    %6183 = vmatprep.subr.bf16.mxu0 0
    %6184 = vmatpush1.bf16.msra.mxu0 0
    %6185 = vmatprep.subr.bf16.mxu0 0
    %6186 = vmatpush1.bf16.msra.mxu0 0
    %6187 = vmatprep.subr.bf16.mxu0 0
    %6188 = vmatpush1.bf16.msra.mxu0 0
    %6189 = vmatprep.subr.bf16.mxu0 0
    %6190 = vmatpush1.bf16.msra.mxu0 0
    %6191 = vmatprep.subr.bf16.mxu0 0
    %6192 = vmatpush1.bf16.msra.mxu0 0
    %6193 = vmatprep.subr.bf16.mxu0 0
    %6194 = vmatpush1.bf16.msra.mxu0 0
    %6195 = vmatprep.subr.bf16.mxu0 0
    %6196 = vmatpush1.bf16.msra.mxu0 0
    %6197 = vmatprep.subr.bf16.mxu0 0
    %6198 = vmatpush1.bf16.msra.mxu0 0
    %6199 = vmatprep.subr.bf16.mxu0 0
    %6200 = vmatpush1.bf16.msra.mxu0 0
    %6201 = vmatprep.subr.bf16.mxu0 0
    %6202 = vmatpush1.bf16.msra.mxu0 0
    %6203 = vmatprep.subr.bf16.mxu0 0
    %6204 = vmatpush1.bf16.msra.mxu0 0
    %6205 = vmatprep.subr.bf16.mxu0 0
    %6206 = vmatpush1.bf16.msra.mxu0 0
    %6207 = vmatprep.subr.bf16.mxu0 0
    %6208 = vmatpush1.bf16.msra.mxu0 0
    %6209 = vmatprep.mubr.bf16.mxu0 0
    %6210 = vmatmul.mubr.bf16.gmra.mrb[0].mxu0 %v6163
    %v6211 = vpop.f32.mrb[0].mxu0
    %v6212 = vadd.f32 0.0, %v6211
    %v6213 = vpop.f32.mrb[0].mxu0
    %v6214 = vpop.f32.mrb[0].mxu0
    %v6215 = vadd.f32 0.0, %v6214
    %v6216 = vpop.f32.mrb[0].mxu0
    %6217 = vmatprep.mubr.bf16.mxu0 0
    %6218 = vmatmul.mubr.bf16.gmra.mrb[0].mxu0 %v6166
    %v6219 = vpop.f32.mrb[0].mxu0
    %v6220 = vadd.f32 0.0, %v6219
    %v6221 = vpop.f32.mrb[0].mxu0
    %v6222 = vpop.f32.mrb[0].mxu0
    %v6223 = vadd.f32 0.0, %v6222
    %v6224 = vpop.f32.mrb[0].mxu0
    %6225 = vmatprep.mubr.bf16.mxu0 0
    %6226 = vmatmul.mubr.bf16.gmra.mrb[0].mxu0 %v6169
    %v6227 = vpop.f32.mrb[0].mxu0
    %v6228 = vadd.f32 0.0, %v6227
    %v6229 = vpop.f32.mrb[0].mxu0
    %v6230 = vpop.f32.mrb[0].mxu0
    %v6231 = vadd.f32 0.0, %v6230
    %v6232 = vpop.f32.mrb[0].mxu0
    %6233 = vmatprep.mubr.bf16.mxu0 0
    %6234 = vmatmul.mubr.bf16.gmra.mrb[0].mxu0 %v6172
    %v6235 = vpop.f32.mrb[0].mxu0
    %v6236 = vadd.f32 0.0, %v6235
    %v6237 = vpop.f32.mrb[0].mxu0
    %v6238 = vpop.f32.mrb[0].mxu0
    %v6239 = vadd.f32 0.0, %v6238
    %v6240 = vpop.f32.mrb[0].mxu0
    %6241 = vdwg.mxu0
    %v6243 = vsel %vm619, %v5173, 0
    %v6246 = vsel %vm619, %v5174, 0
    %v6249 = vsel %vm619, %v5175, 0
    %v6252 = vsel %vm619, %v5176, 0
    %v6255 = vsel %vm5213, %v5198, 0
    %6257 = vmatprep.subr.bf16.mxu0 0
    %6258 = vmatpush1.bf16.msra.mxu0 %v6255
    %6259 = vmatprep.subr.bf16.mxu0 0
    %6260 = vmatpush1.bf16.msra.mxu0 0
    %6261 = vmatprep.subr.bf16.mxu0 0
    %6262 = vmatpush1.bf16.msra.mxu0 0
    %6263 = vmatprep.subr.bf16.mxu0 0
    %6264 = vmatpush1.bf16.msra.mxu0 0
    %6265 = vmatprep.subr.bf16.mxu0 0
    %6266 = vmatpush1.bf16.msra.mxu0 0
    %6267 = vmatprep.subr.bf16.mxu0 0
    %6268 = vmatpush1.bf16.msra.mxu0 0
    %6269 = vmatprep.subr.bf16.mxu0 0
    %6270 = vmatpush1.bf16.msra.mxu0 0
    %6271 = vmatprep.subr.bf16.mxu0 0
    %6272 = vmatpush1.bf16.msra.mxu0 0
    %6273 = vmatprep.subr.bf16.mxu0 0
    %6274 = vmatpush1.bf16.msra.mxu0 0
    %6275 = vmatprep.subr.bf16.mxu0 0
    %6276 = vmatpush1.bf16.msra.mxu0 0
    %6277 = vmatprep.subr.bf16.mxu0 0
    %6278 = vmatpush1.bf16.msra.mxu0 0
    %6279 = vmatprep.subr.bf16.mxu0 0
    %6280 = vmatpush1.bf16.msra.mxu0 0
    %6281 = vmatprep.subr.bf16.mxu0 0
    %6282 = vmatpush1.bf16.msra.mxu0 0
    %6283 = vmatprep.subr.bf16.mxu0 0
    %6284 = vmatpush1.bf16.msra.mxu0 0
    %6285 = vmatprep.subr.bf16.mxu0 0
    %6286 = vmatpush1.bf16.msra.mxu0 0
    %6287 = vmatprep.subr.bf16.mxu0 0
    %6288 = vmatpush1.bf16.msra.mxu0 0
    %6289 = vmatprep.mubr.bf16.mxu0 0
    %6290 = vmatmul.mubr.bf16.gmra.mrb[0].mxu0 %v6243
    %v6291 = vpop.f32.mrb[0].mxu0
    %v6292 = vadd.f32 0.0, %v6291
    %v6293 = vpop.f32.mrb[0].mxu0
    %v6294 = vpop.f32.mrb[0].mxu0
    %v6295 = vadd.f32 0.0, %v6294
    %v6296 = vpop.f32.mrb[0].mxu0
    %6297 = vmatprep.mubr.bf16.mxu0 0
    %6298 = vmatmul.mubr.bf16.gmra.mrb[0].mxu0 %v6246
    %v6299 = vpop.f32.mrb[0].mxu0
    %v6300 = vadd.f32 0.0, %v6299
    %v6301 = vpop.f32.mrb[0].mxu0
    %v6302 = vpop.f32.mrb[0].mxu0
    %v6303 = vadd.f32 0.0, %v6302
    %v6304 = vpop.f32.mrb[0].mxu0
    %6305 = vmatprep.mubr.bf16.mxu0 0
    %6306 = vmatmul.mubr.bf16.gmra.mrb[0].mxu0 %v6249
    %v6307 = vpop.f32.mrb[0].mxu0
    %v6308 = vadd.f32 0.0, %v6307
    %v6309 = vpop.f32.mrb[0].mxu0
    %v6310 = vpop.f32.mrb[0].mxu0
    %v6311 = vadd.f32 0.0, %v6310
    %v6312 = vpop.f32.mrb[0].mxu0
    %6313 = vmatprep.mubr.bf16.mxu0 0
    %6314 = vmatmul.mubr.bf16.gmra.mrb[0].mxu0 %v6252
    %v6315 = vpop.f32.mrb[0].mxu0
    %v6316 = vadd.f32 0.0, %v6315
    %v6317 = vpop.f32.mrb[0].mxu0
    %v6318 = vpop.f32.mrb[0].mxu0
    %v6319 = vadd.f32 0.0, %v6318
    %v6320 = vpop.f32.mrb[0].mxu0
    %6321 = vdwg.mxu0
    %v6323 = vsel %vm619, %v5177, 0
    %v6326 = vsel %vm619, %v5178, 0
    %v6329 = vsel %vm619, %v5179, 0
    %v6332 = vsel %vm619, %v5180, 0
    %v6335 = vsel %vm5213, %v5199, 0
    %6337 = vmatprep.subr.bf16.mxu0 0
    %6338 = vmatpush1.bf16.msra.mxu0 %v6335
    %6339 = vmatprep.subr.bf16.mxu0 0
    %6340 = vmatpush1.bf16.msra.mxu0 0
    %6341 = vmatprep.subr.bf16.mxu0 0
    %6342 = vmatpush1.bf16.msra.mxu0 0
    %6343 = vmatprep.subr.bf16.mxu0 0
    %6344 = vmatpush1.bf16.msra.mxu0 0
    %6345 = vmatprep.subr.bf16.mxu0 0
    %6346 = vmatpush1.bf16.msra.mxu0 0
    %6347 = vmatprep.subr.bf16.mxu0 0
    %6348 = vmatpush1.bf16.msra.mxu0 0
    %6349 = vmatprep.subr.bf16.mxu0 0
    %6350 = vmatpush1.bf16.msra.mxu0 0
    %6351 = vmatprep.subr.bf16.mxu0 0
    %6352 = vmatpush1.bf16.msra.mxu0 0
    %6353 = vmatprep.subr.bf16.mxu0 0
    %6354 = vmatpush1.bf16.msra.mxu0 0
    %6355 = vmatprep.subr.bf16.mxu0 0
    %6356 = vmatpush1.bf16.msra.mxu0 0
    %6357 = vmatprep.subr.bf16.mxu0 0
    %6358 = vmatpush1.bf16.msra.mxu0 0
    %6359 = vmatprep.subr.bf16.mxu0 0
    %6360 = vmatpush1.bf16.msra.mxu0 0
    %6361 = vmatprep.subr.bf16.mxu0 0
    %6362 = vmatpush1.bf16.msra.mxu0 0
    %6363 = vmatprep.subr.bf16.mxu0 0
    %6364 = vmatpush1.bf16.msra.mxu0 0
    %6365 = vmatprep.subr.bf16.mxu0 0
    %6366 = vmatpush1.bf16.msra.mxu0 0
    %6367 = vmatprep.subr.bf16.mxu0 0
    %6368 = vmatpush1.bf16.msra.mxu0 0
    %6369 = vmatprep.mubr.bf16.mxu0 0
    %6370 = vmatmul.mubr.bf16.gmra.mrb[0].mxu0 %v6323
    %v6371 = vpop.f32.mrb[0].mxu0
    %v6372 = vadd.f32 0.0, %v6371
    %v6373 = vpop.f32.mrb[0].mxu0
    %v6374 = vpop.f32.mrb[0].mxu0
    %v6375 = vadd.f32 0.0, %v6374
    %v6376 = vpop.f32.mrb[0].mxu0
    %6377 = vmatprep.mubr.bf16.mxu0 0
    %6378 = vmatmul.mubr.bf16.gmra.mrb[0].mxu0 %v6326
    %v6379 = vpop.f32.mrb[0].mxu0
    %v6380 = vadd.f32 0.0, %v6379
    %v6381 = vpop.f32.mrb[0].mxu0
    %v6382 = vpop.f32.mrb[0].mxu0
    %v6383 = vadd.f32 0.0, %v6382
    %v6384 = vpop.f32.mrb[0].mxu0
    %6385 = vmatprep.mubr.bf16.mxu0 0
    %6386 = vmatmul.mubr.bf16.gmra.mrb[0].mxu0 %v6329
    %v6387 = vpop.f32.mrb[0].mxu0
    %v6388 = vadd.f32 0.0, %v6387
    %v6389 = vpop.f32.mrb[0].mxu0
    %v6390 = vpop.f32.mrb[0].mxu0
    %v6391 = vadd.f32 0.0, %v6390
    %v6392 = vpop.f32.mrb[0].mxu0
    %6393 = vmatprep.mubr.bf16.mxu0 0
    %6394 = vmatmul.mubr.bf16.gmra.mrb[0].mxu0 %v6332
    %v6395 = vpop.f32.mrb[0].mxu0
    %v6396 = vadd.f32 0.0, %v6395
    %v6397 = vpop.f32.mrb[0].mxu0
    %v6398 = vpop.f32.mrb[0].mxu0
    %v6399 = vadd.f32 0.0, %v6398
    %v6400 = vpop.f32.mrb[0].mxu0
    %6401 = vdwg.mxu0
    %v6403 = vsel %vm619, %v5181, 0
    %v6406 = vsel %vm619, %v5182, 0
    %v6409 = vsel %vm619, %v5183, 0
    %v6412 = vsel %vm619, %v5184, 0
    %v6415 = vsel %vm5213, %v5200, 0
    %6417 = vmatprep.subr.bf16.mxu0 0
    %6418 = vmatpush1.bf16.msra.mxu0 %v6415
    %6419 = vmatprep.subr.bf16.mxu0 0
    %6420 = vmatpush1.bf16.msra.mxu0 0
    %6421 = vmatprep.subr.bf16.mxu0 0
    %6422 = vmatpush1.bf16.msra.mxu0 0
    %6423 = vmatprep.subr.bf16.mxu0 0
    %6424 = vmatpush1.bf16.msra.mxu0 0
    %6425 = vmatprep.subr.bf16.mxu0 0
    %6426 = vmatpush1.bf16.msra.mxu0 0
    %6427 = vmatprep.subr.bf16.mxu0 0
    %6428 = vmatpush1.bf16.msra.mxu0 0
    %6429 = vmatprep.subr.bf16.mxu0 0
    %6430 = vmatpush1.bf16.msra.mxu0 0
    %6431 = vmatprep.subr.bf16.mxu0 0
    %6432 = vmatpush1.bf16.msra.mxu0 0
    %6433 = vmatprep.subr.bf16.mxu0 0
    %6434 = vmatpush1.bf16.msra.mxu0 0
    %6435 = vmatprep.subr.bf16.mxu0 0
    %6436 = vmatpush1.bf16.msra.mxu0 0
    %6437 = vmatprep.subr.bf16.mxu0 0
    %6438 = vmatpush1.bf16.msra.mxu0 0
    %6439 = vmatprep.subr.bf16.mxu0 0
    %6440 = vmatpush1.bf16.msra.mxu0 0
    %6441 = vmatprep.subr.bf16.mxu0 0
    %6442 = vmatpush1.bf16.msra.mxu0 0
    %6443 = vmatprep.subr.bf16.mxu0 0
    %6444 = vmatpush1.bf16.msra.mxu0 0
    %6445 = vmatprep.subr.bf16.mxu0 0
    %6446 = vmatpush1.bf16.msra.mxu0 0
    %6447 = vmatprep.subr.bf16.mxu0 0
    %6448 = vmatpush1.bf16.msra.mxu0 0
    %6449 = vmatprep.mubr.bf16.mxu0 0
    %6450 = vmatmul.mubr.bf16.gmra.mrb[0].mxu0 %v6403
    %v6451 = vpop.f32.mrb[0].mxu0
    %v6452 = vadd.f32 0.0, %v6451
    %v6453 = vpop.f32.mrb[0].mxu0
    %v6454 = vpop.f32.mrb[0].mxu0
    %v6455 = vadd.f32 0.0, %v6454
    %v6456 = vpop.f32.mrb[0].mxu0
    %6457 = vmatprep.mubr.bf16.mxu0 0
    %6458 = vmatmul.mubr.bf16.gmra.mrb[0].mxu0 %v6406
    %v6459 = vpop.f32.mrb[0].mxu0
    %v6460 = vadd.f32 0.0, %v6459
    %v6461 = vpop.f32.mrb[0].mxu0
    %v6462 = vpop.f32.mrb[0].mxu0
    %v6463 = vadd.f32 0.0, %v6462
    %v6464 = vpop.f32.mrb[0].mxu0
    %6465 = vmatprep.mubr.bf16.mxu0 0
    %6466 = vmatmul.mubr.bf16.gmra.mrb[0].mxu0 %v6409
    %v6467 = vpop.f32.mrb[0].mxu0
    %v6468 = vadd.f32 0.0, %v6467
    %v6469 = vpop.f32.mrb[0].mxu0
    %v6470 = vpop.f32.mrb[0].mxu0
    %v6471 = vadd.f32 0.0, %v6470
    %v6472 = vpop.f32.mrb[0].mxu0
    %6473 = vmatprep.mubr.bf16.mxu0 0
    %6474 = vmatmul.mubr.bf16.gmra.mrb[0].mxu0 %v6412
    %v6475 = vpop.f32.mrb[0].mxu0
    %v6476 = vadd.f32 0.0, %v6475
    %v6477 = vpop.f32.mrb[0].mxu0
    %v6478 = vpop.f32.mrb[0].mxu0
    %v6479 = vadd.f32 0.0, %v6478
    %v6480 = vpop.f32.mrb[0].mxu0
    %6481 = vdwg.mxu0
    %v6482 = vadd.f32 %v5252, %v5332
    %v6483 = vadd.f32 %v5255, %v5335
    %v6484 = vadd.f32 %v5260, %v5340
    %v6485 = vadd.f32 %v5263, %v5343
    %v6486 = vadd.f32 %v5268, %v5348
    %v6487 = vadd.f32 %v5271, %v5351
    %v6488 = vadd.f32 %v5276, %v5356
    %v6489 = vadd.f32 %v5279, %v5359
    %v6490 = vadd.f32 %v5892, %v5972
    %v6491 = vadd.f32 %v5895, %v5975
    %v6492 = vadd.f32 %v5900, %v5980
    %v6493 = vadd.f32 %v5903, %v5983
    %v6494 = vadd.f32 %v5908, %v5988
    %v6495 = vadd.f32 %v5911, %v5991
    %v6496 = vadd.f32 %v5916, %v5996
    %v6497 = vadd.f32 %v5919, %v5999
    %v6498 = vadd.f32 %v6482, %v5412
    %v6499 = vadd.f32 %v6483, %v5415
    %v6500 = vadd.f32 %v6484, %v5420
    %v6501 = vadd.f32 %v6485, %v5423
    %v6502 = vadd.f32 %v6486, %v5428
    %v6503 = vadd.f32 %v6487, %v5431
    %v6504 = vadd.f32 %v6488, %v5436
    %v6505 = vadd.f32 %v6489, %v5439
    %v6506 = vadd.f32 %v6490, %v6052
    %v6507 = vadd.f32 %v6491, %v6055
    %v6508 = vadd.f32 %v6492, %v6060
    %v6509 = vadd.f32 %v6493, %v6063
    %v6510 = vadd.f32 %v6494, %v6068
    %v6511 = vadd.f32 %v6495, %v6071
    %v6512 = vadd.f32 %v6496, %v6076
    %v6513 = vadd.f32 %v6497, %v6079
    %v6514 = vadd.f32 %v6498, %v5492
    %v6515 = vadd.f32 %v6499, %v5495
    %v6516 = vadd.f32 %v6500, %v5500
    %v6517 = vadd.f32 %v6501, %v5503
    %v6518 = vadd.f32 %v6502, %v5508
    %v6519 = vadd.f32 %v6503, %v5511
    %v6520 = vadd.f32 %v6504, %v5516
    %v6521 = vadd.f32 %v6505, %v5519
    %v6522 = vadd.f32 %v6506, %v6132
    %v6523 = vadd.f32 %v6507, %v6135
    %v6524 = vadd.f32 %v6508, %v6140
    %v6525 = vadd.f32 %v6509, %v6143
    %v6526 = vadd.f32 %v6510, %v6148
    %v6527 = vadd.f32 %v6511, %v6151
    %v6528 = vadd.f32 %v6512, %v6156
    %v6529 = vadd.f32 %v6513, %v6159
    %v6530 = vadd.f32 %v6514, %v5572
    %v6531 = vadd.f32 %v6515, %v5575
    %v6532 = vadd.f32 %v6516, %v5580
    %v6533 = vadd.f32 %v6517, %v5583
    %v6534 = vadd.f32 %v6518, %v5588
    %v6535 = vadd.f32 %v6519, %v5591
    %v6536 = vadd.f32 %v6520, %v5596
    %v6537 = vadd.f32 %v6521, %v5599
    %v6538 = vadd.f32 %v6522, %v6212
    %v6539 = vadd.f32 %v6523, %v6215
    %v6540 = vadd.f32 %v6524, %v6220
    %v6541 = vadd.f32 %v6525, %v6223
    %v6542 = vadd.f32 %v6526, %v6228
    %v6543 = vadd.f32 %v6527, %v6231
    %v6544 = vadd.f32 %v6528, %v6236
    %v6545 = vadd.f32 %v6529, %v6239
    %v6546 = vadd.f32 %v6530, %v5652
    %v6547 = vadd.f32 %v6531, %v5655
    %v6548 = vadd.f32 %v6532, %v5660
    %v6549 = vadd.f32 %v6533, %v5663
    %v6550 = vadd.f32 %v6534, %v5668
    %v6551 = vadd.f32 %v6535, %v5671
    %v6552 = vadd.f32 %v6536, %v5676
    %v6553 = vadd.f32 %v6537, %v5679
    %v6554 = vadd.f32 %v6538, %v6292
    %v6555 = vadd.f32 %v6539, %v6295
    %v6556 = vadd.f32 %v6540, %v6300
    %v6557 = vadd.f32 %v6541, %v6303
    %v6558 = vadd.f32 %v6542, %v6308
    %v6559 = vadd.f32 %v6543, %v6311
    %v6560 = vadd.f32 %v6544, %v6316
    %v6561 = vadd.f32 %v6545, %v6319
    %v6562 = vadd.f32 %v6546, %v5732
    %v6563 = vadd.f32 %v6547, %v5735
    %v6564 = vadd.f32 %v6548, %v5740
    %v6565 = vadd.f32 %v6549, %v5743
    %v6566 = vadd.f32 %v6550, %v5748
    %v6567 = vadd.f32 %v6551, %v5751
    %v6568 = vadd.f32 %v6552, %v5756
    %v6569 = vadd.f32 %v6553, %v5759
    %v6570 = vadd.f32 %v6554, %v6372
    %v6571 = vadd.f32 %v6555, %v6375
    %v6572 = vadd.f32 %v6556, %v6380
    %v6573 = vadd.f32 %v6557, %v6383
    %v6574 = vadd.f32 %v6558, %v6388
    %v6575 = vadd.f32 %v6559, %v6391
    %v6576 = vadd.f32 %v6560, %v6396
    %v6577 = vadd.f32 %v6561, %v6399
    %v6578 = vadd.f32 %v6562, %v5812
    %v6579 = vadd.f32 %v6563, %v5815
    %v6580 = vadd.f32 %v6564, %v5820
    %v6581 = vadd.f32 %v6565, %v5823
    %v6582 = vadd.f32 %v6566, %v5828
    %v6583 = vadd.f32 %v6567, %v5831
    %v6584 = vadd.f32 %v6568, %v5836
    %v6585 = vadd.f32 %v6569, %v5839
    %v6586 = vadd.f32 %v6570, %v6452
    %v6587 = vadd.f32 %v6571, %v6455
    %v6588 = vadd.f32 %v6572, %v6460
    %v6589 = vadd.f32 %v6573, %v6463
    %v6590 = vadd.f32 %v6574, %v6468
    %v6591 = vadd.f32 %v6575, %v6471
    %v6592 = vadd.f32 %v6576, %v6476
    %v6593 = vadd.f32 %v6577, %v6479
    %v6594 = vld [vmem:[%s4] sm:$0x1]
    %v6596 = vlaneseq
    %v6597 = vshrl.u32 %v6596, 7
    %v6598 = vsub.s32 0, %v6597
    %v6599 = vrot.slane %v6594, %v6598
    %v6601 = vadd.f32 %v6578, %v6599
    %v6602 = vadd.f32 %v6579, %v6599
    %v6603 = vadd.f32 %v6580, %v6599
    %v6604 = vadd.f32 %v6581, %v6599
    %v6605 = vadd.f32 %v6582, %v6599
    %v6606 = vadd.f32 %v6583, %v6599
    %v6607 = vadd.f32 %v6584, %v6599
    %v6608 = vadd.f32 %v6585, %v6599
    %v6609 = vadd.f32 %v6586, %v6599
    %v6610 = vadd.f32 %v6587, %v6599
    %v6611 = vadd.f32 %v6588, %v6599
    %v6612 = vadd.f32 %v6589, %v6599
    %v6613 = vadd.f32 %v6590, %v6599
    %v6614 = vadd.f32 %v6591, %v6599
    %v6615 = vadd.f32 %v6592, %v6599
    %v6616 = vadd.f32 %v6593, %v6599
    %6617 = vxpose.xlu0.b32.start [1/16] %v6601, 128
    %6618 = vxpose.xlu0.b32.cont [2/16] %v6602, 128
    %6619 = vxpose.xlu0.b32.cont [3/16] %v6603, 128
    %6620 = vxpose.xlu0.b32.cont [4/16] %v6604, 128
    %6621 = vxpose.xlu0.b32.cont [5/16] %v6605, 128
    %6622 = vxpose.xlu0.b32.cont [6/16] %v6606, 128
    %6623 = vxpose.xlu0.b32.cont [7/16] %v6607, 128
    %6624 = vxpose.xlu0.b32.cont [8/16] %v6608, 128
    %6625 = vxpose.xlu0.b32.cont [9/16] %v6609, 128
    %6626 = vxpose.xlu0.b32.cont [10/16] %v6610, 128
    %6627 = vxpose.xlu0.b32.cont [11/16] %v6611, 128
    %6628 = vxpose.xlu0.b32.cont [12/16] %v6612, 128
    %6629 = vxpose.xlu0.b32.cont [13/16] %v6613, 128
    %6630 = vxpose.xlu0.b32.cont [14/16] %v6614, 128
    %6631 = vxpose.xlu0.b32.cont [15/16] %v6615, 128
    %6632 = vxpose.xlu0.b32.end [16/16] %v6616, 128
    %v6633 = vpop.trf.xlu0
    %v6634 = vpop.trf.xlu0
    %v6635 = vpop.trf.xlu0
    %v6636 = vpop.trf.xlu0
    %v6637 = vpop.trf.xlu0
    %v6638 = vpop.trf.xlu0
    %v6639 = vpop.trf.xlu0
    %v6640 = vpop.trf.xlu0
    %v6641 = vpop.trf.xlu0
    %v6642 = vpop.trf.xlu0
    %v6643 = vpop.trf.xlu0
    %v6644 = vpop.trf.xlu0
    %v6645 = vpop.trf.xlu0
    %v6646 = vpop.trf.xlu0
    %v6647 = vpop.trf.xlu0
    %v6648 = vpop.trf.xlu0
    %6649 = vst [vmem:[#allocation2] sm:$0xff] %v6633
    %6650 = vst [vmem:[#allocation2 + $0x8] sm:$0xff] %v6634
    %6651 = vst [vmem:[#allocation2 + $0x10] sm:$0xff] %v6635
    %6652 = vst [vmem:[#allocation2 + $0x18] sm:$0xff] %v6636
    // Predicated region
    $region22: #{tpu_custom_call.1} parent=1 // pred_check
      _
    $region23: #{tpu_custom_call.1} parent=1 // pred_check_branch
      %6654 = sbr.rel (0) target = $region25
    $region24: #{tpu_custom_call.1} parent=1 // pred_region
      %s6656 = ssub.s32 512, 512
      %6657 = vsyncadd [#allocation3], %s6656
      %s6658 = sshll.u32 [#allocation2], 4
      %s6659 = int_to_ptr.vmem [resolvable:$true] %s6658
      %6664 = dma.vmem_to_hbm [thread:$0]  %s6659, 512, %s5, [#allocation3], 128, 128, 8
    $region25: #{tpu_custom_call.1} parent=1 // pred_fallthru
      _
    // Predicated region
    $region26: #{tpu_custom_call.1} parent=1 // pred_check
      _
    $region27: #{tpu_custom_call.1} parent=1 // pred_check_branch
      %6666 = sbr.rel (0) target = $region29
    $region28: #{tpu_custom_call.1} parent=1 // pred_region
      %6667 = dma.done [#allocation3], 512
    $region29: #{tpu_custom_call.1} parent=1 // pred_fallthru
      _
    %6668 = vsyncpa [#allocation3], 1

</llo_original>
